<compile_context>
chip_gen: v7x
topology: tpu7x:2x2x1
jax: 0.10.0
libtpu: 0.0.40
codegen_flags: <defaults>
</compile_context>

<pallas_src>
import functools
import math

import jax
import jax.numpy as jnp
from jax.experimental import pallas as pl
from jax.experimental.pallas import tpu as pltpu

# ---- module hyper-parameters (small, consistent with the PyTorch module) ----
D_MODEL = 32
N_HEADS = 8
HEAD_DIM = D_MODEL // N_HEADS
N_LAYERS = 2
MLP_MULT = 4
D_FF = D_MODEL * MLP_MULT
N_CLS = 2
LN_EPS = 1e-5  # PyTorch nn.LayerNorm default
LANES = 128

# ---- packed vector-slab row layout (each row = 128 lanes, data left aligned) ----
_ROWS_PER_LAYER = 8
_R_IN_B, _R_OUT_B, _R_L1_B, _R_L2_B, _R_N1W, _R_N1B, _R_N2W, _R_N2B = range(8)
_R_FN_W = N_LAYERS * _ROWS_PER_LAYER + 0
_R_FN_B = N_LAYERS * _ROWS_PER_LAYER + 1
_R_FC_B = N_LAYERS * _ROWS_PER_LAYER + 2
_R_KEYB = N_LAYERS * _ROWS_PER_LAYER + 3
_N_VEC_ROWS_RAW = N_LAYERS * _ROWS_PER_LAYER + 4
_N_VEC_ROWS = ((_N_VEC_ROWS_RAW + 7) // 8) * 8


def _layernorm(x, w, b):
    mu = jnp.mean(x, axis=-1, keepdims=True)
    xc = x - mu
    var = jnp.mean(xc * xc, axis=-1, keepdims=True)
    return xc * jax.lax.rsqrt(var + LN_EPS) * w + b


def transformer_head_kernel(
    x_ref,       # (B*S_pad, D)        padded token sequence, batch folded into sublanes
    wqkv_ref,    # (L*D, 3D)           in_proj weights, pre-transposed, layers stacked
    wo_ref,      # (L*D, D)            out_proj weights, pre-transposed
    w1_ref,      # (L*D, D_FF)         linear1 weights, pre-transposed
    w2_ref,      # (L*D_FF, D)         linear2 weights, pre-transposed
    vec_ref,     # (_N_VEC_ROWS, 128)  packed biases / LN params / fc bias / key bias
    rmask_ref,   # (H*S_pad, D)        per-head lane mask for replicated-Q attention
    fc_ref,      # (D, 128)            classifier weight, pre-transposed, lane padded
    o_ref,       # (B, 128)            logits (lane padded)
    *, batch, s_pad,
):
    D = D_MODEL
    scale = 1.0 / math.sqrt(HEAD_DIM)

    x = x_ref[...]                                          # (B*Sp, D)
    rmask = rmask_ref[...]                                  # (H*Sp, D)
    key_bias = vec_ref[_R_KEYB:_R_KEYB + 1, :s_pad]         # (1, Sp) : 0 real / -1e9 pad

    for l in range(N_LAYERS):                               # static unroll (N_LAYERS = 2)
        base = l * _ROWS_PER_LAYER
        wqkv = wqkv_ref[l * D:(l + 1) * D, :]               # (D, 3D)
        wo = wo_ref[l * D:(l + 1) * D, :]                   # (D, D)
        w1 = w1_ref[l * D:(l + 1) * D, :]                   # (D, D_FF)
        w2 = w2_ref[l * D_FF:(l + 1) * D_FF, :]             # (D_FF, D)
        in_b = vec_ref[base + _R_IN_B:base + _R_IN_B + 1, :3 * D]
        out_b = vec_ref[base + _R_OUT_B:base + _R_OUT_B + 1, :D]
        l1_b = vec_ref[base + _R_L1_B:base + _R_L1_B + 1, :D_FF]
        l2_b = vec_ref[base + _R_L2_B:base + _R_L2_B + 1, :D]
        n1w = vec_ref[base + _R_N1W:base + _R_N1W + 1, :D]
        n1b = vec_ref[base + _R_N1B:base + _R_N1B + 1, :D]
        n2w = vec_ref[base + _R_N2W:base + _R_N2W + 1, :D]
        n2b = vec_ref[base + _R_N2B:base + _R_N2B + 1, :D]

        # ---- QKV projection: one matmul over the whole (batch-folded) sequence ----
        qkv = jnp.dot(x, wqkv, preferred_element_type=jnp.float32) + in_b   # (B*Sp, 3D)
        q = qkv[:, :D] * scale
        k = qkv[:, D:2 * D]
        v = qkv[:, 2 * D:3 * D]

        # ---- self-attention: heads batched along sublanes, one softmax per sample ----
        ctx_parts = []
        for b in range(batch):                               # static unroll over samples
            r0 = b * s_pad                                   # sublane-aligned offset
            qb = q[r0:r0 + s_pad, :]                         # (Sp, D)
            kb = k[r0:r0 + s_pad, :]
            vb = v[r0:r0 + s_pad, :]
            # replicate q once per head along sublanes, mask to that head's lanes
            qbig = jnp.concatenate([qb] * N_HEADS, axis=0) * rmask          # (H*Sp, D)
            scores = jax.lax.dot_general(                                    # (H*Sp, Sp)
                qbig, kb, (((1,), (1,)), ((), ())),
                preferred_element_type=jnp.float32)
            scores = scores + key_bias                       # mask padded keys
            m = jnp.max(scores, axis=-1, keepdims=True)
            p = jnp.exp(scores - m)
            denom = jnp.sum(p, axis=-1, keepdims=True)
            p = p * pl.reciprocal(denom, approx=True)        # EUP, not VPU divide
            ctxbig = jnp.dot(p, vb, preferred_element_type=jnp.float32) * rmask  # (H*Sp, D)
            # sum head blocks -> head outputs land contiguously along lanes
            ctx = ctxbig[0:s_pad, :]
            for h in range(1, N_HEADS):
                ctx = ctx + ctxbig[h * s_pad:(h + 1) * s_pad, :]
            ctx_parts.append(ctx)                            # (Sp, D)
        ctx_all = ctx_parts[0] if batch == 1 else jnp.concatenate(ctx_parts, axis=0)

        # ---- single output projection + post-norm residual ----
        attn_out = jnp.dot(ctx_all, wo, preferred_element_type=jnp.float32) + out_b
        x = _layernorm(x + attn_out, n1w, n1b)

        # ---- feed-forward block (ReLU, TransformerEncoderLayer default) ----
        hdn = jnp.maximum(jnp.dot(x, w1, preferred_element_type=jnp.float32) + l1_b, 0.0)
        ff = jnp.dot(hdn, w2, preferred_element_type=jnp.float32) + l2_b
        x = _layernorm(x + ff, n2w, n2b)

    # ---- pool='cls' -> final norm -> classifier (single lane-dense store) ----
    cls_rows = [x[b * s_pad:b * s_pad + 1, :] for b in range(batch)]
    cls = cls_rows[0] if batch == 1 else jnp.concatenate(cls_rows, axis=0)   # (B, D)
    cls = _layernorm(cls,
                     vec_ref[_R_FN_W:_R_FN_W + 1, :D_MODEL],
                     vec_ref[_R_FN_B:_R_FN_B + 1, :D_MODEL])
    logits = jnp.dot(cls, fc_ref[...], preferred_element_type=jnp.float32)   # (B, 128)
    logits = logits + vec_ref[_R_FC_B:_R_FC_B + 1, :]
    o_ref[...] = logits


# --------------------------- host-side packing helpers ---------------------------
def _pack_params(p, s_real):
    wqkv = jnp.concatenate([p["in_w"][l].T for l in range(N_LAYERS)], axis=0)   # (L*D, 3D)
    wo = jnp.concatenate([p["out_w"][l].T for l in range(N_LAYERS)], axis=0)    # (L*D, D)
    w1 = jnp.concatenate([p["l1_w"][l].T for l in range(N_LAYERS)], axis=0)     # (L*D, D_FF)
    w2 = jnp.concatenate([p["l2_w"][l].T for l in range(N_LAYERS)], axis=0)     # (L*D_FF, D)

    def row(v):
        v = jnp.asarray(v, jnp.float32).reshape(-1)
        return jnp.pad(v, (0, LANES - v.shape[0]))[None, :]

    rows = []
    for l in range(N_LAYERS):
        rows += [row(p["in_b"][l]), row(p["out_b"][l]), row(p["l1_b"][l]),
                 row(p["l2_b"][l]), row(p["n1_w"][l]), row(p["n1_b"][l]),
                 row(p["n2_w"][l]), row(p["n2_b"][l])]
    rows += [row(p["fn_w"][0]), row(p["fn_b"][0]), row(p["fc_b"][0])]
    key_bias = jnp.where(jnp.arange(LANES) < s_real, 0.0, -1e9).astype(jnp.float32)[None, :]
    rows += [key_bias]
    if _N_VEC_ROWS > len(rows):
        rows += [jnp.zeros((_N_VEC_ROWS - len(rows), LANES), jnp.float32)]
    vec = jnp.concatenate(rows, axis=0)                                          # (24, 128)

    fcT = jnp.zeros((D_MODEL, LANES), jnp.float32).at[:, :N_CLS].set(p["fc_w"].T)
    return wqkv, wo, w1, w2, vec, fcT


def _head_mask(s_pad):
    head_of_col = (jnp.arange(D_MODEL) // HEAD_DIM)[None, :]        # (1, D)
    row_head = jnp.repeat(jnp.arange(N_HEADS), s_pad)[:, None]      # (H*Sp, 1)
    return (row_head == head_of_col).astype(jnp.float32)            # (H*Sp, D)


def transformer_head_forward(x, params):
    """x: (B, C=d_model, H, W) NCHW feature map (or (B, N) flat, like the module)."""
    if x.ndim == 2:
        B, N = x.shape
        side = int((N // D_MODEL) ** 0.5)
        x = x.reshape(B, D_MODEL, side, side)
    B, C, H, W = x.shape
    tokens = x.reshape(B, C, H * W).transpose(0, 2, 1)               # (B, HW, C)
    cls = jnp.broadcast_to(params["cls_token"], (B, 1, C))
    seq = jnp.concatenate([cls, tokens], axis=1)                     # (B, S, D)
    s_real = seq.shape[1]
    s_pad = ((s_real + 7) // 8) * 8                                  # sublane-align
    seq = jnp.pad(seq, ((0, 0), (0, s_pad - s_real), (0, 0)))
    xflat = seq.reshape(B * s_pad, C).astype(jnp.float32)            # batch folded in sublanes

    wqkv, wo, w1, w2, vec, fcT = _pack_params(params, s_real)
    rmask = _head_mask(s_pad)

    args = (xflat, wqkv, wo, w1, w2, vec, rmask, fcT)
    in_specs = [pl.BlockSpec(a.shape, lambda i, _nd=a.ndim: (0,) * _nd) for a in args]

    out = pl.pallas_call(
        functools.partial(transformer_head_kernel, batch=B, s_pad=s_pad),
        out_shape=jax.ShapeDtypeStruct((B, LANES), jnp.float32),
        grid_spec=pltpu.PrefetchScalarGridSpec(
            num_scalar_prefetch=0,
            grid=(1,),                                   # single grid step: whole batch
            in_specs=in_specs,
            out_specs=pl.BlockSpec((B, LANES), lambda i: (0, 0)),
        ),
        compiler_params=pltpu.CompilerParams(dimension_semantics=("arbitrary",)),
    )(*args)
    return out[:, :N_CLS]


# ------------------------------- params & reference -------------------------------
def init_params(key):
    """Deterministic synthetic parameters matching TransformerHead's shapes."""
    ks = jax.random.split(key, 10)
    s = 0.02
    p = {}
    p["cls_token"] = jax.random.truncated_normal(
        ks[0], -2.0, 2.0, (1, 1, D_MODEL), jnp.float32) * s
    p["in_w"] = jax.random.normal(ks[1], (N_LAYERS, 3 * D_MODEL, D_MODEL), jnp.float32) * s
    p["in_b"] = jax.random.normal(ks[2], (N_LAYERS, 3 * D_MODEL), jnp.float32) * s
    p["out_w"] = jax.random.normal(ks[3], (N_LAYERS, D_MODEL, D_MODEL), jnp.float32) * s
    p["out_b"] = jax.random.normal(ks[4], (N_LAYERS, D_MODEL), jnp.float32) * s
    p["l1_w"] = jax.random.normal(ks[5], (N_LAYERS, D_FF, D_MODEL), jnp.float32) * s
    p["l1_b"] = jax.random.normal(ks[6], (N_LAYERS, D_FF), jnp.float32) * s
    p["l2_w"] = jax.random.normal(ks[7], (N_LAYERS, D_MODEL, D_FF), jnp.float32) * s
    p["l2_b"] = jax.random.normal(ks[8], (N_LAYERS, D_MODEL), jnp.float32) * s
    p["n1_w"] = jnp.ones((N_LAYERS, D_MODEL), jnp.float32)
    p["n1_b"] = jnp.zeros((N_LAYERS, D_MODEL), jnp.float32)
    p["n2_w"] = jnp.ones((N_LAYERS, D_MODEL), jnp.float32)
    p["n2_b"] = jnp.zeros((N_LAYERS, D_MODEL), jnp.float32)
    p["fn_w"] = jnp.ones((1, D_MODEL), jnp.float32)
    p["fn_b"] = jnp.zeros((1, D_MODEL), jnp.float32)
    p["fc_w"] = jax.random.normal(ks[9], (N_CLS, D_MODEL), jnp.float32) * s
    p["fc_b"] = jnp.zeros((1, N_CLS), jnp.float32)
    return p


def reference_forward(x, p):
    """Pure-JAX reference mirroring PyTorch TransformerEncoder (eval) semantics."""
    B, C, H, W = x.shape
    tokens = x.reshape(B, C, H * W).transpose(0, 2, 1)
    cls = jnp.broadcast_to(p["cls_token"], (B, 1, C))
    xs = jnp.concatenate([cls, tokens], axis=1)

    def ln(t, w, b):
        mu = t.mean(-1, keepdims=True)
        var = ((t - mu) ** 2).mean(-1, keepdims=True)
        return (t - mu) / jnp.sqrt(var + LN_EPS) * w + b

    for l in range(N_LAYERS):
        qkv = xs @ p["in_w"][l].T + p["in_b"][l]
        q, k, v = jnp.split(qkv, 3, axis=-1)
        Bq, S, _ = q.shape

        def heads(t):
            return t.reshape(Bq, S, N_HEADS, HEAD_DIM).transpose(0, 2, 1, 3)

        qh, kh, vh = heads(q), heads(k), heads(v)
        scores = (qh @ kh.transpose(0, 1, 3, 2)) / math.sqrt(HEAD_DIM)
        pattn = jax.nn.softmax(scores, axis=-1)
        ctx = (pattn @ vh).transpose(0, 2, 1, 3).reshape(Bq, S, D_MODEL)
        attn = ctx @ p["out_w"][l].T + p["out_b"][l]
        xs = ln(xs + attn, p["n1_w"][l], p["n1_b"][l])
        ff = jnp.maximum(xs @ p["l1_w"][l].T + p["l1_b"][l], 0.0) @ p["l2_w"][l].T + p["l2_b"][l]
        xs = ln(xs + ff, p["n2_w"][l], p["n2_b"][l])

    clsv = ln(xs[:, 0], p["fn_w"][0], p["fn_b"][0])
    return clsv @ p["fc_w"].T + p["fc_b"][0]


if __name__ == "__main__":
    key = jax.random.PRNGKey(0)
    kx, kp = jax.random.split(key)
    # B=2, C=d_model=32, H=W=4  ->  seq = 4*4 + 1 = 17 tokens (padded to 24 inside)
    x = jax.random.normal(kx, (2, D_MODEL, 4, 4), jnp.float32)
    params = init_params(kp)

    out = transformer_head_forward(x, params)
    out = jax.block_until_ready(out)

    ref = reference_forward(x, params)
    assert out.shape == (2, N_CLS), out.shape
    assert jnp.allclose(out, ref, atol=2e-3, rtol=2e-3), (out, ref)
    print("KERNEL_OK")
</pallas_src>

<mosaic_0001>
module attributes {stable_mosaic.version = 11 : i64} {
  func.func @transformer_head_kernel(%arg0: i32, %arg1: memref<48x32xf32, #tpu.memory_space<vmem>>, %arg2: memref<64x96xf32, #tpu.memory_space<vmem>>, %arg3: memref<64x32xf32, #tpu.memory_space<vmem>>, %arg4: memref<64x128xf32, #tpu.memory_space<vmem>>, %arg5: memref<256x32xf32, #tpu.memory_space<vmem>>, %arg6: memref<24x128xf32, #tpu.memory_space<vmem>>, %arg7: memref<192x32xf32, #tpu.memory_space<vmem>>, %arg8: memref<32x128xf32, #tpu.memory_space<vmem>>, %arg9: memref<2x128xf32, #tpu.memory_space<vmem>>) attributes {dimension_semantics = [#tpu.dimension_semantics<arbitrary>], iteration_bounds = array<i64: 1>, scalar_prefetch = 0 : i64, scratch_operands = 0 : i64, tpu.core_type = #tpu.core_type<tc>, window_params = [{pipeline_mode = #tpu.pipeline_mode<synchronous>, transform_indices = @transform_0, window_bounds = array<i64: 48, 32>}, {pipeline_mode = #tpu.pipeline_mode<synchronous>, transform_indices = @transform_1, window_bounds = array<i64: 64, 96>}, {pipeline_mode = #tpu.pipeline_mode<synchronous>, transform_indices = @transform_2, window_bounds = array<i64: 64, 32>}, {pipeline_mode = #tpu.pipeline_mode<synchronous>, transform_indices = @transform_3, window_bounds = array<i64: 64, 128>}, {pipeline_mode = #tpu.pipeline_mode<synchronous>, transform_indices = @transform_4, window_bounds = array<i64: 256, 32>}, {pipeline_mode = #tpu.pipeline_mode<synchronous>, transform_indices = @transform_5, window_bounds = array<i64: 24, 128>}, {pipeline_mode = #tpu.pipeline_mode<synchronous>, transform_indices = @transform_6, window_bounds = array<i64: 192, 32>}, {pipeline_mode = #tpu.pipeline_mode<synchronous>, transform_indices = @transform_7, window_bounds = array<i64: 32, 128>}, {pipeline_mode = #tpu.pipeline_mode<synchronous>, transform_indices = @transform_8, window_bounds = array<i64: 2, 128>}]} {
    %c0 = arith.constant 0 : index
    %c0_0 = arith.constant 0 : index
    %0 = vector.load %arg1[%c0, %c0_0] : memref<48x32xf32, #tpu.memory_space<vmem>>, vector<48x32xf32>
    %c0_1 = arith.constant 0 : index
    %c0_2 = arith.constant 0 : index
    %1 = vector.load %arg7[%c0_1, %c0_2] : memref<192x32xf32, #tpu.memory_space<vmem>>, vector<192x32xf32>
    %c19 = arith.constant 19 : index
    %c0_3 = arith.constant 0 : index
    %2 = vector.load %arg6[%c19, %c0_3] : memref<24x128xf32, #tpu.memory_space<vmem>>, vector<1x24xf32>
    %c0_4 = arith.constant 0 : index
    %c0_5 = arith.constant 0 : index
    %3 = vector.load %arg2[%c0_4, %c0_5] : memref<64x96xf32, #tpu.memory_space<vmem>>, vector<32x96xf32>
    %c0_6 = arith.constant 0 : index
    %c0_7 = arith.constant 0 : index
    %4 = vector.load %arg3[%c0_6, %c0_7] : memref<64x32xf32, #tpu.memory_space<vmem>>, vector<32x32xf32>
    %c0_8 = arith.constant 0 : index
    %c0_9 = arith.constant 0 : index
    %5 = vector.load %arg4[%c0_8, %c0_9] : memref<64x128xf32, #tpu.memory_space<vmem>>, vector<32x128xf32>
    %c0_10 = arith.constant 0 : index
    %c0_11 = arith.constant 0 : index
    %6 = vector.load %arg5[%c0_10, %c0_11] : memref<256x32xf32, #tpu.memory_space<vmem>>, vector<128x32xf32>
    %c0_12 = arith.constant 0 : index
    %c0_13 = arith.constant 0 : index
    %7 = vector.load %arg6[%c0_12, %c0_13] : memref<24x128xf32, #tpu.memory_space<vmem>>, vector<1x96xf32>
    %c1 = arith.constant 1 : index
    %c0_14 = arith.constant 0 : index
    %8 = vector.load %arg6[%c1, %c0_14] : memref<24x128xf32, #tpu.memory_space<vmem>>, vector<1x32xf32>
    %c2 = arith.constant 2 : index
    %c0_15 = arith.constant 0 : index
    %9 = vector.load %arg6[%c2, %c0_15] : memref<24x128xf32, #tpu.memory_space<vmem>>, vector<1x128xf32>
    %c3 = arith.constant 3 : index
    %c0_16 = arith.constant 0 : index
    %10 = vector.load %arg6[%c3, %c0_16] : memref<24x128xf32, #tpu.memory_space<vmem>>, vector<1x32xf32>
    %c4 = arith.constant 4 : index
    %c0_17 = arith.constant 0 : index
    %11 = vector.load %arg6[%c4, %c0_17] : memref<24x128xf32, #tpu.memory_space<vmem>>, vector<1x32xf32>
    %c5 = arith.constant 5 : index
    %c0_18 = arith.constant 0 : index
    %12 = vector.load %arg6[%c5, %c0_18] : memref<24x128xf32, #tpu.memory_space<vmem>>, vector<1x32xf32>
    %c6 = arith.constant 6 : index
    %c0_19 = arith.constant 0 : index
    %13 = vector.load %arg6[%c6, %c0_19] : memref<24x128xf32, #tpu.memory_space<vmem>>, vector<1x32xf32>
    %c7 = arith.constant 7 : index
    %c0_20 = arith.constant 0 : index
    %14 = vector.load %arg6[%c7, %c0_20] : memref<24x128xf32, #tpu.memory_space<vmem>>, vector<1x32xf32>
    %cst = arith.constant dense<0.000000e+00> : vector<48x96xf32>
    %15 = tpu.matmul %0, %3, %cst {dimension_numbers = #tpu.dot_dimension_numbers<[1], [0], [0], [1], [0, 0, 1, 1], [], []>} : vector<48x32xf32>, vector<32x96xf32>, vector<48x96xf32> -> vector<48x96xf32>
    %16 = vector.broadcast %7 : vector<1x96xf32> to vector<48x96xf32>
    %17 = arith.addf %15, %16 : vector<48x96xf32>
    %18 = vector.extract_strided_slice %17 {offsets = [0, 0], sizes = [48, 32], strides = [1, 1]} : vector<48x96xf32> to vector<48x32xf32>
    %cst_21 = arith.constant 5.000000e-01 : f32
    %19 = vector.broadcast %cst_21 : f32 to vector<48x32xf32>
    %20 = arith.mulf %18, %19 : vector<48x32xf32>
    %21 = vector.extract_strided_slice %17 {offsets = [0, 32], sizes = [48, 32], strides = [1, 1]} : vector<48x96xf32> to vector<48x32xf32>
    %22 = vector.extract_strided_slice %17 {offsets = [0, 64], sizes = [48, 32], strides = [1, 1]} : vector<48x96xf32> to vector<48x32xf32>
    %23 = vector.extract_strided_slice %20 {offsets = [0, 0], sizes = [24, 32], strides = [1, 1]} : vector<48x32xf32> to vector<24x32xf32>
    %24 = vector.extract_strided_slice %21 {offsets = [0, 0], sizes = [24, 32], strides = [1, 1]} : vector<48x32xf32> to vector<24x32xf32>
    %25 = vector.extract_strided_slice %22 {offsets = [0, 0], sizes = [24, 32], strides = [1, 1]} : vector<48x32xf32> to vector<24x32xf32>
    %26 = tpu.concatenate %23, %23, %23, %23, %23, %23, %23, %23 in 0 : vector<24x32xf32>, vector<24x32xf32>, vector<24x32xf32>, vector<24x32xf32>, vector<24x32xf32>, vector<24x32xf32>, vector<24x32xf32>, vector<24x32xf32> -> vector<192x32xf32>
    %27 = arith.mulf %26, %1 : vector<192x32xf32>
    %cst_22 = arith.constant dense<0.000000e+00> : vector<192x24xf32>
    %28 = tpu.matmul %27, %24, %cst_22 {dimension_numbers = #tpu.dot_dimension_numbers<[1], [1], [0], [0], [0, 0, 1, 0], [], []>} : vector<192x32xf32>, vector<24x32xf32>, vector<192x24xf32> -> vector<192x24xf32>
    %29 = vector.broadcast %2 : vector<1x24xf32> to vector<192x24xf32>
    %30 = arith.addf %28, %29 : vector<192x24xf32>
    %cst_23 = arith.constant dense<0xFF800000> : vector<192xf32>
    %31 = vector.multi_reduction <maximumf>, %30, %cst_23 [1] : vector<192x24xf32> to vector<192xf32>
    %32 = vector.shape_cast %31 : vector<192xf32> to vector<192x1xf32>
    %33 = vector.broadcast %32 : vector<192x1xf32> to vector<192x24xf32>
    %34 = arith.subf %30, %33 : vector<192x24xf32>
    %35 = math.exp %34 : vector<192x24xf32>
    %cst_24 = arith.constant dense<0.000000e+00> : vector<192xf32>
    %36 = vector.multi_reduction <add>, %35, %cst_24 [1] : vector<192x24xf32> to vector<192xf32>
    %37 = vector.shape_cast %36 : vector<192xf32> to vector<192x1xf32>
    %38 = tpu.reciprocal %37 {approx = true} : vector<192x1xf32> -> vector<192x1xf32>
    %39 = vector.broadcast %38 : vector<192x1xf32> to vector<192x24xf32>
    %40 = arith.mulf %35, %39 : vector<192x24xf32>
    %cst_25 = arith.constant dense<0.000000e+00> : vector<192x32xf32>
    %41 = tpu.matmul %40, %25, %cst_25 {dimension_numbers = #tpu.dot_dimension_numbers<[1], [0], [0], [1], [0, 0, 1, 1], [], []>} : vector<192x24xf32>, vector<24x32xf32>, vector<192x32xf32> -> vector<192x32xf32>
    %42 = arith.mulf %41, %1 : vector<192x32xf32>
    %43 = vector.extract_strided_slice %42 {offsets = [0, 0], sizes = [24, 32], strides = [1, 1]} : vector<192x32xf32> to vector<24x32xf32>
    %44 = vector.extract_strided_slice %42 {offsets = [24, 0], sizes = [24, 32], strides = [1, 1]} : vector<192x32xf32> to vector<24x32xf32>
    %45 = arith.addf %43, %44 : vector<24x32xf32>
    %46 = vector.extract_strided_slice %42 {offsets = [48, 0], sizes = [24, 32], strides = [1, 1]} : vector<192x32xf32> to vector<24x32xf32>
    %47 = arith.addf %45, %46 : vector<24x32xf32>
    %48 = vector.extract_strided_slice %42 {offsets = [72, 0], sizes = [24, 32], strides = [1, 1]} : vector<192x32xf32> to vector<24x32xf32>
    %49 = arith.addf %47, %48 : vector<24x32xf32>
    %50 = vector.extract_strided_slice %42 {offsets = [96, 0], sizes = [24, 32], strides = [1, 1]} : vector<192x32xf32> to vector<24x32xf32>
    %51 = arith.addf %49, %50 : vector<24x32xf32>
    %52 = vector.extract_strided_slice %42 {offsets = [120, 0], sizes = [24, 32], strides = [1, 1]} : vector<192x32xf32> to vector<24x32xf32>
    %53 = arith.addf %51, %52 : vector<24x32xf32>
    %54 = vector.extract_strided_slice %42 {offsets = [144, 0], sizes = [24, 32], strides = [1, 1]} : vector<192x32xf32> to vector<24x32xf32>
    %55 = arith.addf %53, %54 : vector<24x32xf32>
    %56 = vector.extract_strided_slice %42 {offsets = [168, 0], sizes = [24, 32], strides = [1, 1]} : vector<192x32xf32> to vector<24x32xf32>
    %57 = arith.addf %55, %56 : vector<24x32xf32>
    %58 = vector.extract_strided_slice %20 {offsets = [24, 0], sizes = [24, 32], strides = [1, 1]} : vector<48x32xf32> to vector<24x32xf32>
    %59 = vector.extract_strided_slice %21 {offsets = [24, 0], sizes = [24, 32], strides = [1, 1]} : vector<48x32xf32> to vector<24x32xf32>
    %60 = vector.extract_strided_slice %22 {offsets = [24, 0], sizes = [24, 32], strides = [1, 1]} : vector<48x32xf32> to vector<24x32xf32>
    %61 = tpu.concatenate %58, %58, %58, %58, %58, %58, %58, %58 in 0 : vector<24x32xf32>, vector<24x32xf32>, vector<24x32xf32>, vector<24x32xf32>, vector<24x32xf32>, vector<24x32xf32>, vector<24x32xf32>, vector<24x32xf32> -> vector<192x32xf32>
    %62 = arith.mulf %61, %1 : vector<192x32xf32>
    %cst_26 = arith.constant dense<0.000000e+00> : vector<192x24xf32>
    %63 = tpu.matmul %62, %59, %cst_26 {dimension_numbers = #tpu.dot_dimension_numbers<[1], [1], [0], [0], [0, 0, 1, 0], [], []>} : vector<192x32xf32>, vector<24x32xf32>, vector<192x24xf32> -> vector<192x24xf32>
    %64 = vector.broadcast %2 : vector<1x24xf32> to vector<192x24xf32>
    %65 = arith.addf %63, %64 : vector<192x24xf32>
    %cst_27 = arith.constant dense<0xFF800000> : vector<192xf32>
    %66 = vector.multi_reduction <maximumf>, %65, %cst_27 [1] : vector<192x24xf32> to vector<192xf32>
    %67 = vector.shape_cast %66 : vector<192xf32> to vector<192x1xf32>
    %68 = vector.broadcast %67 : vector<192x1xf32> to vector<192x24xf32>
    %69 = arith.subf %65, %68 : vector<192x24xf32>
    %70 = math.exp %69 : vector<192x24xf32>
    %cst_28 = arith.constant dense<0.000000e+00> : vector<192xf32>
    %71 = vector.multi_reduction <add>, %70, %cst_28 [1] : vector<192x24xf32> to vector<192xf32>
    %72 = vector.shape_cast %71 : vector<192xf32> to vector<192x1xf32>
    %73 = tpu.reciprocal %72 {approx = true} : vector<192x1xf32> -> vector<192x1xf32>
    %74 = vector.broadcast %73 : vector<192x1xf32> to vector<192x24xf32>
    %75 = arith.mulf %70, %74 : vector<192x24xf32>
    %cst_29 = arith.constant dense<0.000000e+00> : vector<192x32xf32>
    %76 = tpu.matmul %75, %60, %cst_29 {dimension_numbers = #tpu.dot_dimension_numbers<[1], [0], [0], [1], [0, 0, 1, 1], [], []>} : vector<192x24xf32>, vector<24x32xf32>, vector<192x32xf32> -> vector<192x32xf32>
    %77 = arith.mulf %76, %1 : vector<192x32xf32>
    %78 = vector.extract_strided_slice %77 {offsets = [0, 0], sizes = [24, 32], strides = [1, 1]} : vector<192x32xf32> to vector<24x32xf32>
    %79 = vector.extract_strided_slice %77 {offsets = [24, 0], sizes = [24, 32], strides = [1, 1]} : vector<192x32xf32> to vector<24x32xf32>
    %80 = arith.addf %78, %79 : vector<24x32xf32>
    %81 = vector.extract_strided_slice %77 {offsets = [48, 0], sizes = [24, 32], strides = [1, 1]} : vector<192x32xf32> to vector<24x32xf32>
    %82 = arith.addf %80, %81 : vector<24x32xf32>
    %83 = vector.extract_strided_slice %77 {offsets = [72, 0], sizes = [24, 32], strides = [1, 1]} : vector<192x32xf32> to vector<24x32xf32>
    %84 = arith.addf %82, %83 : vector<24x32xf32>
    %85 = vector.extract_strided_slice %77 {offsets = [96, 0], sizes = [24, 32], strides = [1, 1]} : vector<192x32xf32> to vector<24x32xf32>
    %86 = arith.addf %84, %85 : vector<24x32xf32>
    %87 = vector.extract_strided_slice %77 {offsets = [120, 0], sizes = [24, 32], strides = [1, 1]} : vector<192x32xf32> to vector<24x32xf32>
    %88 = arith.addf %86, %87 : vector<24x32xf32>
    %89 = vector.extract_strided_slice %77 {offsets = [144, 0], sizes = [24, 32], strides = [1, 1]} : vector<192x32xf32> to vector<24x32xf32>
    %90 = arith.addf %88, %89 : vector<24x32xf32>
    %91 = vector.extract_strided_slice %77 {offsets = [168, 0], sizes = [24, 32], strides = [1, 1]} : vector<192x32xf32> to vector<24x32xf32>
    %92 = arith.addf %90, %91 : vector<24x32xf32>
    %93 = tpu.concatenate %57, %92 in 0 : vector<24x32xf32>, vector<24x32xf32> -> vector<48x32xf32>
    %cst_30 = arith.constant dense<0.000000e+00> : vector<48x32xf32>
    %94 = tpu.matmul %93, %4, %cst_30 {dimension_numbers = #tpu.dot_dimension_numbers<[1], [0], [0], [1], [0, 0, 1, 1], [], []>} : vector<48x32xf32>, vector<32x32xf32>, vector<48x32xf32> -> vector<48x32xf32>
    %95 = vector.broadcast %8 : vector<1x32xf32> to vector<48x32xf32>
    %96 = arith.addf %94, %95 : vector<48x32xf32>
    %97 = arith.addf %0, %96 : vector<48x32xf32>
    %cst_31 = arith.constant dense<0.000000e+00> : vector<48xf32>
    %98 = vector.multi_reduction <add>, %97, %cst_31 [1] : vector<48x32xf32> to vector<48xf32>
    %99 = vector.shape_cast %98 : vector<48xf32> to vector<48x1xf32>
    %cst_32 = arith.constant 3.200000e+01 : f32
    %100 = vector.broadcast %cst_32 : f32 to vector<48x1xf32>
    %101 = arith.divf %99, %100 : vector<48x1xf32>
    %102 = vector.broadcast %101 : vector<48x1xf32> to vector<48x32xf32>
    %103 = arith.subf %97, %102 : vector<48x32xf32>
    %104 = arith.mulf %103, %103 : vector<48x32xf32>
    %cst_33 = arith.constant dense<0.000000e+00> : vector<48xf32>
    %105 = vector.multi_reduction <add>, %104, %cst_33 [1] : vector<48x32xf32> to vector<48xf32>
    %106 = vector.shape_cast %105 : vector<48xf32> to vector<48x1xf32>
    %cst_34 = arith.constant 3.200000e+01 : f32
    %107 = vector.broadcast %cst_34 : f32 to vector<48x1xf32>
    %108 = arith.divf %106, %107 : vector<48x1xf32>
    %cst_35 = arith.constant 9.99999974E-6 : f32
    %109 = vector.broadcast %cst_35 : f32 to vector<48x1xf32>
    %110 = arith.addf %108, %109 : vector<48x1xf32>
    %111 = math.rsqrt %110 : vector<48x1xf32>
    %112 = vector.broadcast %111 : vector<48x1xf32> to vector<48x32xf32>
    %113 = arith.mulf %103, %112 : vector<48x32xf32>
    %114 = vector.broadcast %11 : vector<1x32xf32> to vector<48x32xf32>
    %115 = arith.mulf %113, %114 : vector<48x32xf32>
    %116 = vector.broadcast %12 : vector<1x32xf32> to vector<48x32xf32>
    %117 = arith.addf %115, %116 : vector<48x32xf32>
    %cst_36 = arith.constant dense<0.000000e+00> : vector<48x128xf32>
    %118 = tpu.matmul %117, %5, %cst_36 {dimension_numbers = #tpu.dot_dimension_numbers<[1], [0], [0], [1], [0, 0, 1, 1], [], []>} : vector<48x32xf32>, vector<32x128xf32>, vector<48x128xf32> -> vector<48x128xf32>
    %119 = vector.broadcast %9 : vector<1x128xf32> to vector<48x128xf32>
    %120 = arith.addf %118, %119 : vector<48x128xf32>
    %cst_37 = arith.constant 0.000000e+00 : f32
    %121 = vector.broadcast %cst_37 : f32 to vector<48x128xf32>
    %122 = arith.maximumf %120, %121 : vector<48x128xf32>
    %cst_38 = arith.constant dense<0.000000e+00> : vector<48x32xf32>
    %123 = tpu.matmul %122, %6, %cst_38 {dimension_numbers = #tpu.dot_dimension_numbers<[1], [0], [0], [1], [0, 0, 1, 1], [], []>} : vector<48x128xf32>, vector<128x32xf32>, vector<48x32xf32> -> vector<48x32xf32>
    %124 = vector.broadcast %10 : vector<1x32xf32> to vector<48x32xf32>
    %125 = arith.addf %123, %124 : vector<48x32xf32>
    %126 = arith.addf %117, %125 : vector<48x32xf32>
    %cst_39 = arith.constant dense<0.000000e+00> : vector<48xf32>
    %127 = vector.multi_reduction <add>, %126, %cst_39 [1] : vector<48x32xf32> to vector<48xf32>
    %128 = vector.shape_cast %127 : vector<48xf32> to vector<48x1xf32>
    %cst_40 = arith.constant 3.200000e+01 : f32
    %129 = vector.broadcast %cst_40 : f32 to vector<48x1xf32>
    %130 = arith.divf %128, %129 : vector<48x1xf32>
    %131 = vector.broadcast %130 : vector<48x1xf32> to vector<48x32xf32>
    %132 = arith.subf %126, %131 : vector<48x32xf32>
    %133 = arith.mulf %132, %132 : vector<48x32xf32>
    %cst_41 = arith.constant dense<0.000000e+00> : vector<48xf32>
    %134 = vector.multi_reduction <add>, %133, %cst_41 [1] : vector<48x32xf32> to vector<48xf32>
    %135 = vector.shape_cast %134 : vector<48xf32> to vector<48x1xf32>
    %cst_42 = arith.constant 3.200000e+01 : f32
    %136 = vector.broadcast %cst_42 : f32 to vector<48x1xf32>
    %137 = arith.divf %135, %136 : vector<48x1xf32>
    %cst_43 = arith.constant 9.99999974E-6 : f32
    %138 = vector.broadcast %cst_43 : f32 to vector<48x1xf32>
    %139 = arith.addf %137, %138 : vector<48x1xf32>
    %140 = math.rsqrt %139 : vector<48x1xf32>
    %141 = vector.broadcast %140 : vector<48x1xf32> to vector<48x32xf32>
    %142 = arith.mulf %132, %141 : vector<48x32xf32>
    %143 = vector.broadcast %13 : vector<1x32xf32> to vector<48x32xf32>
    %144 = arith.mulf %142, %143 : vector<48x32xf32>
    %145 = vector.broadcast %14 : vector<1x32xf32> to vector<48x32xf32>
    %146 = arith.addf %144, %145 : vector<48x32xf32>
    %c32 = arith.constant 32 : index
    %c0_44 = arith.constant 0 : index
    %147 = vector.load %arg2[%c32, %c0_44] : memref<64x96xf32, #tpu.memory_space<vmem>>, vector<32x96xf32>
    %c32_45 = arith.constant 32 : index
    %c0_46 = arith.constant 0 : index
    %148 = vector.load %arg3[%c32_45, %c0_46] : memref<64x32xf32, #tpu.memory_space<vmem>>, vector<32x32xf32>
    %c32_47 = arith.constant 32 : index
    %c0_48 = arith.constant 0 : index
    %149 = vector.load %arg4[%c32_47, %c0_48] : memref<64x128xf32, #tpu.memory_space<vmem>>, vector<32x128xf32>
    %c128 = arith.constant 128 : index
    %c0_49 = arith.constant 0 : index
    %150 = vector.load %arg5[%c128, %c0_49] : memref<256x32xf32, #tpu.memory_space<vmem>>, vector<128x32xf32>
    %c8 = arith.constant 8 : index
    %c0_50 = arith.constant 0 : index
    %151 = vector.load %arg6[%c8, %c0_50] : memref<24x128xf32, #tpu.memory_space<vmem>>, vector<1x96xf32>
    %c9 = arith.constant 9 : index
    %c0_51 = arith.constant 0 : index
    %152 = vector.load %arg6[%c9, %c0_51] : memref<24x128xf32, #tpu.memory_space<vmem>>, vector<1x32xf32>
    %c10 = arith.constant 10 : index
    %c0_52 = arith.constant 0 : index
    %153 = vector.load %arg6[%c10, %c0_52] : memref<24x128xf32, #tpu.memory_space<vmem>>, vector<1x128xf32>
    %c11 = arith.constant 11 : index
    %c0_53 = arith.constant 0 : index
    %154 = vector.load %arg6[%c11, %c0_53] : memref<24x128xf32, #tpu.memory_space<vmem>>, vector<1x32xf32>
    %c12 = arith.constant 12 : index
    %c0_54 = arith.constant 0 : index
    %155 = vector.load %arg6[%c12, %c0_54] : memref<24x128xf32, #tpu.memory_space<vmem>>, vector<1x32xf32>
    %c13 = arith.constant 13 : index
    %c0_55 = arith.constant 0 : index
    %156 = vector.load %arg6[%c13, %c0_55] : memref<24x128xf32, #tpu.memory_space<vmem>>, vector<1x32xf32>
    %c14 = arith.constant 14 : index
    %c0_56 = arith.constant 0 : index
    %157 = vector.load %arg6[%c14, %c0_56] : memref<24x128xf32, #tpu.memory_space<vmem>>, vector<1x32xf32>
    %c15 = arith.constant 15 : index
    %c0_57 = arith.constant 0 : index
    %158 = vector.load %arg6[%c15, %c0_57] : memref<24x128xf32, #tpu.memory_space<vmem>>, vector<1x32xf32>
    %cst_58 = arith.constant dense<0.000000e+00> : vector<48x96xf32>
    %159 = tpu.matmul %146, %147, %cst_58 {dimension_numbers = #tpu.dot_dimension_numbers<[1], [0], [0], [1], [0, 0, 1, 1], [], []>} : vector<48x32xf32>, vector<32x96xf32>, vector<48x96xf32> -> vector<48x96xf32>
    %160 = vector.broadcast %151 : vector<1x96xf32> to vector<48x96xf32>
    %161 = arith.addf %159, %160 : vector<48x96xf32>
    %162 = vector.extract_strided_slice %161 {offsets = [0, 0], sizes = [48, 32], strides = [1, 1]} : vector<48x96xf32> to vector<48x32xf32>
    %cst_59 = arith.constant 5.000000e-01 : f32
    %163 = vector.broadcast %cst_59 : f32 to vector<48x32xf32>
    %164 = arith.mulf %162, %163 : vector<48x32xf32>
    %165 = vector.extract_strided_slice %161 {offsets = [0, 32], sizes = [48, 32], strides = [1, 1]} : vector<48x96xf32> to vector<48x32xf32>
    %166 = vector.extract_strided_slice %161 {offsets = [0, 64], sizes = [48, 32], strides = [1, 1]} : vector<48x96xf32> to vector<48x32xf32>
    %167 = vector.extract_strided_slice %164 {offsets = [0, 0], sizes = [24, 32], strides = [1, 1]} : vector<48x32xf32> to vector<24x32xf32>
    %168 = vector.extract_strided_slice %165 {offsets = [0, 0], sizes = [24, 32], strides = [1, 1]} : vector<48x32xf32> to vector<24x32xf32>
    %169 = vector.extract_strided_slice %166 {offsets = [0, 0], sizes = [24, 32], strides = [1, 1]} : vector<48x32xf32> to vector<24x32xf32>
    %170 = tpu.concatenate %167, %167, %167, %167, %167, %167, %167, %167 in 0 : vector<24x32xf32>, vector<24x32xf32>, vector<24x32xf32>, vector<24x32xf32>, vector<24x32xf32>, vector<24x32xf32>, vector<24x32xf32>, vector<24x32xf32> -> vector<192x32xf32>
    %171 = arith.mulf %170, %1 : vector<192x32xf32>
    %cst_60 = arith.constant dense<0.000000e+00> : vector<192x24xf32>
    %172 = tpu.matmul %171, %168, %cst_60 {dimension_numbers = #tpu.dot_dimension_numbers<[1], [1], [0], [0], [0, 0, 1, 0], [], []>} : vector<192x32xf32>, vector<24x32xf32>, vector<192x24xf32> -> vector<192x24xf32>
    %173 = vector.broadcast %2 : vector<1x24xf32> to vector<192x24xf32>
    %174 = arith.addf %172, %173 : vector<192x24xf32>
    %cst_61 = arith.constant dense<0xFF800000> : vector<192xf32>
    %175 = vector.multi_reduction <maximumf>, %174, %cst_61 [1] : vector<192x24xf32> to vector<192xf32>
    %176 = vector.shape_cast %175 : vector<192xf32> to vector<192x1xf32>
    %177 = vector.broadcast %176 : vector<192x1xf32> to vector<192x24xf32>
    %178 = arith.subf %174, %177 : vector<192x24xf32>
    %179 = math.exp %178 : vector<192x24xf32>
    %cst_62 = arith.constant dense<0.000000e+00> : vector<192xf32>
    %180 = vector.multi_reduction <add>, %179, %cst_62 [1] : vector<192x24xf32> to vector<192xf32>
    %181 = vector.shape_cast %180 : vector<192xf32> to vector<192x1xf32>
    %182 = tpu.reciprocal %181 {approx = true} : vector<192x1xf32> -> vector<192x1xf32>
    %183 = vector.broadcast %182 : vector<192x1xf32> to vector<192x24xf32>
    %184 = arith.mulf %179, %183 : vector<192x24xf32>
    %cst_63 = arith.constant dense<0.000000e+00> : vector<192x32xf32>
    %185 = tpu.matmul %184, %169, %cst_63 {dimension_numbers = #tpu.dot_dimension_numbers<[1], [0], [0], [1], [0, 0, 1, 1], [], []>} : vector<192x24xf32>, vector<24x32xf32>, vector<192x32xf32> -> vector<192x32xf32>
    %186 = arith.mulf %185, %1 : vector<192x32xf32>
    %187 = vector.extract_strided_slice %186 {offsets = [0, 0], sizes = [24, 32], strides = [1, 1]} : vector<192x32xf32> to vector<24x32xf32>
    %188 = vector.extract_strided_slice %186 {offsets = [24, 0], sizes = [24, 32], strides = [1, 1]} : vector<192x32xf32> to vector<24x32xf32>
    %189 = arith.addf %187, %188 : vector<24x32xf32>
    %190 = vector.extract_strided_slice %186 {offsets = [48, 0], sizes = [24, 32], strides = [1, 1]} : vector<192x32xf32> to vector<24x32xf32>
    %191 = arith.addf %189, %190 : vector<24x32xf32>
    %192 = vector.extract_strided_slice %186 {offsets = [72, 0], sizes = [24, 32], strides = [1, 1]} : vector<192x32xf32> to vector<24x32xf32>
    %193 = arith.addf %191, %192 : vector<24x32xf32>
    %194 = vector.extract_strided_slice %186 {offsets = [96, 0], sizes = [24, 32], strides = [1, 1]} : vector<192x32xf32> to vector<24x32xf32>
    %195 = arith.addf %193, %194 : vector<24x32xf32>
    %196 = vector.extract_strided_slice %186 {offsets = [120, 0], sizes = [24, 32], strides = [1, 1]} : vector<192x32xf32> to vector<24x32xf32>
    %197 = arith.addf %195, %196 : vector<24x32xf32>
    %198 = vector.extract_strided_slice %186 {offsets = [144, 0], sizes = [24, 32], strides = [1, 1]} : vector<192x32xf32> to vector<24x32xf32>
    %199 = arith.addf %197, %198 : vector<24x32xf32>
    %200 = vector.extract_strided_slice %186 {offsets = [168, 0], sizes = [24, 32], strides = [1, 1]} : vector<192x32xf32> to vector<24x32xf32>
    %201 = arith.addf %199, %200 : vector<24x32xf32>
    %202 = vector.extract_strided_slice %164 {offsets = [24, 0], sizes = [24, 32], strides = [1, 1]} : vector<48x32xf32> to vector<24x32xf32>
    %203 = vector.extract_strided_slice %165 {offsets = [24, 0], sizes = [24, 32], strides = [1, 1]} : vector<48x32xf32> to vector<24x32xf32>
    %204 = vector.extract_strided_slice %166 {offsets = [24, 0], sizes = [24, 32], strides = [1, 1]} : vector<48x32xf32> to vector<24x32xf32>
    %205 = tpu.concatenate %202, %202, %202, %202, %202, %202, %202, %202 in 0 : vector<24x32xf32>, vector<24x32xf32>, vector<24x32xf32>, vector<24x32xf32>, vector<24x32xf32>, vector<24x32xf32>, vector<24x32xf32>, vector<24x32xf32> -> vector<192x32xf32>
    %206 = arith.mulf %205, %1 : vector<192x32xf32>
    %cst_64 = arith.constant dense<0.000000e+00> : vector<192x24xf32>
    %207 = tpu.matmul %206, %203, %cst_64 {dimension_numbers = #tpu.dot_dimension_numbers<[1], [1], [0], [0], [0, 0, 1, 0], [], []>} : vector<192x32xf32>, vector<24x32xf32>, vector<192x24xf32> -> vector<192x24xf32>
    %208 = vector.broadcast %2 : vector<1x24xf32> to vector<192x24xf32>
    %209 = arith.addf %207, %208 : vector<192x24xf32>
    %cst_65 = arith.constant dense<0xFF800000> : vector<192xf32>
    %210 = vector.multi_reduction <maximumf>, %209, %cst_65 [1] : vector<192x24xf32> to vector<192xf32>
    %211 = vector.shape_cast %210 : vector<192xf32> to vector<192x1xf32>
    %212 = vector.broadcast %211 : vector<192x1xf32> to vector<192x24xf32>
    %213 = arith.subf %209, %212 : vector<192x24xf32>
    %214 = math.exp %213 : vector<192x24xf32>
    %cst_66 = arith.constant dense<0.000000e+00> : vector<192xf32>
    %215 = vector.multi_reduction <add>, %214, %cst_66 [1] : vector<192x24xf32> to vector<192xf32>
    %216 = vector.shape_cast %215 : vector<192xf32> to vector<192x1xf32>
    %217 = tpu.reciprocal %216 {approx = true} : vector<192x1xf32> -> vector<192x1xf32>
    %218 = vector.broadcast %217 : vector<192x1xf32> to vector<192x24xf32>
    %219 = arith.mulf %214, %218 : vector<192x24xf32>
    %cst_67 = arith.constant dense<0.000000e+00> : vector<192x32xf32>
    %220 = tpu.matmul %219, %204, %cst_67 {dimension_numbers = #tpu.dot_dimension_numbers<[1], [0], [0], [1], [0, 0, 1, 1], [], []>} : vector<192x24xf32>, vector<24x32xf32>, vector<192x32xf32> -> vector<192x32xf32>
    %221 = arith.mulf %220, %1 : vector<192x32xf32>
    %222 = vector.extract_strided_slice %221 {offsets = [0, 0], sizes = [24, 32], strides = [1, 1]} : vector<192x32xf32> to vector<24x32xf32>
    %223 = vector.extract_strided_slice %221 {offsets = [24, 0], sizes = [24, 32], strides = [1, 1]} : vector<192x32xf32> to vector<24x32xf32>
    %224 = arith.addf %222, %223 : vector<24x32xf32>
    %225 = vector.extract_strided_slice %221 {offsets = [48, 0], sizes = [24, 32], strides = [1, 1]} : vector<192x32xf32> to vector<24x32xf32>
    %226 = arith.addf %224, %225 : vector<24x32xf32>
    %227 = vector.extract_strided_slice %221 {offsets = [72, 0], sizes = [24, 32], strides = [1, 1]} : vector<192x32xf32> to vector<24x32xf32>
    %228 = arith.addf %226, %227 : vector<24x32xf32>
    %229 = vector.extract_strided_slice %221 {offsets = [96, 0], sizes = [24, 32], strides = [1, 1]} : vector<192x32xf32> to vector<24x32xf32>
    %230 = arith.addf %228, %229 : vector<24x32xf32>
    %231 = vector.extract_strided_slice %221 {offsets = [120, 0], sizes = [24, 32], strides = [1, 1]} : vector<192x32xf32> to vector<24x32xf32>
    %232 = arith.addf %230, %231 : vector<24x32xf32>
    %233 = vector.extract_strided_slice %221 {offsets = [144, 0], sizes = [24, 32], strides = [1, 1]} : vector<192x32xf32> to vector<24x32xf32>
    %234 = arith.addf %232, %233 : vector<24x32xf32>
    %235 = vector.extract_strided_slice %221 {offsets = [168, 0], sizes = [24, 32], strides = [1, 1]} : vector<192x32xf32> to vector<24x32xf32>
    %236 = arith.addf %234, %235 : vector<24x32xf32>
    %237 = tpu.concatenate %201, %236 in 0 : vector<24x32xf32>, vector<24x32xf32> -> vector<48x32xf32>
    %cst_68 = arith.constant dense<0.000000e+00> : vector<48x32xf32>
    %238 = tpu.matmul %237, %148, %cst_68 {dimension_numbers = #tpu.dot_dimension_numbers<[1], [0], [0], [1], [0, 0, 1, 1], [], []>} : vector<48x32xf32>, vector<32x32xf32>, vector<48x32xf32> -> vector<48x32xf32>
    %239 = vector.broadcast %152 : vector<1x32xf32> to vector<48x32xf32>
    %240 = arith.addf %238, %239 : vector<48x32xf32>
    %241 = arith.addf %146, %240 : vector<48x32xf32>
    %cst_69 = arith.constant dense<0.000000e+00> : vector<48xf32>
    %242 = vector.multi_reduction <add>, %241, %cst_69 [1] : vector<48x32xf32> to vector<48xf32>
    %243 = vector.shape_cast %242 : vector<48xf32> to vector<48x1xf32>
    %cst_70 = arith.constant 3.200000e+01 : f32
    %244 = vector.broadcast %cst_70 : f32 to vector<48x1xf32>
    %245 = arith.divf %243, %244 : vector<48x1xf32>
    %246 = vector.broadcast %245 : vector<48x1xf32> to vector<48x32xf32>
    %247 = arith.subf %241, %246 : vector<48x32xf32>
    %248 = arith.mulf %247, %247 : vector<48x32xf32>
    %cst_71 = arith.constant dense<0.000000e+00> : vector<48xf32>
    %249 = vector.multi_reduction <add>, %248, %cst_71 [1] : vector<48x32xf32> to vector<48xf32>
    %250 = vector.shape_cast %249 : vector<48xf32> to vector<48x1xf32>
    %cst_72 = arith.constant 3.200000e+01 : f32
    %251 = vector.broadcast %cst_72 : f32 to vector<48x1xf32>
    %252 = arith.divf %250, %251 : vector<48x1xf32>
    %cst_73 = arith.constant 9.99999974E-6 : f32
    %253 = vector.broadcast %cst_73 : f32 to vector<48x1xf32>
    %254 = arith.addf %252, %253 : vector<48x1xf32>
    %255 = math.rsqrt %254 : vector<48x1xf32>
    %256 = vector.broadcast %255 : vector<48x1xf32> to vector<48x32xf32>
    %257 = arith.mulf %247, %256 : vector<48x32xf32>
    %258 = vector.broadcast %155 : vector<1x32xf32> to vector<48x32xf32>
    %259 = arith.mulf %257, %258 : vector<48x32xf32>
    %260 = vector.broadcast %156 : vector<1x32xf32> to vector<48x32xf32>
    %261 = arith.addf %259, %260 : vector<48x32xf32>
    %cst_74 = arith.constant dense<0.000000e+00> : vector<48x128xf32>
    %262 = tpu.matmul %261, %149, %cst_74 {dimension_numbers = #tpu.dot_dimension_numbers<[1], [0], [0], [1], [0, 0, 1, 1], [], []>} : vector<48x32xf32>, vector<32x128xf32>, vector<48x128xf32> -> vector<48x128xf32>
    %263 = vector.broadcast %153 : vector<1x128xf32> to vector<48x128xf32>
    %264 = arith.addf %262, %263 : vector<48x128xf32>
    %cst_75 = arith.constant 0.000000e+00 : f32
    %265 = vector.broadcast %cst_75 : f32 to vector<48x128xf32>
    %266 = arith.maximumf %264, %265 : vector<48x128xf32>
    %cst_76 = arith.constant dense<0.000000e+00> : vector<48x32xf32>
    %267 = tpu.matmul %266, %150, %cst_76 {dimension_numbers = #tpu.dot_dimension_numbers<[1], [0], [0], [1], [0, 0, 1, 1], [], []>} : vector<48x128xf32>, vector<128x32xf32>, vector<48x32xf32> -> vector<48x32xf32>
    %268 = vector.broadcast %154 : vector<1x32xf32> to vector<48x32xf32>
    %269 = arith.addf %267, %268 : vector<48x32xf32>
    %270 = arith.addf %261, %269 : vector<48x32xf32>
    %cst_77 = arith.constant dense<0.000000e+00> : vector<48xf32>
    %271 = vector.multi_reduction <add>, %270, %cst_77 [1] : vector<48x32xf32> to vector<48xf32>
    %272 = vector.shape_cast %271 : vector<48xf32> to vector<48x1xf32>
    %cst_78 = arith.constant 3.200000e+01 : f32
    %273 = vector.broadcast %cst_78 : f32 to vector<48x1xf32>
    %274 = arith.divf %272, %273 : vector<48x1xf32>
    %275 = vector.broadcast %274 : vector<48x1xf32> to vector<48x32xf32>
    %276 = arith.subf %270, %275 : vector<48x32xf32>
    %277 = arith.mulf %276, %276 : vector<48x32xf32>
    %cst_79 = arith.constant dense<0.000000e+00> : vector<48xf32>
    %278 = vector.multi_reduction <add>, %277, %cst_79 [1] : vector<48x32xf32> to vector<48xf32>
    %279 = vector.shape_cast %278 : vector<48xf32> to vector<48x1xf32>
    %cst_80 = arith.constant 3.200000e+01 : f32
    %280 = vector.broadcast %cst_80 : f32 to vector<48x1xf32>
    %281 = arith.divf %279, %280 : vector<48x1xf32>
    %cst_81 = arith.constant 9.99999974E-6 : f32
    %282 = vector.broadcast %cst_81 : f32 to vector<48x1xf32>
    %283 = arith.addf %281, %282 : vector<48x1xf32>
    %284 = math.rsqrt %283 : vector<48x1xf32>
    %285 = vector.broadcast %284 : vector<48x1xf32> to vector<48x32xf32>
    %286 = arith.mulf %276, %285 : vector<48x32xf32>
    %287 = vector.broadcast %157 : vector<1x32xf32> to vector<48x32xf32>
    %288 = arith.mulf %286, %287 : vector<48x32xf32>
    %289 = vector.broadcast %158 : vector<1x32xf32> to vector<48x32xf32>
    %290 = arith.addf %288, %289 : vector<48x32xf32>
    %291 = vector.extract_strided_slice %290 {offsets = [0, 0], sizes = [1, 32], strides = [1, 1]} : vector<48x32xf32> to vector<1x32xf32>
    %292 = vector.extract_strided_slice %290 {offsets = [24, 0], sizes = [1, 32], strides = [1, 1]} : vector<48x32xf32> to vector<1x32xf32>
    %293 = tpu.concatenate %291, %292 in 0 : vector<1x32xf32>, vector<1x32xf32> -> vector<2x32xf32>
    %c16 = arith.constant 16 : index
    %c0_82 = arith.constant 0 : index
    %294 = vector.load %arg6[%c16, %c0_82] : memref<24x128xf32, #tpu.memory_space<vmem>>, vector<1x32xf32>
    %c17 = arith.constant 17 : index
    %c0_83 = arith.constant 0 : index
    %295 = vector.load %arg6[%c17, %c0_83] : memref<24x128xf32, #tpu.memory_space<vmem>>, vector<1x32xf32>
    %cst_84 = arith.constant dense<0.000000e+00> : vector<2xf32>
    %296 = vector.multi_reduction <add>, %293, %cst_84 [1] : vector<2x32xf32> to vector<2xf32>
    %297 = vector.shape_cast %296 : vector<2xf32> to vector<2x1xf32>
    %cst_85 = arith.constant 3.200000e+01 : f32
    %298 = vector.broadcast %cst_85 : f32 to vector<2x1xf32>
    %299 = arith.divf %297, %298 : vector<2x1xf32>
    %300 = vector.broadcast %299 : vector<2x1xf32> to vector<2x32xf32>
    %301 = arith.subf %293, %300 : vector<2x32xf32>
    %302 = arith.mulf %301, %301 : vector<2x32xf32>
    %cst_86 = arith.constant dense<0.000000e+00> : vector<2xf32>
    %303 = vector.multi_reduction <add>, %302, %cst_86 [1] : vector<2x32xf32> to vector<2xf32>
    %304 = vector.shape_cast %303 : vector<2xf32> to vector<2x1xf32>
    %cst_87 = arith.constant 3.200000e+01 : f32
    %305 = vector.broadcast %cst_87 : f32 to vector<2x1xf32>
    %306 = arith.divf %304, %305 : vector<2x1xf32>
    %cst_88 = arith.constant 9.99999974E-6 : f32
    %307 = vector.broadcast %cst_88 : f32 to vector<2x1xf32>
    %308 = arith.addf %306, %307 : vector<2x1xf32>
    %309 = math.rsqrt %308 : vector<2x1xf32>
    %310 = vector.broadcast %309 : vector<2x1xf32> to vector<2x32xf32>
    %311 = arith.mulf %301, %310 : vector<2x32xf32>
    %312 = vector.broadcast %294 : vector<1x32xf32> to vector<2x32xf32>
    %313 = arith.mulf %311, %312 : vector<2x32xf32>
    %314 = vector.broadcast %295 : vector<1x32xf32> to vector<2x32xf32>
    %315 = arith.addf %313, %314 : vector<2x32xf32>
    %c0_89 = arith.constant 0 : index
    %c0_90 = arith.constant 0 : index
    %316 = vector.load %arg8[%c0_89, %c0_90] : memref<32x128xf32, #tpu.memory_space<vmem>>, vector<32x128xf32>
    %cst_91 = arith.constant dense<0.000000e+00> : vector<2x128xf32>
    %317 = tpu.matmul %315, %316, %cst_91 {dimension_numbers = #tpu.dot_dimension_numbers<[1], [0], [0], [1], [0, 0, 1, 1], [], []>} : vector<2x32xf32>, vector<32x128xf32>, vector<2x128xf32> -> vector<2x128xf32>
    %c18 = arith.constant 18 : index
    %c0_92 = arith.constant 0 : index
    %318 = vector.load %arg6[%c18, %c0_92] : memref<24x128xf32, #tpu.memory_space<vmem>>, vector<1x128xf32>
    %319 = vector.broadcast %318 : vector<1x128xf32> to vector<2x128xf32>
    %320 = arith.addf %317, %319 : vector<2x128xf32>
    %c0_93 = arith.constant 0 : index
    %c0_94 = arith.constant 0 : index
    %321 = vector.load %arg9[%c0_93, %c0_94] : memref<2x128xf32, #tpu.memory_space<vmem>>, vector<2x128xf32>
    tpu.vector_store %arg9[%c0_93, %c0_94], %320 {strides = array<i32>} : memref<2x128xf32, #tpu.memory_space<vmem>>, vector<2x128xf32>,
    return
  }
  func.func @transform_0(%arg0: i32) -> (i32, i32) {
    %c0_i32 = arith.constant 0 : i32
    %c0_i32_0 = arith.constant 0 : i32
    %c0_i32_1 = arith.constant 0 : i32
    return %c0_i32, %c0_i32_0 : i32, i32
  }
  func.func @transform_1(%arg0: i32) -> (i32, i32) {
    %c0_i32 = arith.constant 0 : i32
    %c0_i32_0 = arith.constant 0 : i32
    %c0_i32_1 = arith.constant 0 : i32
    return %c0_i32, %c0_i32_0 : i32, i32
  }
  func.func @transform_2(%arg0: i32) -> (i32, i32) {
    %c0_i32 = arith.constant 0 : i32
    %c0_i32_0 = arith.constant 0 : i32
    %c0_i32_1 = arith.constant 0 : i32
    return %c0_i32, %c0_i32_0 : i32, i32
  }
  func.func @transform_3(%arg0: i32) -> (i32, i32) {
    %c0_i32 = arith.constant 0 : i32
    %c0_i32_0 = arith.constant 0 : i32
    %c0_i32_1 = arith.constant 0 : i32
    return %c0_i32, %c0_i32_0 : i32, i32
  }
  func.func @transform_4(%arg0: i32) -> (i32, i32) {
    %c0_i32 = arith.constant 0 : i32
    %c0_i32_0 = arith.constant 0 : i32
    %c0_i32_1 = arith.constant 0 : i32
    return %c0_i32, %c0_i32_0 : i32, i32
  }
  func.func @transform_5(%arg0: i32) -> (i32, i32) {
    %c0_i32 = arith.constant 0 : i32
    %c0_i32_0 = arith.constant 0 : i32
    %c0_i32_1 = arith.constant 0 : i32
    return %c0_i32, %c0_i32_0 : i32, i32
  }
  func.func @transform_6(%arg0: i32) -> (i32, i32) {
    %c0_i32 = arith.constant 0 : i32
    %c0_i32_0 = arith.constant 0 : i32
    %c0_i32_1 = arith.constant 0 : i32
    return %c0_i32, %c0_i32_0 : i32, i32
  }
  func.func @transform_7(%arg0: i32) -> (i32, i32) {
    %c0_i32 = arith.constant 0 : i32
    %c0_i32_0 = arith.constant 0 : i32
    %c0_i32_1 = arith.constant 0 : i32
    return %c0_i32, %c0_i32_0 : i32, i32
  }
  func.func @transform_8(%arg0: i32) -> (i32, i32) {
    %c0_i32 = arith.constant 0 : i32
    %c0_i32_0 = arith.constant 0 : i32
    %c0_i32_1 = arith.constant 0 : i32
    return %c0_i32, %c0_i32_0 : i32, i32
  }
}

</mosaic_0001>

<llo_original>
// kernel: tpu_custom_call.1
$region0: #{tpu_custom_call.1}
  #allocation0 [shape = 'u32[]', space=smem, size = 0x4, offset = 0x4, fixed_abs, tag = 'smem constant byte address 0x4 - core index']
  #allocation1 [shape = 'u32[144,128]{1,0:T(1,128)}', space=vmem, size = 0x12000, scoped, tag = 'internal scratch']
  %s0 = inlined_call_operand.vmem [shape: f32[48,32], index: 0, kind: input, shape index: {}]
  %s1 = inlined_call_operand.vmem [shape: f32[64,96], index: 1, kind: input, shape index: {}]
  %s2 = inlined_call_operand.vmem [shape: f32[64,32], index: 2, kind: input, shape index: {}]
  %s3 = inlined_call_operand.vmem [shape: f32[64,128], index: 3, kind: input, shape index: {}]
  %s4 = inlined_call_operand.vmem [shape: f32[256,32], index: 4, kind: input, shape index: {}]
  %s5 = inlined_call_operand.vmem [shape: f32[24,128], index: 5, kind: input, shape index: {}]
  %s6 = inlined_call_operand.vmem [shape: f32[192,32], index: 6, kind: input, shape index: {}]
  %s7 = inlined_call_operand.vmem [shape: f32[32,128], index: 7, kind: input, shape index: {}]
  %s8 = inlined_call_operand.hbm [shape: f32[2,128], index: 8, kind: output, shape index: {}]
  %s9 = sld [smem:[#allocation0]]
  $region42: #{tpu_custom_call.1} parent=0
    _
  %s11 = ssub.s32 1, %s9
  %s12 = scalar_select 0, %s11, %s9
  $region1: #{tpu_custom_call.1} parent=0
    #allocation2 [shape = 'u8[1024]{0}', space=vmem, size = 0x400, scoped, tag = 'output window, operand 0, single buffered']
    #allocation3 [shape = 's32[1]{0}', space=sflag, size = 0x4, scoped, tag = 'scoped memory for tpu_custom_call.1']
    %13 = vsyncpa [#allocation3], 0
    // Predicated region
    $region2: #{tpu_custom_call.1} parent=1 // pred_check
      _
    $region3: #{tpu_custom_call.1} parent=1 // pred_check_branch
      %15 = sbr.rel (0) target = $region5
    $region4: #{tpu_custom_call.1} parent=1 // pred_region
      _
    $region5: #{tpu_custom_call.1} parent=1 // pred_fallthru
      _
    // Predicated region
    $region6: #{tpu_custom_call.1} parent=1 // pred_check
      _
    $region7: #{tpu_custom_call.1} parent=1 // pred_check_branch
      %17 = sbr.rel (0) target = $region9
    $region8: #{tpu_custom_call.1} parent=1 // pred_region
      _
    $region9: #{tpu_custom_call.1} parent=1 // pred_fallthru
      _
    // Predicated region
    $region10: #{tpu_custom_call.1} parent=1 // pred_check
      _
    $region11: #{tpu_custom_call.1} parent=1 // pred_check_branch
      %19 = sbr.rel (0) target = $region13
    $region12: #{tpu_custom_call.1} parent=1 // pred_region
      _
    $region13: #{tpu_custom_call.1} parent=1 // pred_fallthru
      _
    // Predicated region
    $region14: #{tpu_custom_call.1} parent=1 // pred_check
      _
    $region15: #{tpu_custom_call.1} parent=1 // pred_check_branch
      %21 = sbr.rel (0) target = $region17
    $region16: #{tpu_custom_call.1} parent=1 // pred_region
      _
    $region17: #{tpu_custom_call.1} parent=1 // pred_fallthru
      _
    // Predicated region
    $region18: #{tpu_custom_call.1} parent=1 // pred_check
      _
    $region19: #{tpu_custom_call.1} parent=1 // pred_check_branch
      %23 = sbr.rel (0) target = $region21
    $region20: #{tpu_custom_call.1} parent=1 // pred_region
      _
    $region21: #{tpu_custom_call.1} parent=1 // pred_fallthru
      _
    // Predicated region
    $region22: #{tpu_custom_call.1} parent=1 // pred_check
      _
    $region23: #{tpu_custom_call.1} parent=1 // pred_check_branch
      %25 = sbr.rel (0) target = $region25
    $region24: #{tpu_custom_call.1} parent=1 // pred_region
      _
    $region25: #{tpu_custom_call.1} parent=1 // pred_fallthru
      _
    // Predicated region
    $region26: #{tpu_custom_call.1} parent=1 // pred_check
      _
    $region27: #{tpu_custom_call.1} parent=1 // pred_check_branch
      %27 = sbr.rel (0) target = $region29
    $region28: #{tpu_custom_call.1} parent=1 // pred_region
      _
    $region29: #{tpu_custom_call.1} parent=1 // pred_fallthru
      _
    // Predicated region
    $region30: #{tpu_custom_call.1} parent=1 // pred_check
      _
    $region31: #{tpu_custom_call.1} parent=1 // pred_check_branch
      %29 = sbr.rel (0) target = $region33
    $region32: #{tpu_custom_call.1} parent=1 // pred_region
      _
    $region33: #{tpu_custom_call.1} parent=1 // pred_fallthru
      _
    %v30 = vld [vmem:[%s0] sm:$0xff]
    %v31 = vld [vmem:[%s0 + $0x8] sm:$0xff]
    %v32 = vld [vmem:[%s0 + $0x10] sm:$0xff]
    %v33 = vld [vmem:[%s0 + $0x18] sm:$0xff]
    %v34 = vld [vmem:[%s0 + $0x20] sm:$0xff]
    %v35 = vld [vmem:[%s0 + $0x28] sm:$0xff]
    %v36 = vld [vmem:[%s6] sm:$0xff]
    %v37 = vld [vmem:[%s6 + $0x8] sm:$0xff]
    %v38 = vld [vmem:[%s6 + $0x10] sm:$0xff]
    %v39 = vld [vmem:[%s6 + $0x18] sm:$0xff]
    %v40 = vld [vmem:[%s6 + $0x20] sm:$0xff]
    %v41 = vld [vmem:[%s6 + $0x28] sm:$0xff]
    %v42 = vld [vmem:[%s6 + $0x30] sm:$0xff]
    %v43 = vld [vmem:[%s6 + $0x38] sm:$0xff]
    %v44 = vld [vmem:[%s6 + $0x40] sm:$0xff]
    %v45 = vld [vmem:[%s6 + $0x48] sm:$0xff]
    %v46 = vld [vmem:[%s6 + $0x50] sm:$0xff]
    %v47 = vld [vmem:[%s6 + $0x58] sm:$0xff]
    %v48 = vld [vmem:[%s6 + $0x60] sm:$0xff]
    %v49 = vld [vmem:[%s6 + $0x68] sm:$0xff]
    %v50 = vld [vmem:[%s6 + $0x70] sm:$0xff]
    %v51 = vld [vmem:[%s6 + $0x78] sm:$0xff]
    %v52 = vld [vmem:[%s6 + $0x80] sm:$0xff]
    %v53 = vld [vmem:[%s6 + $0x88] sm:$0xff]
    %v54 = vld [vmem:[%s6 + $0x90] sm:$0xff]
    %v55 = vld [vmem:[%s6 + $0x98] sm:$0xff]
    %v56 = vld [vmem:[%s6 + $0xa0] sm:$0xff]
    %v57 = vld [vmem:[%s6 + $0xa8] sm:$0xff]
    %v58 = vld [vmem:[%s6 + $0xb0] sm:$0xff]
    %v59 = vld [vmem:[%s6 + $0xb8] sm:$0xff]
    %v60 = vld [vmem:[%s5 + $0x13] sm:$0x1]
    %v61 = vld [vmem:[%s1] sm:$0xff]
    %v62 = vld [vmem:[%s1 + $0x8] sm:$0xff]
    %v63 = vld [vmem:[%s1 + $0x10] sm:$0xff]
    %v64 = vld [vmem:[%s1 + $0x18] sm:$0xff]
    %v65 = vld [vmem:[%s2] sm:$0xff]
    %v66 = vld [vmem:[%s2 + $0x8] sm:$0xff]
    %v67 = vld [vmem:[%s2 + $0x10] sm:$0xff]
    %v68 = vld [vmem:[%s2 + $0x18] sm:$0xff]
    %v69 = vld [vmem:[%s3] sm:$0xff]
    %v70 = vld [vmem:[%s3 + $0x8] sm:$0xff]
    %v71 = vld [vmem:[%s3 + $0x10] sm:$0xff]
    %v72 = vld [vmem:[%s3 + $0x18] sm:$0xff]
    %v73 = vld [vmem:[%s4] sm:$0xff]
    %v74 = vld [vmem:[%s4 + $0x8] sm:$0xff]
    %v75 = vld [vmem:[%s4 + $0x10] sm:$0xff]
    %v76 = vld [vmem:[%s4 + $0x18] sm:$0xff]
    %v77 = vld [vmem:[%s4 + $0x20] sm:$0xff]
    %v78 = vld [vmem:[%s4 + $0x28] sm:$0xff]
    %v79 = vld [vmem:[%s4 + $0x30] sm:$0xff]
    %v80 = vld [vmem:[%s4 + $0x38] sm:$0xff]
    %v81 = vld [vmem:[%s4 + $0x40] sm:$0xff]
    %v82 = vld [vmem:[%s4 + $0x48] sm:$0xff]
    %v83 = vld [vmem:[%s4 + $0x50] sm:$0xff]
    %v84 = vld [vmem:[%s4 + $0x58] sm:$0xff]
    %v85 = vld [vmem:[%s4 + $0x60] sm:$0xff]
    %v86 = vld [vmem:[%s4 + $0x68] sm:$0xff]
    %v87 = vld [vmem:[%s4 + $0x70] sm:$0xff]
    %v88 = vld [vmem:[%s4 + $0x78] sm:$0xff]
    %v89 = vld [vmem:[%s5] sm:$0x1]
    %v90 = vld [vmem:[%s5 + $0x1] sm:$0x1]
    %v91 = vld [vmem:[%s5 + $0x2] sm:$0x1]
    %v92 = vld [vmem:[%s5 + $0x3] sm:$0x1]
    %v93 = vld [vmem:[%s5 + $0x4] sm:$0x1]
    %v94 = vld [vmem:[%s5 + $0x5] sm:$0x1]
    %v95 = vld [vmem:[%s5 + $0x6] sm:$0x1]
    %v96 = vld [vmem:[%s5 + $0x7] sm:$0x1]
    %v97 = vlaneseq
    %v98 = vshrl.u32 %v97, 7
    %v99 = vsub.s32 0, %v98
    %v100 = vrot.slane %v89, %v99
    %vm101 = vcmask 261120
    %v103 = vsel %vm101, %v30, 0
    %v106 = vsel %vm101, %v31, 0
    %v109 = vsel %vm101, %v32, 0
    %v112 = vsel %vm101, %v33, 0
    %v115 = vsel %vm101, %v34, 0
    %v118 = vsel %vm101, %v35, 0
    %120 = vmatprep.subr.mxu0 0.0
    %121 = vmatpush1.msra.mxu0 %v61
    %122 = vmatprep.subr.mxu0 0.0
    %123 = vmatpush1.msra.mxu0 %v62
    %124 = vmatprep.subr.mxu0 0.0
    %125 = vmatpush1.msra.mxu0 %v63
    %126 = vmatprep.subr.mxu0 0.0
    %127 = vmatpush1.msra.mxu0 %v64
    %128 = vmatprep.subr.mxu0 0.0
    %129 = vmatpush1.msra.mxu0 0.0
    %130 = vmatprep.subr.mxu0 0.0
    %131 = vmatpush1.msra.mxu0 0.0
    %132 = vmatprep.subr.mxu0 0.0
    %133 = vmatpush1.msra.mxu0 0.0
    %134 = vmatprep.subr.mxu0 0.0
    %135 = vmatpush1.msra.mxu0 0.0
    %136 = vmatprep.subr.mxu0 0.0
    %137 = vmatpush1.msra.mxu0 0.0
    %138 = vmatprep.subr.mxu0 0.0
    %139 = vmatpush1.msra.mxu0 0.0
    %140 = vmatprep.subr.mxu0 0.0
    %141 = vmatpush1.msra.mxu0 0.0
    %142 = vmatprep.subr.mxu0 0.0
    %143 = vmatpush1.msra.mxu0 0.0
    %144 = vmatprep.subr.mxu0 0.0
    %145 = vmatpush1.msra.mxu0 0.0
    %146 = vmatprep.subr.mxu0 0.0
    %147 = vmatpush1.msra.mxu0 0.0
    %148 = vmatprep.subr.mxu0 0.0
    %149 = vmatpush1.msra.mxu0 0.0
    %150 = vmatprep.subr.mxu0 0.0
    %151 = vmatpush1.msra.mxu0 0.0
    %152 = vmatprep.subr.mxu0 0.0
    %153 = vmatpush1.msra.mxu0 0.0
    %154 = vmatprep.subr.mxu0 0.0
    %155 = vmatpush1.msra.mxu0 0.0
    %156 = vmatprep.subr.mxu0 0.0
    %157 = vmatpush1.msra.mxu0 0.0
    %158 = vmatprep.subr.mxu0 0.0
    %159 = vmatpush1.msra.mxu0 0.0
    %160 = vmatprep.subr.mxu0 0.0
    %161 = vmatpush1.msra.mxu0 0.0
    %162 = vmatprep.subr.mxu0 0.0
    %163 = vmatpush1.msra.mxu0 0.0
    %164 = vmatprep.subr.mxu0 0.0
    %165 = vmatpush1.msra.mxu0 0.0
    %166 = vmatprep.subr.mxu0 0.0
    %167 = vmatpush1.msra.mxu0 0.0
    %168 = vmatprep.subr.mxu0 0.0
    %169 = vmatpush1.msra.mxu0 0.0
    %170 = vmatprep.subr.mxu0 0.0
    %171 = vmatpush1.msra.mxu0 0.0
    %172 = vmatprep.subr.mxu0 0.0
    %173 = vmatpush1.msra.mxu0 0.0
    %174 = vmatprep.subr.mxu0 0.0
    %175 = vmatpush1.msra.mxu0 0.0
    %176 = vmatprep.subr.mxu0 0.0
    %177 = vmatpush1.msra.mxu0 0.0
    %178 = vmatprep.subr.mxu0 0.0
    %179 = vmatpush1.msra.mxu0 0.0
    %180 = vmatprep.subr.mxu0 0.0
    %181 = vmatpush1.msra.mxu0 0.0
    %182 = vmatprep.subr.mxu0 0.0
    %183 = vmatpush1.msra.mxu0 0.0
    %184 = vmatprep.mubr.f32.mxu0 0.0
    %185 = vmatmul.mubr.f32.gmra.mrb[0].mxu0 %v103
    %v186 = vpop.f32.mrb[0].mxu0
    %v187 = vadd.f32 %v100, %v186
    %v188 = vpop.f32.mrb[0].mxu0
    %189 = vmatprep.mubr.f32.mxu0 0.0
    %190 = vmatmul.mubr.f32.gmra.mrb[0].mxu0 %v106
    %v191 = vpop.f32.mrb[0].mxu0
    %v192 = vadd.f32 %v100, %v191
    %v193 = vpop.f32.mrb[0].mxu0
    %194 = vmatprep.mubr.f32.mxu0 0.0
    %195 = vmatmul.mubr.f32.gmra.mrb[0].mxu0 %v109
    %v196 = vpop.f32.mrb[0].mxu0
    %v197 = vadd.f32 %v100, %v196
    %v198 = vpop.f32.mrb[0].mxu0
    %199 = vmatprep.mubr.f32.mxu0 0.0
    %200 = vmatmul.mubr.f32.gmra.mrb[0].mxu0 %v112
    %v201 = vpop.f32.mrb[0].mxu0
    %v202 = vadd.f32 %v100, %v201
    %v203 = vpop.f32.mrb[0].mxu0
    %204 = vmatprep.mubr.f32.mxu0 0.0
    %205 = vmatmul.mubr.f32.gmra.mrb[0].mxu0 %v115
    %v206 = vpop.f32.mrb[0].mxu0
    %v207 = vadd.f32 %v100, %v206
    %v208 = vpop.f32.mrb[0].mxu0
    %209 = vmatprep.mubr.f32.mxu0 0.0
    %210 = vmatmul.mubr.f32.gmra.mrb[0].mxu0 %v118
    %v211 = vpop.f32.mrb[0].mxu0
    %v212 = vadd.f32 %v100, %v211
    %v213 = vpop.f32.mrb[0].mxu0
    %214 = vdwg.mxu0
    %v215 = vmul.f32 %v187, 0.5
    %v216 = vmul.f32 %v192, 0.5
    %v217 = vmul.f32 %v197, 0.5
    %v218 = vmul.f32 %v202, 0.5
    %v219 = vmul.f32 %v207, 0.5
    %v220 = vmul.f32 %v212, 0.5
    %v221 = vmul.f32 %v215, %v36
    %v222 = vmul.f32 %v216, %v37
    %v223 = vmul.f32 %v217, %v38
    %v224 = vmul.f32 %v215, %v39
    %v225 = vmul.f32 %v216, %v40
    %v226 = vmul.f32 %v217, %v41
    %v227 = vmul.f32 %v215, %v42
    %v228 = vmul.f32 %v216, %v43
    %v229 = vmul.f32 %v217, %v44
    %v230 = vmul.f32 %v215, %v45
    %v231 = vmul.f32 %v216, %v46
    %v232 = vmul.f32 %v217, %v47
    %v233 = vmul.f32 %v215, %v48
    %v234 = vmul.f32 %v216, %v49
    %v235 = vmul.f32 %v217, %v50
    %v236 = vmul.f32 %v215, %v51
    %v237 = vmul.f32 %v216, %v52
    %v238 = vmul.f32 %v217, %v53
    %v239 = vmul.f32 %v215, %v54
    %v240 = vmul.f32 %v216, %v55
    %v241 = vmul.f32 %v217, %v56
    %v242 = vmul.f32 %v215, %v57
    %v243 = vmul.f32 %v216, %v58
    %v244 = vmul.f32 %v217, %v59
    %v245 = vlaneseq
    %v246 = vshrl.u32 %v245, 7
    %v247 = vsub.s32 0, %v246
    %v248 = vrot.slane %v60, %v247
    %252 = vrot.lane.b32.xlu0 %v187, 96
    %v253 = vpop.permute.xlu0 %252
    %254 = vrot.lane.b32.xlu0 %v192, 96
    %v255 = vpop.permute.xlu0 %254
    %256 = vrot.lane.b32.xlu0 %v197, 96
    %v257 = vpop.permute.xlu0 %256
    %v259 = vsel %vm101, %v221, 0
    %v262 = vsel %vm101, %v222, 0
    %v265 = vsel %vm101, %v223, 0
    %v268 = vsel %vm101, %v224, 0
    %v271 = vsel %vm101, %v225, 0
    %v274 = vsel %vm101, %v226, 0
    %v277 = vsel %vm101, %v227, 0
    %v280 = vsel %vm101, %v228, 0
    %v283 = vsel %vm101, %v229, 0
    %v286 = vsel %vm101, %v230, 0
    %v289 = vsel %vm101, %v231, 0
    %v292 = vsel %vm101, %v232, 0
    %v295 = vsel %vm101, %v233, 0
    %v298 = vsel %vm101, %v234, 0
    %v301 = vsel %vm101, %v235, 0
    %v304 = vsel %vm101, %v236, 0
    %v307 = vsel %vm101, %v237, 0
    %v310 = vsel %vm101, %v238, 0
    %v313 = vsel %vm101, %v239, 0
    %v316 = vsel %vm101, %v240, 0
    %v319 = vsel %vm101, %v241, 0
    %v322 = vsel %vm101, %v242, 0
    %v325 = vsel %vm101, %v243, 0
    %v328 = vsel %vm101, %v244, 0
    %v330 = vsel %vm101, %v253, 0
    %v332 = vsel %vm101, %v255, 0
    %v334 = vsel %vm101, %v257, 0
    %336 = vmatprep.subr.mxu0 0.0
    %337 = vmatpush1.xpose.msra.mxu0 %v330
    %338 = vmatprep.subr.mxu0 0.0
    %339 = vmatpush1.xpose.msra.mxu0 %v332
    %340 = vmatprep.subr.mxu0 0.0
    %341 = vmatpush1.xpose.msra.mxu0 %v334
    %342 = vmatprep.subr.mxu0 0.0
    %343 = vmatpush1.xpose.msra.mxu0 0.0
    %344 = vmatprep.subr.mxu0 0.0
    %345 = vmatpush1.xpose.msra.mxu0 0.0
    %346 = vmatprep.subr.mxu0 0.0
    %347 = vmatpush1.xpose.msra.mxu0 0.0
    %348 = vmatprep.subr.mxu0 0.0
    %349 = vmatpush1.xpose.msra.mxu0 0.0
    %350 = vmatprep.subr.mxu0 0.0
    %351 = vmatpush1.xpose.msra.mxu0 0.0
    %352 = vmatprep.subr.mxu0 0.0
    %353 = vmatpush1.xpose.msra.mxu0 0.0
    %354 = vmatprep.subr.mxu0 0.0
    %355 = vmatpush1.xpose.msra.mxu0 0.0
    %356 = vmatprep.subr.mxu0 0.0
    %357 = vmatpush1.xpose.msra.mxu0 0.0
    %358 = vmatprep.subr.mxu0 0.0
    %359 = vmatpush1.xpose.msra.mxu0 0.0
    %360 = vmatprep.subr.mxu0 0.0
    %361 = vmatpush1.xpose.msra.mxu0 0.0
    %362 = vmatprep.subr.mxu0 0.0
    %363 = vmatpush1.xpose.msra.mxu0 0.0
    %364 = vmatprep.subr.mxu0 0.0
    %365 = vmatpush1.xpose.msra.mxu0 0.0
    %366 = vmatprep.subr.mxu0 0.0
    %367 = vmatpush1.xpose.msra.mxu0 0.0
    %368 = vmatprep.subr.mxu0 0.0
    %369 = vmatpush1.xpose.msra.mxu0 0.0
    %370 = vmatprep.subr.mxu0 0.0
    %371 = vmatpush1.xpose.msra.mxu0 0.0
    %372 = vmatprep.subr.mxu0 0.0
    %373 = vmatpush1.xpose.msra.mxu0 0.0
    %374 = vmatprep.subr.mxu0 0.0
    %375 = vmatpush1.xpose.msra.mxu0 0.0
    %376 = vmatprep.subr.mxu0 0.0
    %377 = vmatpush1.xpose.msra.mxu0 0.0
    %378 = vmatprep.subr.mxu0 0.0
    %379 = vmatpush1.xpose.msra.mxu0 0.0
    %380 = vmatprep.subr.mxu0 0.0
    %381 = vmatpush1.xpose.msra.mxu0 0.0
    %382 = vmatprep.subr.mxu0 0.0
    %383 = vmatpush1.xpose.msra.mxu0 0.0
    %384 = vmatprep.subr.mxu0 0.0
    %385 = vmatpush1.xpose.msra.mxu0 0.0
    %386 = vmatprep.subr.mxu0 0.0
    %387 = vmatpush1.xpose.msra.mxu0 0.0
    %388 = vmatprep.subr.mxu0 0.0
    %389 = vmatpush1.xpose.msra.mxu0 0.0
    %390 = vmatprep.subr.mxu0 0.0
    %391 = vmatpush1.xpose.msra.mxu0 0.0
    %392 = vmatprep.subr.mxu0 0.0
    %393 = vmatpush1.xpose.msra.mxu0 0.0
    %394 = vmatprep.subr.mxu0 0.0
    %395 = vmatpush1.xpose.msra.mxu0 0.0
    %396 = vmatprep.subr.mxu0 0.0
    %397 = vmatpush1.xpose.msra.mxu0 0.0
    %398 = vmatprep.subr.mxu0 0.0
    %399 = vmatpush1.xpose.msra.mxu0 0.0
    %400 = vmatprep.mubr.f32.mxu0 0.0
    %401 = vmatmul.mubr.f32.gmra.mrb[0].mxu0 %v259
    %v402 = vpop.f32.mrb[0].mxu0
    %v403 = vadd.f32 %v248, %v402
    %v404 = vpop.f32.mrb[0].mxu0
    %405 = vmatprep.mubr.f32.mxu0 0.0
    %406 = vmatmul.mubr.f32.gmra.mrb[0].mxu0 %v262
    %v407 = vpop.f32.mrb[0].mxu0
    %v408 = vadd.f32 %v248, %v407
    %v409 = vpop.f32.mrb[0].mxu0
    %410 = vmatprep.mubr.f32.mxu0 0.0
    %411 = vmatmul.mubr.f32.gmra.mrb[0].mxu0 %v265
    %v412 = vpop.f32.mrb[0].mxu0
    %v413 = vadd.f32 %v248, %v412
    %v414 = vpop.f32.mrb[0].mxu0
    %415 = vmatprep.mubr.f32.mxu0 0.0
    %416 = vmatmul.mubr.f32.gmra.mrb[0].mxu0 %v268
    %v417 = vpop.f32.mrb[0].mxu0
    %v418 = vadd.f32 %v248, %v417
    %v419 = vpop.f32.mrb[0].mxu0
    %420 = vmatprep.mubr.f32.mxu0 0.0
    %421 = vmatmul.mubr.f32.gmra.mrb[0].mxu0 %v271
    %v422 = vpop.f32.mrb[0].mxu0
    %v423 = vadd.f32 %v248, %v422
    %v424 = vpop.f32.mrb[0].mxu0
    %425 = vmatprep.mubr.f32.mxu0 0.0
    %426 = vmatmul.mubr.f32.gmra.mrb[0].mxu0 %v274
    %v427 = vpop.f32.mrb[0].mxu0
    %v428 = vadd.f32 %v248, %v427
    %v429 = vpop.f32.mrb[0].mxu0
    %430 = vmatprep.mubr.f32.mxu0 0.0
    %431 = vmatmul.mubr.f32.gmra.mrb[0].mxu0 %v277
    %v432 = vpop.f32.mrb[0].mxu0
    %v433 = vadd.f32 %v248, %v432
    %v434 = vpop.f32.mrb[0].mxu0
    %435 = vmatprep.mubr.f32.mxu0 0.0
    %436 = vmatmul.mubr.f32.gmra.mrb[0].mxu0 %v280
    %v437 = vpop.f32.mrb[0].mxu0
    %v438 = vadd.f32 %v248, %v437
    %v439 = vpop.f32.mrb[0].mxu0
    %440 = vmatprep.mubr.f32.mxu0 0.0
    %441 = vmatmul.mubr.f32.gmra.mrb[0].mxu0 %v283
    %v442 = vpop.f32.mrb[0].mxu0
    %v443 = vadd.f32 %v248, %v442
    %v444 = vpop.f32.mrb[0].mxu0
    %445 = vmatprep.mubr.f32.mxu0 0.0
    %446 = vmatmul.mubr.f32.gmra.mrb[0].mxu0 %v286
    %v447 = vpop.f32.mrb[0].mxu0
    %v448 = vadd.f32 %v248, %v447
    %v449 = vpop.f32.mrb[0].mxu0
    %450 = vmatprep.mubr.f32.mxu0 0.0
    %451 = vmatmul.mubr.f32.gmra.mrb[0].mxu0 %v289
    %v452 = vpop.f32.mrb[0].mxu0
    %v453 = vadd.f32 %v248, %v452
    %v454 = vpop.f32.mrb[0].mxu0
    %455 = vmatprep.mubr.f32.mxu0 0.0
    %456 = vmatmul.mubr.f32.gmra.mrb[0].mxu0 %v292
    %v457 = vpop.f32.mrb[0].mxu0
    %v458 = vadd.f32 %v248, %v457
    %v459 = vpop.f32.mrb[0].mxu0
    %460 = vmatprep.mubr.f32.mxu0 0.0
    %461 = vmatmul.mubr.f32.gmra.mrb[0].mxu0 %v295
    %v462 = vpop.f32.mrb[0].mxu0
    %v463 = vadd.f32 %v248, %v462
    %v464 = vpop.f32.mrb[0].mxu0
    %465 = vmatprep.mubr.f32.mxu0 0.0
    %466 = vmatmul.mubr.f32.gmra.mrb[0].mxu0 %v298
    %v467 = vpop.f32.mrb[0].mxu0
    %v468 = vadd.f32 %v248, %v467
    %v469 = vpop.f32.mrb[0].mxu0
    %470 = vmatprep.mubr.f32.mxu0 0.0
    %471 = vmatmul.mubr.f32.gmra.mrb[0].mxu0 %v301
    %v472 = vpop.f32.mrb[0].mxu0
    %v473 = vadd.f32 %v248, %v472
    %v474 = vpop.f32.mrb[0].mxu0
    %475 = vmatprep.mubr.f32.mxu0 0.0
    %476 = vmatmul.mubr.f32.gmra.mrb[0].mxu0 %v304
    %v477 = vpop.f32.mrb[0].mxu0
    %v478 = vadd.f32 %v248, %v477
    %v479 = vpop.f32.mrb[0].mxu0
    %480 = vmatprep.mubr.f32.mxu0 0.0
    %481 = vmatmul.mubr.f32.gmra.mrb[0].mxu0 %v307
    %v482 = vpop.f32.mrb[0].mxu0
    %v483 = vadd.f32 %v248, %v482
    %v484 = vpop.f32.mrb[0].mxu0
    %485 = vmatprep.mubr.f32.mxu0 0.0
    %486 = vmatmul.mubr.f32.gmra.mrb[0].mxu0 %v310
    %v487 = vpop.f32.mrb[0].mxu0
    %v488 = vadd.f32 %v248, %v487
    %v489 = vpop.f32.mrb[0].mxu0
    %490 = vmatprep.mubr.f32.mxu0 0.0
    %491 = vmatmul.mubr.f32.gmra.mrb[0].mxu0 %v313
    %v492 = vpop.f32.mrb[0].mxu0
    %v493 = vadd.f32 %v248, %v492
    %v494 = vpop.f32.mrb[0].mxu0
    %495 = vmatprep.mubr.f32.mxu0 0.0
    %496 = vmatmul.mubr.f32.gmra.mrb[0].mxu0 %v316
    %v497 = vpop.f32.mrb[0].mxu0
    %v498 = vadd.f32 %v248, %v497
    %v499 = vpop.f32.mrb[0].mxu0
    %500 = vmatprep.mubr.f32.mxu0 0.0
    %501 = vmatmul.mubr.f32.gmra.mrb[0].mxu0 %v319
    %v502 = vpop.f32.mrb[0].mxu0
    %v503 = vadd.f32 %v248, %v502
    %v504 = vpop.f32.mrb[0].mxu0
    %505 = vmatprep.mubr.f32.mxu0 0.0
    %506 = vmatmul.mubr.f32.gmra.mrb[0].mxu0 %v322
    %v507 = vpop.f32.mrb[0].mxu0
    %v508 = vadd.f32 %v248, %v507
    %v509 = vpop.f32.mrb[0].mxu0
    %510 = vmatprep.mubr.f32.mxu0 0.0
    %511 = vmatmul.mubr.f32.gmra.mrb[0].mxu0 %v325
    %v512 = vpop.f32.mrb[0].mxu0
    %v513 = vadd.f32 %v248, %v512
    %v514 = vpop.f32.mrb[0].mxu0
    %515 = vmatprep.mubr.f32.mxu0 0.0
    %516 = vmatmul.mubr.f32.gmra.mrb[0].mxu0 %v328
    %v517 = vpop.f32.mrb[0].mxu0
    %v518 = vadd.f32 %v248, %v517
    %v519 = vpop.f32.mrb[0].mxu0
    %520 = vdwg.mxu0
    %vm521 = vcmask 195584
    %v522 = vsel %vm521, %v403, -inf
    %523 = vmax.xlane.f32.xlu0 %v522
    %v524 = vpop.xlane.xlu0 %523
    %v525 = vsel %vm521, %v408, -inf
    %526 = vmax.xlane.f32.xlu0 %v525
    %v527 = vpop.xlane.xlu0 %526
    %v528 = vsel %vm521, %v413, -inf
    %529 = vmax.xlane.f32.xlu0 %v528
    %v530 = vpop.xlane.xlu0 %529
    %v531 = vsel %vm521, %v418, -inf
    %532 = vmax.xlane.f32.xlu0 %v531
    %v533 = vpop.xlane.xlu0 %532
    %v534 = vsel %vm521, %v423, -inf
    %535 = vmax.xlane.f32.xlu0 %v534
    %v536 = vpop.xlane.xlu0 %535
    %v537 = vsel %vm521, %v428, -inf
    %538 = vmax.xlane.f32.xlu0 %v537
    %v539 = vpop.xlane.xlu0 %538
    %v540 = vsel %vm521, %v433, -inf
    %541 = vmax.xlane.f32.xlu0 %v540
    %v542 = vpop.xlane.xlu0 %541
    %v543 = vsel %vm521, %v438, -inf
    %544 = vmax.xlane.f32.xlu0 %v543
    %v545 = vpop.xlane.xlu0 %544
    %v546 = vsel %vm521, %v443, -inf
    %547 = vmax.xlane.f32.xlu0 %v546
    %v548 = vpop.xlane.xlu0 %547
    %v549 = vsel %vm521, %v448, -inf
    %550 = vmax.xlane.f32.xlu0 %v549
    %v551 = vpop.xlane.xlu0 %550
    %v552 = vsel %vm521, %v453, -inf
    %553 = vmax.xlane.f32.xlu0 %v552
    %v554 = vpop.xlane.xlu0 %553
    %v555 = vsel %vm521, %v458, -inf
    %556 = vmax.xlane.f32.xlu0 %v555
    %v557 = vpop.xlane.xlu0 %556
    %v558 = vsel %vm521, %v463, -inf
    %559 = vmax.xlane.f32.xlu0 %v558
    %v560 = vpop.xlane.xlu0 %559
    %v561 = vsel %vm521, %v468, -inf
    %562 = vmax.xlane.f32.xlu0 %v561
    %v563 = vpop.xlane.xlu0 %562
    %v564 = vsel %vm521, %v473, -inf
    %565 = vmax.xlane.f32.xlu0 %v564
    %v566 = vpop.xlane.xlu0 %565
    %v567 = vsel %vm521, %v478, -inf
    %568 = vmax.xlane.f32.xlu0 %v567
    %v569 = vpop.xlane.xlu0 %568
    %v570 = vsel %vm521, %v483, -inf
    %571 = vmax.xlane.f32.xlu0 %v570
    %v572 = vpop.xlane.xlu0 %571
    %v573 = vsel %vm521, %v488, -inf
    %574 = vmax.xlane.f32.xlu0 %v573
    %v575 = vpop.xlane.xlu0 %574
    %v576 = vsel %vm521, %v493, -inf
    %577 = vmax.xlane.f32.xlu0 %v576
    %v578 = vpop.xlane.xlu0 %577
    %v579 = vsel %vm521, %v498, -inf
    %580 = vmax.xlane.f32.xlu0 %v579
    %v581 = vpop.xlane.xlu0 %580
    %v582 = vsel %vm521, %v503, -inf
    %583 = vmax.xlane.f32.xlu0 %v582
    %v584 = vpop.xlane.xlu0 %583
    %v585 = vsel %vm521, %v508, -inf
    %586 = vmax.xlane.f32.xlu0 %v585
    %v587 = vpop.xlane.xlu0 %586
    %v588 = vsel %vm521, %v513, -inf
    %589 = vmax.xlane.f32.xlu0 %v588
    %v590 = vpop.xlane.xlu0 %589
    %v591 = vsel %vm521, %v518, -inf
    %592 = vmax.xlane.f32.xlu0 %v591
    %v593 = vpop.xlane.xlu0 %592
    %v594 = vsub.f32 %v403, %v524
    %v595 = vsub.f32 %v408, %v527
    %v596 = vsub.f32 %v413, %v530
    %v597 = vsub.f32 %v418, %v533
    %v598 = vsub.f32 %v423, %v536
    %v599 = vsub.f32 %v428, %v539
    %v600 = vsub.f32 %v433, %v542
    %v601 = vsub.f32 %v438, %v545
    %v602 = vsub.f32 %v443, %v548
    %v603 = vsub.f32 %v448, %v551
    %v604 = vsub.f32 %v453, %v554
    %v605 = vsub.f32 %v458, %v557
    %v606 = vsub.f32 %v463, %v560
    %v607 = vsub.f32 %v468, %v563
    %v608 = vsub.f32 %v473, %v566
    %v609 = vsub.f32 %v478, %v569
    %v610 = vsub.f32 %v483, %v572
    %v611 = vsub.f32 %v488, %v575
    %v612 = vsub.f32 %v493, %v578
    %v613 = vsub.f32 %v498, %v581
    %v614 = vsub.f32 %v503, %v584
    %v615 = vsub.f32 %v508, %v587
    %v616 = vsub.f32 %v513, %v590
    %v617 = vsub.f32 %v518, %v593
    %v618 = vmul.f32 %v594, 1.442695
    %v619 = vpow.pop %v618
    %v620 = vmul.f32 %v595, 1.442695
    %v621 = vpow.pop %v620
    %v622 = vmul.f32 %v596, 1.442695
    %v623 = vpow.pop %v622
    %v624 = vmul.f32 %v597, 1.442695
    %v625 = vpow.pop %v624
    %v626 = vmul.f32 %v598, 1.442695
    %v627 = vpow.pop %v626
    %v628 = vmul.f32 %v599, 1.442695
    %v629 = vpow.pop %v628
    %v630 = vmul.f32 %v600, 1.442695
    %v631 = vpow.pop %v630
    %v632 = vmul.f32 %v601, 1.442695
    %v633 = vpow.pop %v632
    %v634 = vmul.f32 %v602, 1.442695
    %v635 = vpow.pop %v634
    %v636 = vmul.f32 %v603, 1.442695
    %v637 = vpow.pop %v636
    %v638 = vmul.f32 %v604, 1.442695
    %v639 = vpow.pop %v638
    %v640 = vmul.f32 %v605, 1.442695
    %v641 = vpow.pop %v640
    %v642 = vmul.f32 %v606, 1.442695
    %v643 = vpow.pop %v642
    %v644 = vmul.f32 %v607, 1.442695
    %v645 = vpow.pop %v644
    %v646 = vmul.f32 %v608, 1.442695
    %v647 = vpow.pop %v646
    %v648 = vmul.f32 %v609, 1.442695
    %v649 = vpow.pop %v648
    %v650 = vmul.f32 %v610, 1.442695
    %v651 = vpow.pop %v650
    %v652 = vmul.f32 %v611, 1.442695
    %v653 = vpow.pop %v652
    %v654 = vmul.f32 %v612, 1.442695
    %v655 = vpow.pop %v654
    %v656 = vmul.f32 %v613, 1.442695
    %v657 = vpow.pop %v656
    %v658 = vmul.f32 %v614, 1.442695
    %v659 = vpow.pop %v658
    %v660 = vmul.f32 %v615, 1.442695
    %v661 = vpow.pop %v660
    %v662 = vmul.f32 %v616, 1.442695
    %v663 = vpow.pop %v662
    %v664 = vmul.f32 %v617, 1.442695
    %v665 = vpow.pop %v664
    %v666 = vsel %vm521, %v619, 0.0
    %667 = vadd.xlane.f32.xlu0 %v666
    %v668 = vpop.xlane.xlu0 %667
    %v669 = vsel %vm521, %v621, 0.0
    %670 = vadd.xlane.f32.xlu0 %v669
    %v671 = vpop.xlane.xlu0 %670
    %v672 = vsel %vm521, %v623, 0.0
    %673 = vadd.xlane.f32.xlu0 %v672
    %v674 = vpop.xlane.xlu0 %673
    %v675 = vsel %vm521, %v625, 0.0
    %676 = vadd.xlane.f32.xlu0 %v675
    %v677 = vpop.xlane.xlu0 %676
    %v678 = vsel %vm521, %v627, 0.0
    %679 = vadd.xlane.f32.xlu0 %v678
    %v680 = vpop.xlane.xlu0 %679
    %v681 = vsel %vm521, %v629, 0.0
    %682 = vadd.xlane.f32.xlu0 %v681
    %v683 = vpop.xlane.xlu0 %682
    %v684 = vsel %vm521, %v631, 0.0
    %685 = vadd.xlane.f32.xlu0 %v684
    %v686 = vpop.xlane.xlu0 %685
    %v687 = vsel %vm521, %v633, 0.0
    %688 = vadd.xlane.f32.xlu0 %v687
    %v689 = vpop.xlane.xlu0 %688
    %v690 = vsel %vm521, %v635, 0.0
    %691 = vadd.xlane.f32.xlu0 %v690
    %v692 = vpop.xlane.xlu0 %691
    %v693 = vsel %vm521, %v637, 0.0
    %694 = vadd.xlane.f32.xlu0 %v693
    %v695 = vpop.xlane.xlu0 %694
    %v696 = vsel %vm521, %v639, 0.0
    %697 = vadd.xlane.f32.xlu0 %v696
    %v698 = vpop.xlane.xlu0 %697
    %v699 = vsel %vm521, %v641, 0.0
    %700 = vadd.xlane.f32.xlu0 %v699
    %v701 = vpop.xlane.xlu0 %700
    %v702 = vsel %vm521, %v643, 0.0
    %703 = vadd.xlane.f32.xlu0 %v702
    %v704 = vpop.xlane.xlu0 %703
    %v705 = vsel %vm521, %v645, 0.0
    %706 = vadd.xlane.f32.xlu0 %v705
    %v707 = vpop.xlane.xlu0 %706
    %v708 = vsel %vm521, %v647, 0.0
    %709 = vadd.xlane.f32.xlu0 %v708
    %v710 = vpop.xlane.xlu0 %709
    %v711 = vsel %vm521, %v649, 0.0
    %712 = vadd.xlane.f32.xlu0 %v711
    %v713 = vpop.xlane.xlu0 %712
    %v714 = vsel %vm521, %v651, 0.0
    %715 = vadd.xlane.f32.xlu0 %v714
    %v716 = vpop.xlane.xlu0 %715
    %v717 = vsel %vm521, %v653, 0.0
    %718 = vadd.xlane.f32.xlu0 %v717
    %v719 = vpop.xlane.xlu0 %718
    %v720 = vsel %vm521, %v655, 0.0
    %721 = vadd.xlane.f32.xlu0 %v720
    %v722 = vpop.xlane.xlu0 %721
    %v723 = vsel %vm521, %v657, 0.0
    %724 = vadd.xlane.f32.xlu0 %v723
    %v725 = vpop.xlane.xlu0 %724
    %v726 = vsel %vm521, %v659, 0.0
    %727 = vadd.xlane.f32.xlu0 %v726
    %v728 = vpop.xlane.xlu0 %727
    %v729 = vsel %vm521, %v661, 0.0
    %730 = vadd.xlane.f32.xlu0 %v729
    %v731 = vpop.xlane.xlu0 %730
    %v732 = vsel %vm521, %v663, 0.0
    %733 = vadd.xlane.f32.xlu0 %v732
    %v734 = vpop.xlane.xlu0 %733
    %v735 = vsel %vm521, %v665, 0.0
    %736 = vadd.xlane.f32.xlu0 %v735
    %v737 = vpop.xlane.xlu0 %736
    %v738 = vrcp.pop %v668
    %v739 = vrcp.pop %v671
    %v740 = vrcp.pop %v674
    %v741 = vrcp.pop %v677
    %v742 = vrcp.pop %v680
    %v743 = vrcp.pop %v683
    %v744 = vrcp.pop %v686
    %v745 = vrcp.pop %v689
    %v746 = vrcp.pop %v692
    %v747 = vrcp.pop %v695
    %v748 = vrcp.pop %v698
    %v749 = vrcp.pop %v701
    %v750 = vrcp.pop %v704
    %v751 = vrcp.pop %v707
    %v752 = vrcp.pop %v710
    %v753 = vrcp.pop %v713
    %v754 = vrcp.pop %v716
    %v755 = vrcp.pop %v719
    %v756 = vrcp.pop %v722
    %v757 = vrcp.pop %v725
    %v758 = vrcp.pop %v728
    %v759 = vrcp.pop %v731
    %v760 = vrcp.pop %v734
    %v761 = vrcp.pop %v737
    %v762 = vmul.f32 %v619, %v738
    %v763 = vmul.f32 %v621, %v739
    %v764 = vmul.f32 %v623, %v740
    %v765 = vmul.f32 %v625, %v741
    %v766 = vmul.f32 %v627, %v742
    %v767 = vmul.f32 %v629, %v743
    %v768 = vmul.f32 %v631, %v744
    %v769 = vmul.f32 %v633, %v745
    %v770 = vmul.f32 %v635, %v746
    %v771 = vmul.f32 %v637, %v747
    %v772 = vmul.f32 %v639, %v748
    %v773 = vmul.f32 %v641, %v749
    %v774 = vmul.f32 %v643, %v750
    %v775 = vmul.f32 %v645, %v751
    %v776 = vmul.f32 %v647, %v752
    %v777 = vmul.f32 %v649, %v753
    %v778 = vmul.f32 %v651, %v754
    %v779 = vmul.f32 %v653, %v755
    %v780 = vmul.f32 %v655, %v756
    %v781 = vmul.f32 %v657, %v757
    %v782 = vmul.f32 %v659, %v758
    %v783 = vmul.f32 %v661, %v759
    %v784 = vmul.f32 %v663, %v760
    %v785 = vmul.f32 %v665, %v761
    %786 = vrot.lane.b32.xlu0 %v187, 64
    %v787 = vpop.permute.xlu0 %786
    %788 = vrot.lane.b32.xlu0 %v192, 64
    %v789 = vpop.permute.xlu0 %788
    %790 = vrot.lane.b32.xlu0 %v197, 64
    %v791 = vpop.permute.xlu0 %790
    %v796 = vsel %vm521, %v762, 0
    %v799 = vsel %vm521, %v763, 0
    %v802 = vsel %vm521, %v764, 0
    %v805 = vsel %vm521, %v765, 0
    %v808 = vsel %vm521, %v766, 0
    %v811 = vsel %vm521, %v767, 0
    %v814 = vsel %vm521, %v768, 0
    %v817 = vsel %vm521, %v769, 0
    %v820 = vsel %vm521, %v770, 0
    %v823 = vsel %vm521, %v771, 0
    %v826 = vsel %vm521, %v772, 0
    %v829 = vsel %vm521, %v773, 0
    %v832 = vsel %vm521, %v774, 0
    %v835 = vsel %vm521, %v775, 0
    %v838 = vsel %vm521, %v776, 0
    %v841 = vsel %vm521, %v777, 0
    %v844 = vsel %vm521, %v778, 0
    %v847 = vsel %vm521, %v779, 0
    %v850 = vsel %vm521, %v780, 0
    %v853 = vsel %vm521, %v781, 0
    %v856 = vsel %vm521, %v782, 0
    %v859 = vsel %vm521, %v783, 0
    %v862 = vsel %vm521, %v784, 0
    %v865 = vsel %vm521, %v785, 0
    %867 = vmatprep.subr.mxu0 0.0
    %868 = vmatpush1.msra.mxu0 %v787
    %869 = vmatprep.subr.mxu0 0.0
    %870 = vmatpush1.msra.mxu0 %v789
    %871 = vmatprep.subr.mxu0 0.0
    %872 = vmatpush1.msra.mxu0 %v791
    %873 = vmatprep.subr.mxu0 0.0
    %874 = vmatpush1.msra.mxu0 0.0
    %875 = vmatprep.subr.mxu0 0.0
    %876 = vmatpush1.msra.mxu0 0.0
    %877 = vmatprep.subr.mxu0 0.0
    %878 = vmatpush1.msra.mxu0 0.0
    %879 = vmatprep.subr.mxu0 0.0
    %880 = vmatpush1.msra.mxu0 0.0
    %881 = vmatprep.subr.mxu0 0.0
    %882 = vmatpush1.msra.mxu0 0.0
    %883 = vmatprep.subr.mxu0 0.0
    %884 = vmatpush1.msra.mxu0 0.0
    %885 = vmatprep.subr.mxu0 0.0
    %886 = vmatpush1.msra.mxu0 0.0
    %887 = vmatprep.subr.mxu0 0.0
    %888 = vmatpush1.msra.mxu0 0.0
    %889 = vmatprep.subr.mxu0 0.0
    %890 = vmatpush1.msra.mxu0 0.0
    %891 = vmatprep.subr.mxu0 0.0
    %892 = vmatpush1.msra.mxu0 0.0
    %893 = vmatprep.subr.mxu0 0.0
    %894 = vmatpush1.msra.mxu0 0.0
    %895 = vmatprep.subr.mxu0 0.0
    %896 = vmatpush1.msra.mxu0 0.0
    %897 = vmatprep.subr.mxu0 0.0
    %898 = vmatpush1.msra.mxu0 0.0
    %899 = vmatprep.subr.mxu0 0.0
    %900 = vmatpush1.msra.mxu0 0.0
    %901 = vmatprep.subr.mxu0 0.0
    %902 = vmatpush1.msra.mxu0 0.0
    %903 = vmatprep.subr.mxu0 0.0
    %904 = vmatpush1.msra.mxu0 0.0
    %905 = vmatprep.subr.mxu0 0.0
    %906 = vmatpush1.msra.mxu0 0.0
    %907 = vmatprep.subr.mxu0 0.0
    %908 = vmatpush1.msra.mxu0 0.0
    %909 = vmatprep.subr.mxu0 0.0
    %910 = vmatpush1.msra.mxu0 0.0
    %911 = vmatprep.subr.mxu0 0.0
    %912 = vmatpush1.msra.mxu0 0.0
    %913 = vmatprep.subr.mxu0 0.0
    %914 = vmatpush1.msra.mxu0 0.0
    %915 = vmatprep.subr.mxu0 0.0
    %916 = vmatpush1.msra.mxu0 0.0
    %917 = vmatprep.subr.mxu0 0.0
    %918 = vmatpush1.msra.mxu0 0.0
    %919 = vmatprep.subr.mxu0 0.0
    %920 = vmatpush1.msra.mxu0 0.0
    %921 = vmatprep.subr.mxu0 0.0
    %922 = vmatpush1.msra.mxu0 0.0
    %923 = vmatprep.subr.mxu0 0.0
    %924 = vmatpush1.msra.mxu0 0.0
    %925 = vmatprep.subr.mxu0 0.0
    %926 = vmatpush1.msra.mxu0 0.0
    %927 = vmatprep.subr.mxu0 0.0
    %928 = vmatpush1.msra.mxu0 0.0
    %929 = vmatprep.subr.mxu0 0.0
    %930 = vmatpush1.msra.mxu0 0.0
    %931 = vmatprep.mubr.f32.mxu0 0.0
    %932 = vmatmul.mubr.f32.gmra.mrb[0].mxu0 %v796
    %v933 = vpop.f32.mrb[0].mxu0
    %v934 = vadd.f32 0.0, %v933
    %v935 = vpop.f32.mrb[0].mxu0
    %936 = vmatprep.mubr.f32.mxu0 0.0
    %937 = vmatmul.mubr.f32.gmra.mrb[0].mxu0 %v799
    %v938 = vpop.f32.mrb[0].mxu0
    %v939 = vadd.f32 0.0, %v938
    %v940 = vpop.f32.mrb[0].mxu0
    %941 = vmatprep.mubr.f32.mxu0 0.0
    %942 = vmatmul.mubr.f32.gmra.mrb[0].mxu0 %v802
    %v943 = vpop.f32.mrb[0].mxu0
    %v944 = vadd.f32 0.0, %v943
    %v945 = vpop.f32.mrb[0].mxu0
    %946 = vmatprep.mubr.f32.mxu0 0.0
    %947 = vmatmul.mubr.f32.gmra.mrb[0].mxu0 %v805
    %v948 = vpop.f32.mrb[0].mxu0
    %v949 = vadd.f32 0.0, %v948
    %v950 = vpop.f32.mrb[0].mxu0
    %951 = vmatprep.mubr.f32.mxu0 0.0
    %952 = vmatmul.mubr.f32.gmra.mrb[0].mxu0 %v808
    %v953 = vpop.f32.mrb[0].mxu0
    %v954 = vadd.f32 0.0, %v953
    %v955 = vpop.f32.mrb[0].mxu0
    %956 = vmatprep.mubr.f32.mxu0 0.0
    %957 = vmatmul.mubr.f32.gmra.mrb[0].mxu0 %v811
    %v958 = vpop.f32.mrb[0].mxu0
    %v959 = vadd.f32 0.0, %v958
    %v960 = vpop.f32.mrb[0].mxu0
    %961 = vmatprep.mubr.f32.mxu0 0.0
    %962 = vmatmul.mubr.f32.gmra.mrb[0].mxu0 %v814
    %v963 = vpop.f32.mrb[0].mxu0
    %v964 = vadd.f32 0.0, %v963
    %v965 = vpop.f32.mrb[0].mxu0
    %966 = vmatprep.mubr.f32.mxu0 0.0
    %967 = vmatmul.mubr.f32.gmra.mrb[0].mxu0 %v817
    %v968 = vpop.f32.mrb[0].mxu0
    %v969 = vadd.f32 0.0, %v968
    %v970 = vpop.f32.mrb[0].mxu0
    %971 = vmatprep.mubr.f32.mxu0 0.0
    %972 = vmatmul.mubr.f32.gmra.mrb[0].mxu0 %v820
    %v973 = vpop.f32.mrb[0].mxu0
    %v974 = vadd.f32 0.0, %v973
    %v975 = vpop.f32.mrb[0].mxu0
    %976 = vmatprep.mubr.f32.mxu0 0.0
    %977 = vmatmul.mubr.f32.gmra.mrb[0].mxu0 %v823
    %v978 = vpop.f32.mrb[0].mxu0
    %v979 = vadd.f32 0.0, %v978
    %v980 = vpop.f32.mrb[0].mxu0
    %981 = vmatprep.mubr.f32.mxu0 0.0
    %982 = vmatmul.mubr.f32.gmra.mrb[0].mxu0 %v826
    %v983 = vpop.f32.mrb[0].mxu0
    %v984 = vadd.f32 0.0, %v983
    %v985 = vpop.f32.mrb[0].mxu0
    %986 = vmatprep.mubr.f32.mxu0 0.0
    %987 = vmatmul.mubr.f32.gmra.mrb[0].mxu0 %v829
    %v988 = vpop.f32.mrb[0].mxu0
    %v989 = vadd.f32 0.0, %v988
    %v990 = vpop.f32.mrb[0].mxu0
    %991 = vmatprep.mubr.f32.mxu0 0.0
    %992 = vmatmul.mubr.f32.gmra.mrb[0].mxu0 %v832
    %v993 = vpop.f32.mrb[0].mxu0
    %v994 = vadd.f32 0.0, %v993
    %v995 = vpop.f32.mrb[0].mxu0
    %996 = vmatprep.mubr.f32.mxu0 0.0
    %997 = vmatmul.mubr.f32.gmra.mrb[0].mxu0 %v835
    %v998 = vpop.f32.mrb[0].mxu0
    %v999 = vadd.f32 0.0, %v998
    %v1000 = vpop.f32.mrb[0].mxu0
    %1001 = vmatprep.mubr.f32.mxu0 0.0
    %1002 = vmatmul.mubr.f32.gmra.mrb[0].mxu0 %v838
    %v1003 = vpop.f32.mrb[0].mxu0
    %v1004 = vadd.f32 0.0, %v1003
    %v1005 = vpop.f32.mrb[0].mxu0
    %1006 = vmatprep.mubr.f32.mxu0 0.0
    %1007 = vmatmul.mubr.f32.gmra.mrb[0].mxu0 %v841
    %v1008 = vpop.f32.mrb[0].mxu0
    %v1009 = vadd.f32 0.0, %v1008
    %v1010 = vpop.f32.mrb[0].mxu0
    %1011 = vmatprep.mubr.f32.mxu0 0.0
    %1012 = vmatmul.mubr.f32.gmra.mrb[0].mxu0 %v844
    %v1013 = vpop.f32.mrb[0].mxu0
    %v1014 = vadd.f32 0.0, %v1013
    %v1015 = vpop.f32.mrb[0].mxu0
    %1016 = vmatprep.mubr.f32.mxu0 0.0
    %1017 = vmatmul.mubr.f32.gmra.mrb[0].mxu0 %v847
    %v1018 = vpop.f32.mrb[0].mxu0
    %v1019 = vadd.f32 0.0, %v1018
    %v1020 = vpop.f32.mrb[0].mxu0
    %1021 = vmatprep.mubr.f32.mxu0 0.0
    %1022 = vmatmul.mubr.f32.gmra.mrb[0].mxu0 %v850
    %v1023 = vpop.f32.mrb[0].mxu0
    %v1024 = vadd.f32 0.0, %v1023
    %v1025 = vpop.f32.mrb[0].mxu0
    %1026 = vmatprep.mubr.f32.mxu0 0.0
    %1027 = vmatmul.mubr.f32.gmra.mrb[0].mxu0 %v853
    %v1028 = vpop.f32.mrb[0].mxu0
    %v1029 = vadd.f32 0.0, %v1028
    %v1030 = vpop.f32.mrb[0].mxu0
    %1031 = vmatprep.mubr.f32.mxu0 0.0
    %1032 = vmatmul.mubr.f32.gmra.mrb[0].mxu0 %v856
    %v1033 = vpop.f32.mrb[0].mxu0
    %v1034 = vadd.f32 0.0, %v1033
    %v1035 = vpop.f32.mrb[0].mxu0
    %1036 = vmatprep.mubr.f32.mxu0 0.0
    %1037 = vmatmul.mubr.f32.gmra.mrb[0].mxu0 %v859
    %v1038 = vpop.f32.mrb[0].mxu0
    %v1039 = vadd.f32 0.0, %v1038
    %v1040 = vpop.f32.mrb[0].mxu0
    %1041 = vmatprep.mubr.f32.mxu0 0.0
    %1042 = vmatmul.mubr.f32.gmra.mrb[0].mxu0 %v862
    %v1043 = vpop.f32.mrb[0].mxu0
    %v1044 = vadd.f32 0.0, %v1043
    %v1045 = vpop.f32.mrb[0].mxu0
    %1046 = vmatprep.mubr.f32.mxu0 0.0
    %1047 = vmatmul.mubr.f32.gmra.mrb[0].mxu0 %v865
    %v1048 = vpop.f32.mrb[0].mxu0
    %v1049 = vadd.f32 0.0, %v1048
    %v1050 = vpop.f32.mrb[0].mxu0
    %1051 = vdwg.mxu0
    %v1052 = vmul.f32 %v934, %v36
    %v1053 = vmul.f32 %v939, %v37
    %v1054 = vmul.f32 %v944, %v38
    %v1055 = vmul.f32 %v949, %v39
    %v1056 = vmul.f32 %v954, %v40
    %v1057 = vmul.f32 %v959, %v41
    %v1058 = vmul.f32 %v964, %v42
    %v1059 = vmul.f32 %v969, %v43
    %v1060 = vmul.f32 %v974, %v44
    %v1061 = vmul.f32 %v979, %v45
    %v1062 = vmul.f32 %v984, %v46
    %v1063 = vmul.f32 %v989, %v47
    %v1064 = vmul.f32 %v994, %v48
    %v1065 = vmul.f32 %v999, %v49
    %v1066 = vmul.f32 %v1004, %v50
    %v1067 = vmul.f32 %v1009, %v51
    %v1068 = vmul.f32 %v1014, %v52
    %v1069 = vmul.f32 %v1019, %v53
    %v1070 = vmul.f32 %v1024, %v54
    %v1071 = vmul.f32 %v1029, %v55
    %v1072 = vmul.f32 %v1034, %v56
    %v1073 = vmul.f32 %v1039, %v57
    %v1074 = vmul.f32 %v1044, %v58
    %v1075 = vmul.f32 %v1049, %v59
    %v1076 = vadd.f32 %v1052, %v1055
    %v1077 = vadd.f32 %v1053, %v1056
    %v1078 = vadd.f32 %v1054, %v1057
    %v1079 = vadd.f32 %v1076, %v1058
    %v1080 = vadd.f32 %v1077, %v1059
    %v1081 = vadd.f32 %v1078, %v1060
    %v1082 = vadd.f32 %v1079, %v1061
    %v1083 = vadd.f32 %v1080, %v1062
    %v1084 = vadd.f32 %v1081, %v1063
    %v1085 = vadd.f32 %v1082, %v1064
    %v1086 = vadd.f32 %v1083, %v1065
    %v1087 = vadd.f32 %v1084, %v1066
    %v1088 = vadd.f32 %v1085, %v1067
    %v1089 = vadd.f32 %v1086, %v1068
    %v1090 = vadd.f32 %v1087, %v1069
    %v1091 = vadd.f32 %v1088, %v1070
    %v1092 = vadd.f32 %v1089, %v1071
    %v1093 = vadd.f32 %v1090, %v1072
    %v1094 = vadd.f32 %v1091, %v1073
    %v1095 = vadd.f32 %v1092, %v1074
    %v1096 = vadd.f32 %v1093, %v1075
    %v1097 = vmul.f32 %v218, %v36
    %v1098 = vmul.f32 %v219, %v37
    %v1099 = vmul.f32 %v220, %v38
    %v1100 = vmul.f32 %v218, %v39
    %v1101 = vmul.f32 %v219, %v40
    %v1102 = vmul.f32 %v220, %v41
    %v1103 = vmul.f32 %v218, %v42
    %v1104 = vmul.f32 %v219, %v43
    %v1105 = vmul.f32 %v220, %v44
    %v1106 = vmul.f32 %v218, %v45
    %v1107 = vmul.f32 %v219, %v46
    %v1108 = vmul.f32 %v220, %v47
    %v1109 = vmul.f32 %v218, %v48
    %v1110 = vmul.f32 %v219, %v49
    %v1111 = vmul.f32 %v220, %v50
    %v1112 = vmul.f32 %v218, %v51
    %v1113 = vmul.f32 %v219, %v52
    %v1114 = vmul.f32 %v220, %v53
    %v1115 = vmul.f32 %v218, %v54
    %v1116 = vmul.f32 %v219, %v55
    %v1117 = vmul.f32 %v220, %v56
    %v1118 = vmul.f32 %v218, %v57
    %v1119 = vmul.f32 %v219, %v58
    %v1120 = vmul.f32 %v220, %v59
    %1124 = vrot.lane.b32.xlu0 %v202, 96
    %v1125 = vpop.permute.xlu0 %1124
    %1126 = vrot.lane.b32.xlu0 %v207, 96
    %v1127 = vpop.permute.xlu0 %1126
    %1128 = vrot.lane.b32.xlu0 %v212, 96
    %v1129 = vpop.permute.xlu0 %1128
    %v1131 = vsel %vm101, %v1097, 0
    %v1134 = vsel %vm101, %v1098, 0
    %v1137 = vsel %vm101, %v1099, 0
    %v1140 = vsel %vm101, %v1100, 0
    %v1143 = vsel %vm101, %v1101, 0
    %v1146 = vsel %vm101, %v1102, 0
    %v1149 = vsel %vm101, %v1103, 0
    %v1152 = vsel %vm101, %v1104, 0
    %v1155 = vsel %vm101, %v1105, 0
    %v1158 = vsel %vm101, %v1106, 0
    %v1161 = vsel %vm101, %v1107, 0
    %v1164 = vsel %vm101, %v1108, 0
    %v1167 = vsel %vm101, %v1109, 0
    %v1170 = vsel %vm101, %v1110, 0
    %v1173 = vsel %vm101, %v1111, 0
    %v1176 = vsel %vm101, %v1112, 0
    %v1179 = vsel %vm101, %v1113, 0
    %v1182 = vsel %vm101, %v1114, 0
    %v1185 = vsel %vm101, %v1115, 0
    %v1188 = vsel %vm101, %v1116, 0
    %v1191 = vsel %vm101, %v1117, 0
    %v1194 = vsel %vm101, %v1118, 0
    %v1197 = vsel %vm101, %v1119, 0
    %v1200 = vsel %vm101, %v1120, 0
    %v1202 = vsel %vm101, %v1125, 0
    %v1204 = vsel %vm101, %v1127, 0
    %v1206 = vsel %vm101, %v1129, 0
    %1208 = vmatprep.subr.mxu0 0.0
    %1209 = vmatpush1.xpose.msra.mxu0 %v1202
    %1210 = vmatprep.subr.mxu0 0.0
    %1211 = vmatpush1.xpose.msra.mxu0 %v1204
    %1212 = vmatprep.subr.mxu0 0.0
    %1213 = vmatpush1.xpose.msra.mxu0 %v1206
    %1214 = vmatprep.subr.mxu0 0.0
    %1215 = vmatpush1.xpose.msra.mxu0 0.0
    %1216 = vmatprep.subr.mxu0 0.0
    %1217 = vmatpush1.xpose.msra.mxu0 0.0
    %1218 = vmatprep.subr.mxu0 0.0
    %1219 = vmatpush1.xpose.msra.mxu0 0.0
    %1220 = vmatprep.subr.mxu0 0.0
    %1221 = vmatpush1.xpose.msra.mxu0 0.0
    %1222 = vmatprep.subr.mxu0 0.0
    %1223 = vmatpush1.xpose.msra.mxu0 0.0
    %1224 = vmatprep.subr.mxu0 0.0
    %1225 = vmatpush1.xpose.msra.mxu0 0.0
    %1226 = vmatprep.subr.mxu0 0.0
    %1227 = vmatpush1.xpose.msra.mxu0 0.0
    %1228 = vmatprep.subr.mxu0 0.0
    %1229 = vmatpush1.xpose.msra.mxu0 0.0
    %1230 = vmatprep.subr.mxu0 0.0
    %1231 = vmatpush1.xpose.msra.mxu0 0.0
    %1232 = vmatprep.subr.mxu0 0.0
    %1233 = vmatpush1.xpose.msra.mxu0 0.0
    %1234 = vmatprep.subr.mxu0 0.0
    %1235 = vmatpush1.xpose.msra.mxu0 0.0
    %1236 = vmatprep.subr.mxu0 0.0
    %1237 = vmatpush1.xpose.msra.mxu0 0.0
    %1238 = vmatprep.subr.mxu0 0.0
    %1239 = vmatpush1.xpose.msra.mxu0 0.0
    %1240 = vmatprep.subr.mxu0 0.0
    %1241 = vmatpush1.xpose.msra.mxu0 0.0
    %1242 = vmatprep.subr.mxu0 0.0
    %1243 = vmatpush1.xpose.msra.mxu0 0.0
    %1244 = vmatprep.subr.mxu0 0.0
    %1245 = vmatpush1.xpose.msra.mxu0 0.0
    %1246 = vmatprep.subr.mxu0 0.0
    %1247 = vmatpush1.xpose.msra.mxu0 0.0
    %1248 = vmatprep.subr.mxu0 0.0
    %1249 = vmatpush1.xpose.msra.mxu0 0.0
    %1250 = vmatprep.subr.mxu0 0.0
    %1251 = vmatpush1.xpose.msra.mxu0 0.0
    %1252 = vmatprep.subr.mxu0 0.0
    %1253 = vmatpush1.xpose.msra.mxu0 0.0
    %1254 = vmatprep.subr.mxu0 0.0
    %1255 = vmatpush1.xpose.msra.mxu0 0.0
    %1256 = vmatprep.subr.mxu0 0.0
    %1257 = vmatpush1.xpose.msra.mxu0 0.0
    %1258 = vmatprep.subr.mxu0 0.0
    %1259 = vmatpush1.xpose.msra.mxu0 0.0
    %1260 = vmatprep.subr.mxu0 0.0
    %1261 = vmatpush1.xpose.msra.mxu0 0.0
    %1262 = vmatprep.subr.mxu0 0.0
    %1263 = vmatpush1.xpose.msra.mxu0 0.0
    %1264 = vmatprep.subr.mxu0 0.0
    %1265 = vmatpush1.xpose.msra.mxu0 0.0
    %1266 = vmatprep.subr.mxu0 0.0
    %1267 = vmatpush1.xpose.msra.mxu0 0.0
    %1268 = vmatprep.subr.mxu0 0.0
    %1269 = vmatpush1.xpose.msra.mxu0 0.0
    %1270 = vmatprep.subr.mxu0 0.0
    %1271 = vmatpush1.xpose.msra.mxu0 0.0
    %1272 = vmatprep.mubr.f32.mxu0 0.0
    %1273 = vmatmul.mubr.f32.gmra.mrb[0].mxu0 %v1131
    %v1274 = vpop.f32.mrb[0].mxu0
    %v1275 = vadd.f32 %v248, %v1274
    %v1276 = vpop.f32.mrb[0].mxu0
    %1277 = vmatprep.mubr.f32.mxu0 0.0
    %1278 = vmatmul.mubr.f32.gmra.mrb[0].mxu0 %v1134
    %v1279 = vpop.f32.mrb[0].mxu0
    %v1280 = vadd.f32 %v248, %v1279
    %v1281 = vpop.f32.mrb[0].mxu0
    %1282 = vmatprep.mubr.f32.mxu0 0.0
    %1283 = vmatmul.mubr.f32.gmra.mrb[0].mxu0 %v1137
    %v1284 = vpop.f32.mrb[0].mxu0
    %v1285 = vadd.f32 %v248, %v1284
    %v1286 = vpop.f32.mrb[0].mxu0
    %1287 = vmatprep.mubr.f32.mxu0 0.0
    %1288 = vmatmul.mubr.f32.gmra.mrb[0].mxu0 %v1140
    %v1289 = vpop.f32.mrb[0].mxu0
    %v1290 = vadd.f32 %v248, %v1289
    %v1291 = vpop.f32.mrb[0].mxu0
    %1292 = vmatprep.mubr.f32.mxu0 0.0
    %1293 = vmatmul.mubr.f32.gmra.mrb[0].mxu0 %v1143
    %v1294 = vpop.f32.mrb[0].mxu0
    %v1295 = vadd.f32 %v248, %v1294
    %v1296 = vpop.f32.mrb[0].mxu0
    %1297 = vmatprep.mubr.f32.mxu0 0.0
    %1298 = vmatmul.mubr.f32.gmra.mrb[0].mxu0 %v1146
    %v1299 = vpop.f32.mrb[0].mxu0
    %v1300 = vadd.f32 %v248, %v1299
    %v1301 = vpop.f32.mrb[0].mxu0
    %1302 = vmatprep.mubr.f32.mxu0 0.0
    %1303 = vmatmul.mubr.f32.gmra.mrb[0].mxu0 %v1149
    %v1304 = vpop.f32.mrb[0].mxu0
    %v1305 = vadd.f32 %v248, %v1304
    %v1306 = vpop.f32.mrb[0].mxu0
    %1307 = vmatprep.mubr.f32.mxu0 0.0
    %1308 = vmatmul.mubr.f32.gmra.mrb[0].mxu0 %v1152
    %v1309 = vpop.f32.mrb[0].mxu0
    %v1310 = vadd.f32 %v248, %v1309
    %v1311 = vpop.f32.mrb[0].mxu0
    %1312 = vmatprep.mubr.f32.mxu0 0.0
    %1313 = vmatmul.mubr.f32.gmra.mrb[0].mxu0 %v1155
    %v1314 = vpop.f32.mrb[0].mxu0
    %v1315 = vadd.f32 %v248, %v1314
    %v1316 = vpop.f32.mrb[0].mxu0
    %1317 = vmatprep.mubr.f32.mxu0 0.0
    %1318 = vmatmul.mubr.f32.gmra.mrb[0].mxu0 %v1158
    %v1319 = vpop.f32.mrb[0].mxu0
    %v1320 = vadd.f32 %v248, %v1319
    %v1321 = vpop.f32.mrb[0].mxu0
    %1322 = vmatprep.mubr.f32.mxu0 0.0
    %1323 = vmatmul.mubr.f32.gmra.mrb[0].mxu0 %v1161
    %v1324 = vpop.f32.mrb[0].mxu0
    %v1325 = vadd.f32 %v248, %v1324
    %v1326 = vpop.f32.mrb[0].mxu0
    %1327 = vmatprep.mubr.f32.mxu0 0.0
    %1328 = vmatmul.mubr.f32.gmra.mrb[0].mxu0 %v1164
    %v1329 = vpop.f32.mrb[0].mxu0
    %v1330 = vadd.f32 %v248, %v1329
    %v1331 = vpop.f32.mrb[0].mxu0
    %1332 = vmatprep.mubr.f32.mxu0 0.0
    %1333 = vmatmul.mubr.f32.gmra.mrb[0].mxu0 %v1167
    %v1334 = vpop.f32.mrb[0].mxu0
    %v1335 = vadd.f32 %v248, %v1334
    %v1336 = vpop.f32.mrb[0].mxu0
    %1337 = vmatprep.mubr.f32.mxu0 0.0
    %1338 = vmatmul.mubr.f32.gmra.mrb[0].mxu0 %v1170
    %v1339 = vpop.f32.mrb[0].mxu0
    %v1340 = vadd.f32 %v248, %v1339
    %v1341 = vpop.f32.mrb[0].mxu0
    %1342 = vmatprep.mubr.f32.mxu0 0.0
    %1343 = vmatmul.mubr.f32.gmra.mrb[0].mxu0 %v1173
    %v1344 = vpop.f32.mrb[0].mxu0
    %v1345 = vadd.f32 %v248, %v1344
    %v1346 = vpop.f32.mrb[0].mxu0
    %1347 = vmatprep.mubr.f32.mxu0 0.0
    %1348 = vmatmul.mubr.f32.gmra.mrb[0].mxu0 %v1176
    %v1349 = vpop.f32.mrb[0].mxu0
    %v1350 = vadd.f32 %v248, %v1349
    %v1351 = vpop.f32.mrb[0].mxu0
    %1352 = vmatprep.mubr.f32.mxu0 0.0
    %1353 = vmatmul.mubr.f32.gmra.mrb[0].mxu0 %v1179
    %v1354 = vpop.f32.mrb[0].mxu0
    %v1355 = vadd.f32 %v248, %v1354
    %v1356 = vpop.f32.mrb[0].mxu0
    %1357 = vmatprep.mubr.f32.mxu0 0.0
    %1358 = vmatmul.mubr.f32.gmra.mrb[0].mxu0 %v1182
    %v1359 = vpop.f32.mrb[0].mxu0
    %v1360 = vadd.f32 %v248, %v1359
    %v1361 = vpop.f32.mrb[0].mxu0
    %1362 = vmatprep.mubr.f32.mxu0 0.0
    %1363 = vmatmul.mubr.f32.gmra.mrb[0].mxu0 %v1185
    %v1364 = vpop.f32.mrb[0].mxu0
    %v1365 = vadd.f32 %v248, %v1364
    %v1366 = vpop.f32.mrb[0].mxu0
    %1367 = vmatprep.mubr.f32.mxu0 0.0
    %1368 = vmatmul.mubr.f32.gmra.mrb[0].mxu0 %v1188
    %v1369 = vpop.f32.mrb[0].mxu0
    %v1370 = vadd.f32 %v248, %v1369
    %v1371 = vpop.f32.mrb[0].mxu0
    %1372 = vmatprep.mubr.f32.mxu0 0.0
    %1373 = vmatmul.mubr.f32.gmra.mrb[0].mxu0 %v1191
    %v1374 = vpop.f32.mrb[0].mxu0
    %v1375 = vadd.f32 %v248, %v1374
    %v1376 = vpop.f32.mrb[0].mxu0
    %1377 = vmatprep.mubr.f32.mxu0 0.0
    %1378 = vmatmul.mubr.f32.gmra.mrb[0].mxu0 %v1194
    %v1379 = vpop.f32.mrb[0].mxu0
    %v1380 = vadd.f32 %v248, %v1379
    %v1381 = vpop.f32.mrb[0].mxu0
    %1382 = vmatprep.mubr.f32.mxu0 0.0
    %1383 = vmatmul.mubr.f32.gmra.mrb[0].mxu0 %v1197
    %v1384 = vpop.f32.mrb[0].mxu0
    %v1385 = vadd.f32 %v248, %v1384
    %v1386 = vpop.f32.mrb[0].mxu0
    %1387 = vmatprep.mubr.f32.mxu0 0.0
    %1388 = vmatmul.mubr.f32.gmra.mrb[0].mxu0 %v1200
    %v1389 = vpop.f32.mrb[0].mxu0
    %v1390 = vadd.f32 %v248, %v1389
    %v1391 = vpop.f32.mrb[0].mxu0
    %1392 = vdwg.mxu0
    %v1393 = vsel %vm521, %v1275, -inf
    %1394 = vmax.xlane.f32.xlu0 %v1393
    %v1395 = vpop.xlane.xlu0 %1394
    %v1396 = vsel %vm521, %v1280, -inf
    %1397 = vmax.xlane.f32.xlu0 %v1396
    %v1398 = vpop.xlane.xlu0 %1397
    %v1399 = vsel %vm521, %v1285, -inf
    %1400 = vmax.xlane.f32.xlu0 %v1399
    %v1401 = vpop.xlane.xlu0 %1400
    %v1402 = vsel %vm521, %v1290, -inf
    %1403 = vmax.xlane.f32.xlu0 %v1402
    %v1404 = vpop.xlane.xlu0 %1403
    %v1405 = vsel %vm521, %v1295, -inf
    %1406 = vmax.xlane.f32.xlu0 %v1405
    %v1407 = vpop.xlane.xlu0 %1406
    %v1408 = vsel %vm521, %v1300, -inf
    %1409 = vmax.xlane.f32.xlu0 %v1408
    %v1410 = vpop.xlane.xlu0 %1409
    %v1411 = vsel %vm521, %v1305, -inf
    %1412 = vmax.xlane.f32.xlu0 %v1411
    %v1413 = vpop.xlane.xlu0 %1412
    %v1414 = vsel %vm521, %v1310, -inf
    %1415 = vmax.xlane.f32.xlu0 %v1414
    %v1416 = vpop.xlane.xlu0 %1415
    %v1417 = vsel %vm521, %v1315, -inf
    %1418 = vmax.xlane.f32.xlu0 %v1417
    %v1419 = vpop.xlane.xlu0 %1418
    %v1420 = vsel %vm521, %v1320, -inf
    %1421 = vmax.xlane.f32.xlu0 %v1420
    %v1422 = vpop.xlane.xlu0 %1421
    %v1423 = vsel %vm521, %v1325, -inf
    %1424 = vmax.xlane.f32.xlu0 %v1423
    %v1425 = vpop.xlane.xlu0 %1424
    %v1426 = vsel %vm521, %v1330, -inf
    %1427 = vmax.xlane.f32.xlu0 %v1426
    %v1428 = vpop.xlane.xlu0 %1427
    %v1429 = vsel %vm521, %v1335, -inf
    %1430 = vmax.xlane.f32.xlu0 %v1429
    %v1431 = vpop.xlane.xlu0 %1430
    %v1432 = vsel %vm521, %v1340, -inf
    %1433 = vmax.xlane.f32.xlu0 %v1432
    %v1434 = vpop.xlane.xlu0 %1433
    %v1435 = vsel %vm521, %v1345, -inf
    %1436 = vmax.xlane.f32.xlu0 %v1435
    %v1437 = vpop.xlane.xlu0 %1436
    %v1438 = vsel %vm521, %v1350, -inf
    %1439 = vmax.xlane.f32.xlu0 %v1438
    %v1440 = vpop.xlane.xlu0 %1439
    %v1441 = vsel %vm521, %v1355, -inf
    %1442 = vmax.xlane.f32.xlu0 %v1441
    %v1443 = vpop.xlane.xlu0 %1442
    %v1444 = vsel %vm521, %v1360, -inf
    %1445 = vmax.xlane.f32.xlu0 %v1444
    %v1446 = vpop.xlane.xlu0 %1445
    %v1447 = vsel %vm521, %v1365, -inf
    %1448 = vmax.xlane.f32.xlu0 %v1447
    %v1449 = vpop.xlane.xlu0 %1448
    %v1450 = vsel %vm521, %v1370, -inf
    %1451 = vmax.xlane.f32.xlu0 %v1450
    %v1452 = vpop.xlane.xlu0 %1451
    %v1453 = vsel %vm521, %v1375, -inf
    %1454 = vmax.xlane.f32.xlu0 %v1453
    %v1455 = vpop.xlane.xlu0 %1454
    %v1456 = vsel %vm521, %v1380, -inf
    %1457 = vmax.xlane.f32.xlu0 %v1456
    %v1458 = vpop.xlane.xlu0 %1457
    %v1459 = vsel %vm521, %v1385, -inf
    %1460 = vmax.xlane.f32.xlu0 %v1459
    %v1461 = vpop.xlane.xlu0 %1460
    %v1462 = vsel %vm521, %v1390, -inf
    %1463 = vmax.xlane.f32.xlu0 %v1462
    %v1464 = vpop.xlane.xlu0 %1463
    %v1465 = vsub.f32 %v1275, %v1395
    %v1466 = vsub.f32 %v1280, %v1398
    %v1467 = vsub.f32 %v1285, %v1401
    %v1468 = vsub.f32 %v1290, %v1404
    %v1469 = vsub.f32 %v1295, %v1407
    %v1470 = vsub.f32 %v1300, %v1410
    %v1471 = vsub.f32 %v1305, %v1413
    %v1472 = vsub.f32 %v1310, %v1416
    %v1473 = vsub.f32 %v1315, %v1419
    %v1474 = vsub.f32 %v1320, %v1422
    %v1475 = vsub.f32 %v1325, %v1425
    %v1476 = vsub.f32 %v1330, %v1428
    %v1477 = vsub.f32 %v1335, %v1431
    %v1478 = vsub.f32 %v1340, %v1434
    %v1479 = vsub.f32 %v1345, %v1437
    %v1480 = vsub.f32 %v1350, %v1440
    %v1481 = vsub.f32 %v1355, %v1443
    %v1482 = vsub.f32 %v1360, %v1446
    %v1483 = vsub.f32 %v1365, %v1449
    %v1484 = vsub.f32 %v1370, %v1452
    %v1485 = vsub.f32 %v1375, %v1455
    %v1486 = vsub.f32 %v1380, %v1458
    %v1487 = vsub.f32 %v1385, %v1461
    %v1488 = vsub.f32 %v1390, %v1464
    %v1489 = vmul.f32 %v1465, 1.442695
    %v1490 = vpow.pop %v1489
    %v1491 = vmul.f32 %v1466, 1.442695
    %v1492 = vpow.pop %v1491
    %v1493 = vmul.f32 %v1467, 1.442695
    %v1494 = vpow.pop %v1493
    %v1495 = vmul.f32 %v1468, 1.442695
    %v1496 = vpow.pop %v1495
    %v1497 = vmul.f32 %v1469, 1.442695
    %v1498 = vpow.pop %v1497
    %v1499 = vmul.f32 %v1470, 1.442695
    %v1500 = vpow.pop %v1499
    %v1501 = vmul.f32 %v1471, 1.442695
    %v1502 = vpow.pop %v1501
    %v1503 = vmul.f32 %v1472, 1.442695
    %v1504 = vpow.pop %v1503
    %v1505 = vmul.f32 %v1473, 1.442695
    %v1506 = vpow.pop %v1505
    %v1507 = vmul.f32 %v1474, 1.442695
    %v1508 = vpow.pop %v1507
    %v1509 = vmul.f32 %v1475, 1.442695
    %v1510 = vpow.pop %v1509
    %v1511 = vmul.f32 %v1476, 1.442695
    %v1512 = vpow.pop %v1511
    %v1513 = vmul.f32 %v1477, 1.442695
    %v1514 = vpow.pop %v1513
    %v1515 = vmul.f32 %v1478, 1.442695
    %v1516 = vpow.pop %v1515
    %v1517 = vmul.f32 %v1479, 1.442695
    %v1518 = vpow.pop %v1517
    %v1519 = vmul.f32 %v1480, 1.442695
    %v1520 = vpow.pop %v1519
    %v1521 = vmul.f32 %v1481, 1.442695
    %v1522 = vpow.pop %v1521
    %v1523 = vmul.f32 %v1482, 1.442695
    %v1524 = vpow.pop %v1523
    %v1525 = vmul.f32 %v1483, 1.442695
    %v1526 = vpow.pop %v1525
    %v1527 = vmul.f32 %v1484, 1.442695
    %v1528 = vpow.pop %v1527
    %v1529 = vmul.f32 %v1485, 1.442695
    %v1530 = vpow.pop %v1529
    %v1531 = vmul.f32 %v1486, 1.442695
    %v1532 = vpow.pop %v1531
    %v1533 = vmul.f32 %v1487, 1.442695
    %v1534 = vpow.pop %v1533
    %v1535 = vmul.f32 %v1488, 1.442695
    %v1536 = vpow.pop %v1535
    %v1537 = vsel %vm521, %v1490, 0.0
    %1538 = vadd.xlane.f32.xlu0 %v1537
    %v1539 = vpop.xlane.xlu0 %1538
    %v1540 = vsel %vm521, %v1492, 0.0
    %1541 = vadd.xlane.f32.xlu0 %v1540
    %v1542 = vpop.xlane.xlu0 %1541
    %v1543 = vsel %vm521, %v1494, 0.0
    %1544 = vadd.xlane.f32.xlu0 %v1543
    %v1545 = vpop.xlane.xlu0 %1544
    %v1546 = vsel %vm521, %v1496, 0.0
    %1547 = vadd.xlane.f32.xlu0 %v1546
    %v1548 = vpop.xlane.xlu0 %1547
    %v1549 = vsel %vm521, %v1498, 0.0
    %1550 = vadd.xlane.f32.xlu0 %v1549
    %v1551 = vpop.xlane.xlu0 %1550
    %v1552 = vsel %vm521, %v1500, 0.0
    %1553 = vadd.xlane.f32.xlu0 %v1552
    %v1554 = vpop.xlane.xlu0 %1553
    %v1555 = vsel %vm521, %v1502, 0.0
    %1556 = vadd.xlane.f32.xlu0 %v1555
    %v1557 = vpop.xlane.xlu0 %1556
    %v1558 = vsel %vm521, %v1504, 0.0
    %1559 = vadd.xlane.f32.xlu0 %v1558
    %v1560 = vpop.xlane.xlu0 %1559
    %v1561 = vsel %vm521, %v1506, 0.0
    %1562 = vadd.xlane.f32.xlu0 %v1561
    %v1563 = vpop.xlane.xlu0 %1562
    %v1564 = vsel %vm521, %v1508, 0.0
    %1565 = vadd.xlane.f32.xlu0 %v1564
    %v1566 = vpop.xlane.xlu0 %1565
    %v1567 = vsel %vm521, %v1510, 0.0
    %1568 = vadd.xlane.f32.xlu0 %v1567
    %v1569 = vpop.xlane.xlu0 %1568
    %v1570 = vsel %vm521, %v1512, 0.0
    %1571 = vadd.xlane.f32.xlu0 %v1570
    %v1572 = vpop.xlane.xlu0 %1571
    %v1573 = vsel %vm521, %v1514, 0.0
    %1574 = vadd.xlane.f32.xlu0 %v1573
    %v1575 = vpop.xlane.xlu0 %1574
    %v1576 = vsel %vm521, %v1516, 0.0
    %1577 = vadd.xlane.f32.xlu0 %v1576
    %v1578 = vpop.xlane.xlu0 %1577
    %v1579 = vsel %vm521, %v1518, 0.0
    %1580 = vadd.xlane.f32.xlu0 %v1579
    %v1581 = vpop.xlane.xlu0 %1580
    %v1582 = vsel %vm521, %v1520, 0.0
    %1583 = vadd.xlane.f32.xlu0 %v1582
    %v1584 = vpop.xlane.xlu0 %1583
    %v1585 = vsel %vm521, %v1522, 0.0
    %1586 = vadd.xlane.f32.xlu0 %v1585
    %v1587 = vpop.xlane.xlu0 %1586
    %v1588 = vsel %vm521, %v1524, 0.0
    %1589 = vadd.xlane.f32.xlu0 %v1588
    %v1590 = vpop.xlane.xlu0 %1589
    %v1591 = vsel %vm521, %v1526, 0.0
    %1592 = vadd.xlane.f32.xlu0 %v1591
    %v1593 = vpop.xlane.xlu0 %1592
    %v1594 = vsel %vm521, %v1528, 0.0
    %1595 = vadd.xlane.f32.xlu0 %v1594
    %v1596 = vpop.xlane.xlu0 %1595
    %v1597 = vsel %vm521, %v1530, 0.0
    %1598 = vadd.xlane.f32.xlu0 %v1597
    %v1599 = vpop.xlane.xlu0 %1598
    %v1600 = vsel %vm521, %v1532, 0.0
    %1601 = vadd.xlane.f32.xlu0 %v1600
    %v1602 = vpop.xlane.xlu0 %1601
    %v1603 = vsel %vm521, %v1534, 0.0
    %1604 = vadd.xlane.f32.xlu0 %v1603
    %v1605 = vpop.xlane.xlu0 %1604
    %v1606 = vsel %vm521, %v1536, 0.0
    %1607 = vadd.xlane.f32.xlu0 %v1606
    %v1608 = vpop.xlane.xlu0 %1607
    %v1609 = vrcp.pop %v1539
    %v1610 = vrcp.pop %v1542
    %v1611 = vrcp.pop %v1545
    %v1612 = vrcp.pop %v1548
    %v1613 = vrcp.pop %v1551
    %v1614 = vrcp.pop %v1554
    %v1615 = vrcp.pop %v1557
    %v1616 = vrcp.pop %v1560
    %v1617 = vrcp.pop %v1563
    %v1618 = vrcp.pop %v1566
    %v1619 = vrcp.pop %v1569
    %v1620 = vrcp.pop %v1572
    %v1621 = vrcp.pop %v1575
    %v1622 = vrcp.pop %v1578
    %v1623 = vrcp.pop %v1581
    %v1624 = vrcp.pop %v1584
    %v1625 = vrcp.pop %v1587
    %v1626 = vrcp.pop %v1590
    %v1627 = vrcp.pop %v1593
    %v1628 = vrcp.pop %v1596
    %v1629 = vrcp.pop %v1599
    %v1630 = vrcp.pop %v1602
    %v1631 = vrcp.pop %v1605
    %v1632 = vrcp.pop %v1608
    %v1633 = vmul.f32 %v1490, %v1609
    %v1634 = vmul.f32 %v1492, %v1610
    %v1635 = vmul.f32 %v1494, %v1611
    %v1636 = vmul.f32 %v1496, %v1612
    %v1637 = vmul.f32 %v1498, %v1613
    %v1638 = vmul.f32 %v1500, %v1614
    %v1639 = vmul.f32 %v1502, %v1615
    %v1640 = vmul.f32 %v1504, %v1616
    %v1641 = vmul.f32 %v1506, %v1617
    %v1642 = vmul.f32 %v1508, %v1618
    %v1643 = vmul.f32 %v1510, %v1619
    %v1644 = vmul.f32 %v1512, %v1620
    %v1645 = vmul.f32 %v1514, %v1621
    %v1646 = vmul.f32 %v1516, %v1622
    %v1647 = vmul.f32 %v1518, %v1623
    %v1648 = vmul.f32 %v1520, %v1624
    %v1649 = vmul.f32 %v1522, %v1625
    %v1650 = vmul.f32 %v1524, %v1626
    %v1651 = vmul.f32 %v1526, %v1627
    %v1652 = vmul.f32 %v1528, %v1628
    %v1653 = vmul.f32 %v1530, %v1629
    %v1654 = vmul.f32 %v1532, %v1630
    %v1655 = vmul.f32 %v1534, %v1631
    %v1656 = vmul.f32 %v1536, %v1632
    %1657 = vrot.lane.b32.xlu0 %v202, 64
    %v1658 = vpop.permute.xlu0 %1657
    %1659 = vrot.lane.b32.xlu0 %v207, 64
    %v1660 = vpop.permute.xlu0 %1659
    %1661 = vrot.lane.b32.xlu0 %v212, 64
    %v1662 = vpop.permute.xlu0 %1661
    %v1667 = vsel %vm521, %v1633, 0
    %v1670 = vsel %vm521, %v1634, 0
    %v1673 = vsel %vm521, %v1635, 0
    %v1676 = vsel %vm521, %v1636, 0
    %v1679 = vsel %vm521, %v1637, 0
    %v1682 = vsel %vm521, %v1638, 0
    %v1685 = vsel %vm521, %v1639, 0
    %v1688 = vsel %vm521, %v1640, 0
    %v1691 = vsel %vm521, %v1641, 0
    %v1694 = vsel %vm521, %v1642, 0
    %v1697 = vsel %vm521, %v1643, 0
    %v1700 = vsel %vm521, %v1644, 0
    %v1703 = vsel %vm521, %v1645, 0
    %v1706 = vsel %vm521, %v1646, 0
    %v1709 = vsel %vm521, %v1647, 0
    %v1712 = vsel %vm521, %v1648, 0
    %v1715 = vsel %vm521, %v1649, 0
    %v1718 = vsel %vm521, %v1650, 0
    %v1721 = vsel %vm521, %v1651, 0
    %v1724 = vsel %vm521, %v1652, 0
    %v1727 = vsel %vm521, %v1653, 0
    %v1730 = vsel %vm521, %v1654, 0
    %v1733 = vsel %vm521, %v1655, 0
    %v1736 = vsel %vm521, %v1656, 0
    %1738 = vmatprep.subr.mxu0 0.0
    %1739 = vmatpush1.msra.mxu0 %v1658
    %1740 = vmatprep.subr.mxu0 0.0
    %1741 = vmatpush1.msra.mxu0 %v1660
    %1742 = vmatprep.subr.mxu0 0.0
    %1743 = vmatpush1.msra.mxu0 %v1662
    %1744 = vmatprep.subr.mxu0 0.0
    %1745 = vmatpush1.msra.mxu0 0.0
    %1746 = vmatprep.subr.mxu0 0.0
    %1747 = vmatpush1.msra.mxu0 0.0
    %1748 = vmatprep.subr.mxu0 0.0
    %1749 = vmatpush1.msra.mxu0 0.0
    %1750 = vmatprep.subr.mxu0 0.0
    %1751 = vmatpush1.msra.mxu0 0.0
    %1752 = vmatprep.subr.mxu0 0.0
    %1753 = vmatpush1.msra.mxu0 0.0
    %1754 = vmatprep.subr.mxu0 0.0
    %1755 = vmatpush1.msra.mxu0 0.0
    %1756 = vmatprep.subr.mxu0 0.0
    %1757 = vmatpush1.msra.mxu0 0.0
    %1758 = vmatprep.subr.mxu0 0.0
    %1759 = vmatpush1.msra.mxu0 0.0
    %1760 = vmatprep.subr.mxu0 0.0
    %1761 = vmatpush1.msra.mxu0 0.0
    %1762 = vmatprep.subr.mxu0 0.0
    %1763 = vmatpush1.msra.mxu0 0.0
    %1764 = vmatprep.subr.mxu0 0.0
    %1765 = vmatpush1.msra.mxu0 0.0
    %1766 = vmatprep.subr.mxu0 0.0
    %1767 = vmatpush1.msra.mxu0 0.0
    %1768 = vmatprep.subr.mxu0 0.0
    %1769 = vmatpush1.msra.mxu0 0.0
    %1770 = vmatprep.subr.mxu0 0.0
    %1771 = vmatpush1.msra.mxu0 0.0
    %1772 = vmatprep.subr.mxu0 0.0
    %1773 = vmatpush1.msra.mxu0 0.0
    %1774 = vmatprep.subr.mxu0 0.0
    %1775 = vmatpush1.msra.mxu0 0.0
    %1776 = vmatprep.subr.mxu0 0.0
    %1777 = vmatpush1.msra.mxu0 0.0
    %1778 = vmatprep.subr.mxu0 0.0
    %1779 = vmatpush1.msra.mxu0 0.0
    %1780 = vmatprep.subr.mxu0 0.0
    %1781 = vmatpush1.msra.mxu0 0.0
    %1782 = vmatprep.subr.mxu0 0.0
    %1783 = vmatpush1.msra.mxu0 0.0
    %1784 = vmatprep.subr.mxu0 0.0
    %1785 = vmatpush1.msra.mxu0 0.0
    %1786 = vmatprep.subr.mxu0 0.0
    %1787 = vmatpush1.msra.mxu0 0.0
    %1788 = vmatprep.subr.mxu0 0.0
    %1789 = vmatpush1.msra.mxu0 0.0
    %1790 = vmatprep.subr.mxu0 0.0
    %1791 = vmatpush1.msra.mxu0 0.0
    %1792 = vmatprep.subr.mxu0 0.0
    %1793 = vmatpush1.msra.mxu0 0.0
    %1794 = vmatprep.subr.mxu0 0.0
    %1795 = vmatpush1.msra.mxu0 0.0
    %1796 = vmatprep.subr.mxu0 0.0
    %1797 = vmatpush1.msra.mxu0 0.0
    %1798 = vmatprep.subr.mxu0 0.0
    %1799 = vmatpush1.msra.mxu0 0.0
    %1800 = vmatprep.subr.mxu0 0.0
    %1801 = vmatpush1.msra.mxu0 0.0
    %1802 = vmatprep.mubr.f32.mxu0 0.0
    %1803 = vmatmul.mubr.f32.gmra.mrb[0].mxu0 %v1667
    %v1804 = vpop.f32.mrb[0].mxu0
    %v1805 = vadd.f32 0.0, %v1804
    %v1806 = vpop.f32.mrb[0].mxu0
    %1807 = vmatprep.mubr.f32.mxu0 0.0
    %1808 = vmatmul.mubr.f32.gmra.mrb[0].mxu0 %v1670
    %v1809 = vpop.f32.mrb[0].mxu0
    %v1810 = vadd.f32 0.0, %v1809
    %v1811 = vpop.f32.mrb[0].mxu0
    %1812 = vmatprep.mubr.f32.mxu0 0.0
    %1813 = vmatmul.mubr.f32.gmra.mrb[0].mxu0 %v1673
    %v1814 = vpop.f32.mrb[0].mxu0
    %v1815 = vadd.f32 0.0, %v1814
    %v1816 = vpop.f32.mrb[0].mxu0
    %1817 = vmatprep.mubr.f32.mxu0 0.0
    %1818 = vmatmul.mubr.f32.gmra.mrb[0].mxu0 %v1676
    %v1819 = vpop.f32.mrb[0].mxu0
    %v1820 = vadd.f32 0.0, %v1819
    %v1821 = vpop.f32.mrb[0].mxu0
    %1822 = vmatprep.mubr.f32.mxu0 0.0
    %1823 = vmatmul.mubr.f32.gmra.mrb[0].mxu0 %v1679
    %v1824 = vpop.f32.mrb[0].mxu0
    %v1825 = vadd.f32 0.0, %v1824
    %v1826 = vpop.f32.mrb[0].mxu0
    %1827 = vmatprep.mubr.f32.mxu0 0.0
    %1828 = vmatmul.mubr.f32.gmra.mrb[0].mxu0 %v1682
    %v1829 = vpop.f32.mrb[0].mxu0
    %v1830 = vadd.f32 0.0, %v1829
    %v1831 = vpop.f32.mrb[0].mxu0
    %1832 = vmatprep.mubr.f32.mxu0 0.0
    %1833 = vmatmul.mubr.f32.gmra.mrb[0].mxu0 %v1685
    %v1834 = vpop.f32.mrb[0].mxu0
    %v1835 = vadd.f32 0.0, %v1834
    %v1836 = vpop.f32.mrb[0].mxu0
    %1837 = vmatprep.mubr.f32.mxu0 0.0
    %1838 = vmatmul.mubr.f32.gmra.mrb[0].mxu0 %v1688
    %v1839 = vpop.f32.mrb[0].mxu0
    %v1840 = vadd.f32 0.0, %v1839
    %v1841 = vpop.f32.mrb[0].mxu0
    %1842 = vmatprep.mubr.f32.mxu0 0.0
    %1843 = vmatmul.mubr.f32.gmra.mrb[0].mxu0 %v1691
    %v1844 = vpop.f32.mrb[0].mxu0
    %v1845 = vadd.f32 0.0, %v1844
    %v1846 = vpop.f32.mrb[0].mxu0
    %1847 = vmatprep.mubr.f32.mxu0 0.0
    %1848 = vmatmul.mubr.f32.gmra.mrb[0].mxu0 %v1694
    %v1849 = vpop.f32.mrb[0].mxu0
    %v1850 = vadd.f32 0.0, %v1849
    %v1851 = vpop.f32.mrb[0].mxu0
    %1852 = vmatprep.mubr.f32.mxu0 0.0
    %1853 = vmatmul.mubr.f32.gmra.mrb[0].mxu0 %v1697
    %v1854 = vpop.f32.mrb[0].mxu0
    %v1855 = vadd.f32 0.0, %v1854
    %v1856 = vpop.f32.mrb[0].mxu0
    %1857 = vmatprep.mubr.f32.mxu0 0.0
    %1858 = vmatmul.mubr.f32.gmra.mrb[0].mxu0 %v1700
    %v1859 = vpop.f32.mrb[0].mxu0
    %v1860 = vadd.f32 0.0, %v1859
    %v1861 = vpop.f32.mrb[0].mxu0
    %1862 = vmatprep.mubr.f32.mxu0 0.0
    %1863 = vmatmul.mubr.f32.gmra.mrb[0].mxu0 %v1703
    %v1864 = vpop.f32.mrb[0].mxu0
    %v1865 = vadd.f32 0.0, %v1864
    %v1866 = vpop.f32.mrb[0].mxu0
    %1867 = vmatprep.mubr.f32.mxu0 0.0
    %1868 = vmatmul.mubr.f32.gmra.mrb[0].mxu0 %v1706
    %v1869 = vpop.f32.mrb[0].mxu0
    %v1870 = vadd.f32 0.0, %v1869
    %v1871 = vpop.f32.mrb[0].mxu0
    %1872 = vmatprep.mubr.f32.mxu0 0.0
    %1873 = vmatmul.mubr.f32.gmra.mrb[0].mxu0 %v1709
    %v1874 = vpop.f32.mrb[0].mxu0
    %v1875 = vadd.f32 0.0, %v1874
    %v1876 = vpop.f32.mrb[0].mxu0
    %1877 = vmatprep.mubr.f32.mxu0 0.0
    %1878 = vmatmul.mubr.f32.gmra.mrb[0].mxu0 %v1712
    %v1879 = vpop.f32.mrb[0].mxu0
    %v1880 = vadd.f32 0.0, %v1879
    %v1881 = vpop.f32.mrb[0].mxu0
    %1882 = vmatprep.mubr.f32.mxu0 0.0
    %1883 = vmatmul.mubr.f32.gmra.mrb[0].mxu0 %v1715
    %v1884 = vpop.f32.mrb[0].mxu0
    %v1885 = vadd.f32 0.0, %v1884
    %v1886 = vpop.f32.mrb[0].mxu0
    %1887 = vmatprep.mubr.f32.mxu0 0.0
    %1888 = vmatmul.mubr.f32.gmra.mrb[0].mxu0 %v1718
    %v1889 = vpop.f32.mrb[0].mxu0
    %v1890 = vadd.f32 0.0, %v1889
    %v1891 = vpop.f32.mrb[0].mxu0
    %1892 = vmatprep.mubr.f32.mxu0 0.0
    %1893 = vmatmul.mubr.f32.gmra.mrb[0].mxu0 %v1721
    %v1894 = vpop.f32.mrb[0].mxu0
    %v1895 = vadd.f32 0.0, %v1894
    %v1896 = vpop.f32.mrb[0].mxu0
    %1897 = vmatprep.mubr.f32.mxu0 0.0
    %1898 = vmatmul.mubr.f32.gmra.mrb[0].mxu0 %v1724
    %v1899 = vpop.f32.mrb[0].mxu0
    %v1900 = vadd.f32 0.0, %v1899
    %v1901 = vpop.f32.mrb[0].mxu0
    %1902 = vmatprep.mubr.f32.mxu0 0.0
    %1903 = vmatmul.mubr.f32.gmra.mrb[0].mxu0 %v1727
    %v1904 = vpop.f32.mrb[0].mxu0
    %v1905 = vadd.f32 0.0, %v1904
    %v1906 = vpop.f32.mrb[0].mxu0
    %1907 = vmatprep.mubr.f32.mxu0 0.0
    %1908 = vmatmul.mubr.f32.gmra.mrb[0].mxu0 %v1730
    %v1909 = vpop.f32.mrb[0].mxu0
    %v1910 = vadd.f32 0.0, %v1909
    %v1911 = vpop.f32.mrb[0].mxu0
    %1912 = vmatprep.mubr.f32.mxu0 0.0
    %1913 = vmatmul.mubr.f32.gmra.mrb[0].mxu0 %v1733
    %v1914 = vpop.f32.mrb[0].mxu0
    %v1915 = vadd.f32 0.0, %v1914
    %v1916 = vpop.f32.mrb[0].mxu0
    %1917 = vmatprep.mubr.f32.mxu0 0.0
    %1918 = vmatmul.mubr.f32.gmra.mrb[0].mxu0 %v1736
    %v1919 = vpop.f32.mrb[0].mxu0
    %v1920 = vadd.f32 0.0, %v1919
    %v1921 = vpop.f32.mrb[0].mxu0
    %1922 = vdwg.mxu0
    %v1923 = vmul.f32 %v1805, %v36
    %v1924 = vmul.f32 %v1810, %v37
    %v1925 = vmul.f32 %v1815, %v38
    %v1926 = vmul.f32 %v1820, %v39
    %v1927 = vmul.f32 %v1825, %v40
    %v1928 = vmul.f32 %v1830, %v41
    %v1929 = vmul.f32 %v1835, %v42
    %v1930 = vmul.f32 %v1840, %v43
    %v1931 = vmul.f32 %v1845, %v44
    %v1932 = vmul.f32 %v1850, %v45
    %v1933 = vmul.f32 %v1855, %v46
    %v1934 = vmul.f32 %v1860, %v47
    %v1935 = vmul.f32 %v1865, %v48
    %v1936 = vmul.f32 %v1870, %v49
    %v1937 = vmul.f32 %v1875, %v50
    %v1938 = vmul.f32 %v1880, %v51
    %v1939 = vmul.f32 %v1885, %v52
    %v1940 = vmul.f32 %v1890, %v53
    %v1941 = vmul.f32 %v1895, %v54
    %v1942 = vmul.f32 %v1900, %v55
    %v1943 = vmul.f32 %v1905, %v56
    %v1944 = vmul.f32 %v1910, %v57
    %v1945 = vmul.f32 %v1915, %v58
    %v1946 = vmul.f32 %v1920, %v59
    %v1947 = vadd.f32 %v1923, %v1926
    %v1948 = vadd.f32 %v1924, %v1927
    %v1949 = vadd.f32 %v1925, %v1928
    %v1950 = vadd.f32 %v1947, %v1929
    %v1951 = vadd.f32 %v1948, %v1930
    %v1952 = vadd.f32 %v1949, %v1931
    %v1953 = vadd.f32 %v1950, %v1932
    %v1954 = vadd.f32 %v1951, %v1933
    %v1955 = vadd.f32 %v1952, %v1934
    %v1956 = vadd.f32 %v1953, %v1935
    %v1957 = vadd.f32 %v1954, %v1936
    %v1958 = vadd.f32 %v1955, %v1937
    %v1959 = vadd.f32 %v1956, %v1938
    %v1960 = vadd.f32 %v1957, %v1939
    %v1961 = vadd.f32 %v1958, %v1940
    %v1962 = vadd.f32 %v1959, %v1941
    %v1963 = vadd.f32 %v1960, %v1942
    %v1964 = vadd.f32 %v1961, %v1943
    %v1965 = vadd.f32 %v1962, %v1944
    %v1966 = vadd.f32 %v1963, %v1945
    %v1967 = vadd.f32 %v1964, %v1946
    %v1968 = vlaneseq
    %v1969 = vshrl.u32 %v1968, 7
    %v1970 = vsub.s32 0, %v1969
    %v1971 = vrot.slane %v90, %v1970
    %v1973 = vsel %vm101, %v1094, 0
    %v1976 = vsel %vm101, %v1095, 0
    %v1979 = vsel %vm101, %v1096, 0
    %v1982 = vsel %vm101, %v1965, 0
    %v1985 = vsel %vm101, %v1966, 0
    %v1988 = vsel %vm101, %v1967, 0
    %1990 = vmatprep.subr.mxu0 0.0
    %1991 = vmatpush1.msra.mxu0 %v65
    %1992 = vmatprep.subr.mxu0 0.0
    %1993 = vmatpush1.msra.mxu0 %v66
    %1994 = vmatprep.subr.mxu0 0.0
    %1995 = vmatpush1.msra.mxu0 %v67
    %1996 = vmatprep.subr.mxu0 0.0
    %1997 = vmatpush1.msra.mxu0 %v68
    %1998 = vmatprep.subr.mxu0 0.0
    %1999 = vmatpush1.msra.mxu0 0.0
    %2000 = vmatprep.subr.mxu0 0.0
    %2001 = vmatpush1.msra.mxu0 0.0
    %2002 = vmatprep.subr.mxu0 0.0
    %2003 = vmatpush1.msra.mxu0 0.0
    %2004 = vmatprep.subr.mxu0 0.0
    %2005 = vmatpush1.msra.mxu0 0.0
    %2006 = vmatprep.subr.mxu0 0.0
    %2007 = vmatpush1.msra.mxu0 0.0
    %2008 = vmatprep.subr.mxu0 0.0
    %2009 = vmatpush1.msra.mxu0 0.0
    %2010 = vmatprep.subr.mxu0 0.0
    %2011 = vmatpush1.msra.mxu0 0.0
    %2012 = vmatprep.subr.mxu0 0.0
    %2013 = vmatpush1.msra.mxu0 0.0
    %2014 = vmatprep.subr.mxu0 0.0
    %2015 = vmatpush1.msra.mxu0 0.0
    %2016 = vmatprep.subr.mxu0 0.0
    %2017 = vmatpush1.msra.mxu0 0.0
    %2018 = vmatprep.subr.mxu0 0.0
    %2019 = vmatpush1.msra.mxu0 0.0
    %2020 = vmatprep.subr.mxu0 0.0
    %2021 = vmatpush1.msra.mxu0 0.0
    %2022 = vmatprep.subr.mxu0 0.0
    %2023 = vmatpush1.msra.mxu0 0.0
    %2024 = vmatprep.subr.mxu0 0.0
    %2025 = vmatpush1.msra.mxu0 0.0
    %2026 = vmatprep.subr.mxu0 0.0
    %2027 = vmatpush1.msra.mxu0 0.0
    %2028 = vmatprep.subr.mxu0 0.0
    %2029 = vmatpush1.msra.mxu0 0.0
    %2030 = vmatprep.subr.mxu0 0.0
    %2031 = vmatpush1.msra.mxu0 0.0
    %2032 = vmatprep.subr.mxu0 0.0
    %2033 = vmatpush1.msra.mxu0 0.0
    %2034 = vmatprep.subr.mxu0 0.0
    %2035 = vmatpush1.msra.mxu0 0.0
    %2036 = vmatprep.subr.mxu0 0.0
    %2037 = vmatpush1.msra.mxu0 0.0
    %2038 = vmatprep.subr.mxu0 0.0
    %2039 = vmatpush1.msra.mxu0 0.0
    %2040 = vmatprep.subr.mxu0 0.0
    %2041 = vmatpush1.msra.mxu0 0.0
    %2042 = vmatprep.subr.mxu0 0.0
    %2043 = vmatpush1.msra.mxu0 0.0
    %2044 = vmatprep.subr.mxu0 0.0
    %2045 = vmatpush1.msra.mxu0 0.0
    %2046 = vmatprep.subr.mxu0 0.0
    %2047 = vmatpush1.msra.mxu0 0.0
    %2048 = vmatprep.subr.mxu0 0.0
    %2049 = vmatpush1.msra.mxu0 0.0
    %2050 = vmatprep.subr.mxu0 0.0
    %2051 = vmatpush1.msra.mxu0 0.0
    %2052 = vmatprep.subr.mxu0 0.0
    %2053 = vmatpush1.msra.mxu0 0.0
    %2054 = vmatprep.mubr.f32.mxu0 0.0
    %2055 = vmatmul.mubr.f32.gmra.mrb[0].mxu0 %v1973
    %v2056 = vpop.f32.mrb[0].mxu0
    %v2057 = vadd.f32 %v1971, %v2056
    %v2058 = vpop.f32.mrb[0].mxu0
    %2059 = vmatprep.mubr.f32.mxu0 0.0
    %2060 = vmatmul.mubr.f32.gmra.mrb[0].mxu0 %v1976
    %v2061 = vpop.f32.mrb[0].mxu0
    %v2062 = vadd.f32 %v1971, %v2061
    %v2063 = vpop.f32.mrb[0].mxu0
    %2064 = vmatprep.mubr.f32.mxu0 0.0
    %2065 = vmatmul.mubr.f32.gmra.mrb[0].mxu0 %v1979
    %v2066 = vpop.f32.mrb[0].mxu0
    %v2067 = vadd.f32 %v1971, %v2066
    %v2068 = vpop.f32.mrb[0].mxu0
    %2069 = vmatprep.mubr.f32.mxu0 0.0
    %2070 = vmatmul.mubr.f32.gmra.mrb[0].mxu0 %v1982
    %v2071 = vpop.f32.mrb[0].mxu0
    %v2072 = vadd.f32 %v1971, %v2071
    %v2073 = vpop.f32.mrb[0].mxu0
    %2074 = vmatprep.mubr.f32.mxu0 0.0
    %2075 = vmatmul.mubr.f32.gmra.mrb[0].mxu0 %v1985
    %v2076 = vpop.f32.mrb[0].mxu0
    %v2077 = vadd.f32 %v1971, %v2076
    %v2078 = vpop.f32.mrb[0].mxu0
    %2079 = vmatprep.mubr.f32.mxu0 0.0
    %2080 = vmatmul.mubr.f32.gmra.mrb[0].mxu0 %v1988
    %v2081 = vpop.f32.mrb[0].mxu0
    %v2082 = vadd.f32 %v1971, %v2081
    %v2083 = vpop.f32.mrb[0].mxu0
    %2084 = vdwg.mxu0
    %v2085 = vadd.f32 %v30, %v2057
    %v2086 = vadd.f32 %v31, %v2062
    %v2087 = vadd.f32 %v32, %v2067
    %v2088 = vadd.f32 %v33, %v2072
    %v2089 = vadd.f32 %v34, %v2077
    %v2090 = vadd.f32 %v35, %v2082
    %v2091 = vsel %vm101, %v2085, 0.0
    %2092 = vadd.xlane.f32.xlu0 %v2091
    %v2093 = vpop.xlane.xlu0 %2092
    %v2094 = vsel %vm101, %v2086, 0.0
    %2095 = vadd.xlane.f32.xlu0 %v2094
    %v2096 = vpop.xlane.xlu0 %2095
    %v2097 = vsel %vm101, %v2087, 0.0
    %2098 = vadd.xlane.f32.xlu0 %v2097
    %v2099 = vpop.xlane.xlu0 %2098
    %v2100 = vsel %vm101, %v2088, 0.0
    %2101 = vadd.xlane.f32.xlu0 %v2100
    %v2102 = vpop.xlane.xlu0 %2101
    %v2103 = vsel %vm101, %v2089, 0.0
    %2104 = vadd.xlane.f32.xlu0 %v2103
    %v2105 = vpop.xlane.xlu0 %2104
    %v2106 = vsel %vm101, %v2090, 0.0
    %2107 = vadd.xlane.f32.xlu0 %v2106
    %v2108 = vpop.xlane.xlu0 %2107
    %v2109 = vrcp.pop 32.0
    %v2110 = vmul.f32 %v2093, %v2109
    %v2111 = vmul.f32 %v2096, %v2109
    %v2112 = vmul.f32 %v2099, %v2109
    %v2113 = vmul.f32 %v2102, %v2109
    %v2114 = vmul.f32 %v2105, %v2109
    %v2115 = vmul.f32 %v2108, %v2109
    %v2116 = vsub.f32 %v2085, %v2110
    %v2117 = vsub.f32 %v2086, %v2111
    %v2118 = vsub.f32 %v2087, %v2112
    %v2119 = vsub.f32 %v2088, %v2113
    %v2120 = vsub.f32 %v2089, %v2114
    %v2121 = vsub.f32 %v2090, %v2115
    %v2122 = vmul.f32 %v2116, %v2116
    %v2123 = vmul.f32 %v2117, %v2117
    %v2124 = vmul.f32 %v2118, %v2118
    %v2125 = vmul.f32 %v2119, %v2119
    %v2126 = vmul.f32 %v2120, %v2120
    %v2127 = vmul.f32 %v2121, %v2121
    %v2128 = vsel %vm101, %v2122, 0.0
    %2129 = vadd.xlane.f32.xlu0 %v2128
    %v2130 = vpop.xlane.xlu0 %2129
    %v2131 = vsel %vm101, %v2123, 0.0
    %2132 = vadd.xlane.f32.xlu0 %v2131
    %v2133 = vpop.xlane.xlu0 %2132
    %v2134 = vsel %vm101, %v2124, 0.0
    %2135 = vadd.xlane.f32.xlu0 %v2134
    %v2136 = vpop.xlane.xlu0 %2135
    %v2137 = vsel %vm101, %v2125, 0.0
    %2138 = vadd.xlane.f32.xlu0 %v2137
    %v2139 = vpop.xlane.xlu0 %2138
    %v2140 = vsel %vm101, %v2126, 0.0
    %2141 = vadd.xlane.f32.xlu0 %v2140
    %v2142 = vpop.xlane.xlu0 %2141
    %v2143 = vsel %vm101, %v2127, 0.0
    %2144 = vadd.xlane.f32.xlu0 %v2143
    %v2145 = vpop.xlane.xlu0 %2144
    %v2146 = vmul.f32 %v2130, %v2109
    %v2147 = vmul.f32 %v2133, %v2109
    %v2148 = vmul.f32 %v2136, %v2109
    %v2149 = vmul.f32 %v2139, %v2109
    %v2150 = vmul.f32 %v2142, %v2109
    %v2151 = vmul.f32 %v2145, %v2109
    %v2152 = vadd.f32 %v2146, 1e-05
    %v2153 = vadd.f32 %v2147, 1e-05
    %v2154 = vadd.f32 %v2148, 1e-05
    %v2155 = vadd.f32 %v2149, 1e-05
    %v2156 = vadd.f32 %v2150, 1e-05
    %v2157 = vadd.f32 %v2151, 1e-05
    %v2158 = vrsqrt.pop %v2152
    %v2159 = vrsqrt.pop %v2153
    %v2160 = vrsqrt.pop %v2154
    %v2161 = vrsqrt.pop %v2155
    %v2162 = vrsqrt.pop %v2156
    %v2163 = vrsqrt.pop %v2157
    %v2164 = vmul.f32 %v2116, %v2158
    %v2165 = vmul.f32 %v2117, %v2159
    %v2166 = vmul.f32 %v2118, %v2160
    %v2167 = vmul.f32 %v2119, %v2161
    %v2168 = vmul.f32 %v2120, %v2162
    %v2169 = vmul.f32 %v2121, %v2163
    %v2170 = vlaneseq
    %v2171 = vshrl.u32 %v2170, 7
    %v2172 = vsub.s32 0, %v2171
    %v2173 = vrot.slane %v93, %v2172
    %v2174 = vmul.f32 %v2164, %v2173
    %v2175 = vmul.f32 %v2165, %v2173
    %v2176 = vmul.f32 %v2166, %v2173
    %v2177 = vmul.f32 %v2167, %v2173
    %v2178 = vmul.f32 %v2168, %v2173
    %v2179 = vmul.f32 %v2169, %v2173
    %v2180 = vlaneseq
    %v2181 = vshrl.u32 %v2180, 7
    %v2182 = vsub.s32 0, %v2181
    %v2183 = vrot.slane %v94, %v2182
    %v2184 = vadd.f32 %v2174, %v2183
    %v2185 = vadd.f32 %v2175, %v2183
    %v2186 = vadd.f32 %v2176, %v2183
    %v2187 = vadd.f32 %v2177, %v2183
    %v2188 = vadd.f32 %v2178, %v2183
    %v2189 = vadd.f32 %v2179, %v2183
    %v2190 = vlaneseq
    %v2191 = vshrl.u32 %v2190, 7
    %v2192 = vsub.s32 0, %v2191
    %v2193 = vrot.slane %v91, %v2192
    %v2195 = vsel %vm101, %v2184, 0
    %v2198 = vsel %vm101, %v2185, 0
    %v2201 = vsel %vm101, %v2186, 0
    %v2204 = vsel %vm101, %v2187, 0
    %v2207 = vsel %vm101, %v2188, 0
    %v2210 = vsel %vm101, %v2189, 0
    %2212 = vmatprep.subr.mxu0 0.0
    %2213 = vmatpush1.msra.mxu0 %v69
    %2214 = vmatprep.subr.mxu0 0.0
    %2215 = vmatpush1.msra.mxu0 %v70
    %2216 = vmatprep.subr.mxu0 0.0
    %2217 = vmatpush1.msra.mxu0 %v71
    %2218 = vmatprep.subr.mxu0 0.0
    %2219 = vmatpush1.msra.mxu0 %v72
    %2220 = vmatprep.subr.mxu0 0.0
    %2221 = vmatpush1.msra.mxu0 0.0
    %2222 = vmatprep.subr.mxu0 0.0
    %2223 = vmatpush1.msra.mxu0 0.0
    %2224 = vmatprep.subr.mxu0 0.0
    %2225 = vmatpush1.msra.mxu0 0.0
    %2226 = vmatprep.subr.mxu0 0.0
    %2227 = vmatpush1.msra.mxu0 0.0
    %2228 = vmatprep.subr.mxu0 0.0
    %2229 = vmatpush1.msra.mxu0 0.0
    %2230 = vmatprep.subr.mxu0 0.0
    %2231 = vmatpush1.msra.mxu0 0.0
    %2232 = vmatprep.subr.mxu0 0.0
    %2233 = vmatpush1.msra.mxu0 0.0
    %2234 = vmatprep.subr.mxu0 0.0
    %2235 = vmatpush1.msra.mxu0 0.0
    %2236 = vmatprep.subr.mxu0 0.0
    %2237 = vmatpush1.msra.mxu0 0.0
    %2238 = vmatprep.subr.mxu0 0.0
    %2239 = vmatpush1.msra.mxu0 0.0
    %2240 = vmatprep.subr.mxu0 0.0
    %2241 = vmatpush1.msra.mxu0 0.0
    %2242 = vmatprep.subr.mxu0 0.0
    %2243 = vmatpush1.msra.mxu0 0.0
    %2244 = vmatprep.subr.mxu0 0.0
    %2245 = vmatpush1.msra.mxu0 0.0
    %2246 = vmatprep.subr.mxu0 0.0
    %2247 = vmatpush1.msra.mxu0 0.0
    %2248 = vmatprep.subr.mxu0 0.0
    %2249 = vmatpush1.msra.mxu0 0.0
    %2250 = vmatprep.subr.mxu0 0.0
    %2251 = vmatpush1.msra.mxu0 0.0
    %2252 = vmatprep.subr.mxu0 0.0
    %2253 = vmatpush1.msra.mxu0 0.0
    %2254 = vmatprep.subr.mxu0 0.0
    %2255 = vmatpush1.msra.mxu0 0.0
    %2256 = vmatprep.subr.mxu0 0.0
    %2257 = vmatpush1.msra.mxu0 0.0
    %2258 = vmatprep.subr.mxu0 0.0
    %2259 = vmatpush1.msra.mxu0 0.0
    %2260 = vmatprep.subr.mxu0 0.0
    %2261 = vmatpush1.msra.mxu0 0.0
    %2262 = vmatprep.subr.mxu0 0.0
    %2263 = vmatpush1.msra.mxu0 0.0
    %2264 = vmatprep.subr.mxu0 0.0
    %2265 = vmatpush1.msra.mxu0 0.0
    %2266 = vmatprep.subr.mxu0 0.0
    %2267 = vmatpush1.msra.mxu0 0.0
    %2268 = vmatprep.subr.mxu0 0.0
    %2269 = vmatpush1.msra.mxu0 0.0
    %2270 = vmatprep.subr.mxu0 0.0
    %2271 = vmatpush1.msra.mxu0 0.0
    %2272 = vmatprep.subr.mxu0 0.0
    %2273 = vmatpush1.msra.mxu0 0.0
    %2274 = vmatprep.subr.mxu0 0.0
    %2275 = vmatpush1.msra.mxu0 0.0
    %2276 = vmatprep.mubr.f32.mxu0 0.0
    %2277 = vmatmul.mubr.f32.gmra.mrb[0].mxu0 %v2195
    %v2278 = vpop.f32.mrb[0].mxu0
    %v2279 = vadd.f32 %v2193, %v2278
    %v2280 = vpop.f32.mrb[0].mxu0
    %2281 = vmatprep.mubr.f32.mxu0 0.0
    %2282 = vmatmul.mubr.f32.gmra.mrb[0].mxu0 %v2198
    %v2283 = vpop.f32.mrb[0].mxu0
    %v2284 = vadd.f32 %v2193, %v2283
    %v2285 = vpop.f32.mrb[0].mxu0
    %2286 = vmatprep.mubr.f32.mxu0 0.0
    %2287 = vmatmul.mubr.f32.gmra.mrb[0].mxu0 %v2201
    %v2288 = vpop.f32.mrb[0].mxu0
    %v2289 = vadd.f32 %v2193, %v2288
    %v2290 = vpop.f32.mrb[0].mxu0
    %2291 = vmatprep.mubr.f32.mxu0 0.0
    %2292 = vmatmul.mubr.f32.gmra.mrb[0].mxu0 %v2204
    %v2293 = vpop.f32.mrb[0].mxu0
    %v2294 = vadd.f32 %v2193, %v2293
    %v2295 = vpop.f32.mrb[0].mxu0
    %2296 = vmatprep.mubr.f32.mxu0 0.0
    %2297 = vmatmul.mubr.f32.gmra.mrb[0].mxu0 %v2207
    %v2298 = vpop.f32.mrb[0].mxu0
    %v2299 = vadd.f32 %v2193, %v2298
    %v2300 = vpop.f32.mrb[0].mxu0
    %2301 = vmatprep.mubr.f32.mxu0 0.0
    %2302 = vmatmul.mubr.f32.gmra.mrb[0].mxu0 %v2210
    %v2303 = vpop.f32.mrb[0].mxu0
    %v2304 = vadd.f32 %v2193, %v2303
    %v2305 = vpop.f32.mrb[0].mxu0
    %2306 = vdwg.mxu0
    %v2307 = vmax.f32 %v2279, 0.0
    %v2308 = vmax.f32 %v2284, 0.0
    %v2309 = vmax.f32 %v2289, 0.0
    %v2310 = vmax.f32 %v2294, 0.0
    %v2311 = vmax.f32 %v2299, 0.0
    %v2312 = vmax.f32 %v2304, 0.0
    %v2313 = vlaneseq
    %v2314 = vshrl.u32 %v2313, 7
    %v2315 = vsub.s32 0, %v2314
    %v2316 = vrot.slane %v92, %v2315
    %2317 = vmatprep.subr.mxu0 0.0
    %2318 = vmatpush1.msra.mxu0 %v73
    %2319 = vmatprep.subr.mxu0 0.0
    %2320 = vmatpush1.msra.mxu0 %v74
    %2321 = vmatprep.subr.mxu0 0.0
    %2322 = vmatpush1.msra.mxu0 %v75
    %2323 = vmatprep.subr.mxu0 0.0
    %2324 = vmatpush1.msra.mxu0 %v76
    %2325 = vmatprep.subr.mxu0 0.0
    %2326 = vmatpush1.msra.mxu0 %v77
    %2327 = vmatprep.subr.mxu0 0.0
    %2328 = vmatpush1.msra.mxu0 %v78
    %2329 = vmatprep.subr.mxu0 0.0
    %2330 = vmatpush1.msra.mxu0 %v79
    %2331 = vmatprep.subr.mxu0 0.0
    %2332 = vmatpush1.msra.mxu0 %v80
    %2333 = vmatprep.subr.mxu0 0.0
    %2334 = vmatpush1.msra.mxu0 %v81
    %2335 = vmatprep.subr.mxu0 0.0
    %2336 = vmatpush1.msra.mxu0 %v82
    %2337 = vmatprep.subr.mxu0 0.0
    %2338 = vmatpush1.msra.mxu0 %v83
    %2339 = vmatprep.subr.mxu0 0.0
    %2340 = vmatpush1.msra.mxu0 %v84
    %2341 = vmatprep.subr.mxu0 0.0
    %2342 = vmatpush1.msra.mxu0 %v85
    %2343 = vmatprep.subr.mxu0 0.0
    %2344 = vmatpush1.msra.mxu0 %v86
    %2345 = vmatprep.subr.mxu0 0.0
    %2346 = vmatpush1.msra.mxu0 %v87
    %2347 = vmatprep.subr.mxu0 0.0
    %2348 = vmatpush1.msra.mxu0 %v88
    %2349 = vmatprep.subr.mxu0 0.0
    %2350 = vmatpush1.msra.mxu0 0.0
    %2351 = vmatprep.subr.mxu0 0.0
    %2352 = vmatpush1.msra.mxu0 0.0
    %2353 = vmatprep.subr.mxu0 0.0
    %2354 = vmatpush1.msra.mxu0 0.0
    %2355 = vmatprep.subr.mxu0 0.0
    %2356 = vmatpush1.msra.mxu0 0.0
    %2357 = vmatprep.subr.mxu0 0.0
    %2358 = vmatpush1.msra.mxu0 0.0
    %2359 = vmatprep.subr.mxu0 0.0
    %2360 = vmatpush1.msra.mxu0 0.0
    %2361 = vmatprep.subr.mxu0 0.0
    %2362 = vmatpush1.msra.mxu0 0.0
    %2363 = vmatprep.subr.mxu0 0.0
    %2364 = vmatpush1.msra.mxu0 0.0
    %2365 = vmatprep.subr.mxu0 0.0
    %2366 = vmatpush1.msra.mxu0 0.0
    %2367 = vmatprep.subr.mxu0 0.0
    %2368 = vmatpush1.msra.mxu0 0.0
    %2369 = vmatprep.subr.mxu0 0.0
    %2370 = vmatpush1.msra.mxu0 0.0
    %2371 = vmatprep.subr.mxu0 0.0
    %2372 = vmatpush1.msra.mxu0 0.0
    %2373 = vmatprep.subr.mxu0 0.0
    %2374 = vmatpush1.msra.mxu0 0.0
    %2375 = vmatprep.subr.mxu0 0.0
    %2376 = vmatpush1.msra.mxu0 0.0
    %2377 = vmatprep.subr.mxu0 0.0
    %2378 = vmatpush1.msra.mxu0 0.0
    %2379 = vmatprep.subr.mxu0 0.0
    %2380 = vmatpush1.msra.mxu0 0.0
    %2381 = vmatprep.mubr.f32.mxu0 0.0
    %2382 = vmatmul.mubr.f32.gmra.mrb[0].mxu0 %v2307
    %v2383 = vpop.f32.mrb[0].mxu0
    %v2384 = vadd.f32 %v2316, %v2383
    %v2385 = vpop.f32.mrb[0].mxu0
    %2386 = vmatprep.mubr.f32.mxu0 0.0
    %2387 = vmatmul.mubr.f32.gmra.mrb[0].mxu0 %v2308
    %v2388 = vpop.f32.mrb[0].mxu0
    %v2389 = vadd.f32 %v2316, %v2388
    %v2390 = vpop.f32.mrb[0].mxu0
    %2391 = vmatprep.mubr.f32.mxu0 0.0
    %2392 = vmatmul.mubr.f32.gmra.mrb[0].mxu0 %v2309
    %v2393 = vpop.f32.mrb[0].mxu0
    %v2394 = vadd.f32 %v2316, %v2393
    %v2395 = vpop.f32.mrb[0].mxu0
    %2396 = vmatprep.mubr.f32.mxu0 0.0
    %2397 = vmatmul.mubr.f32.gmra.mrb[0].mxu0 %v2310
    %v2398 = vpop.f32.mrb[0].mxu0
    %v2399 = vadd.f32 %v2316, %v2398
    %v2400 = vpop.f32.mrb[0].mxu0
    %2401 = vmatprep.mubr.f32.mxu0 0.0
    %2402 = vmatmul.mubr.f32.gmra.mrb[0].mxu0 %v2311
    %v2403 = vpop.f32.mrb[0].mxu0
    %v2404 = vadd.f32 %v2316, %v2403
    %v2405 = vpop.f32.mrb[0].mxu0
    %2406 = vmatprep.mubr.f32.mxu0 0.0
    %2407 = vmatmul.mubr.f32.gmra.mrb[0].mxu0 %v2312
    %v2408 = vpop.f32.mrb[0].mxu0
    %v2409 = vadd.f32 %v2316, %v2408
    %v2410 = vpop.f32.mrb[0].mxu0
    %2411 = vdwg.mxu0
    %v2412 = vadd.f32 %v2184, %v2384
    %v2413 = vadd.f32 %v2185, %v2389
    %v2414 = vadd.f32 %v2186, %v2394
    %v2415 = vadd.f32 %v2187, %v2399
    %v2416 = vadd.f32 %v2188, %v2404
    %v2417 = vadd.f32 %v2189, %v2409
    %v2418 = vsel %vm101, %v2412, 0.0
    %2419 = vadd.xlane.f32.xlu0 %v2418
    %v2420 = vpop.xlane.xlu0 %2419
    %v2421 = vsel %vm101, %v2413, 0.0
    %2422 = vadd.xlane.f32.xlu0 %v2421
    %v2423 = vpop.xlane.xlu0 %2422
    %v2424 = vsel %vm101, %v2414, 0.0
    %2425 = vadd.xlane.f32.xlu0 %v2424
    %v2426 = vpop.xlane.xlu0 %2425
    %v2427 = vsel %vm101, %v2415, 0.0
    %2428 = vadd.xlane.f32.xlu0 %v2427
    %v2429 = vpop.xlane.xlu0 %2428
    %v2430 = vsel %vm101, %v2416, 0.0
    %2431 = vadd.xlane.f32.xlu0 %v2430
    %v2432 = vpop.xlane.xlu0 %2431
    %v2433 = vsel %vm101, %v2417, 0.0
    %2434 = vadd.xlane.f32.xlu0 %v2433
    %v2435 = vpop.xlane.xlu0 %2434
    %v2436 = vmul.f32 %v2420, %v2109
    %v2437 = vmul.f32 %v2423, %v2109
    %v2438 = vmul.f32 %v2426, %v2109
    %v2439 = vmul.f32 %v2429, %v2109
    %v2440 = vmul.f32 %v2432, %v2109
    %v2441 = vmul.f32 %v2435, %v2109
    %v2442 = vsub.f32 %v2412, %v2436
    %v2443 = vsub.f32 %v2413, %v2437
    %v2444 = vsub.f32 %v2414, %v2438
    %v2445 = vsub.f32 %v2415, %v2439
    %v2446 = vsub.f32 %v2416, %v2440
    %v2447 = vsub.f32 %v2417, %v2441
    %v2448 = vmul.f32 %v2442, %v2442
    %v2449 = vmul.f32 %v2443, %v2443
    %v2450 = vmul.f32 %v2444, %v2444
    %v2451 = vmul.f32 %v2445, %v2445
    %v2452 = vmul.f32 %v2446, %v2446
    %v2453 = vmul.f32 %v2447, %v2447
    %v2454 = vsel %vm101, %v2448, 0.0
    %2455 = vadd.xlane.f32.xlu0 %v2454
    %v2456 = vpop.xlane.xlu0 %2455
    %v2457 = vsel %vm101, %v2449, 0.0
    %2458 = vadd.xlane.f32.xlu0 %v2457
    %v2459 = vpop.xlane.xlu0 %2458
    %v2460 = vsel %vm101, %v2450, 0.0
    %2461 = vadd.xlane.f32.xlu0 %v2460
    %v2462 = vpop.xlane.xlu0 %2461
    %v2463 = vsel %vm101, %v2451, 0.0
    %2464 = vadd.xlane.f32.xlu0 %v2463
    %v2465 = vpop.xlane.xlu0 %2464
    %v2466 = vsel %vm101, %v2452, 0.0
    %2467 = vadd.xlane.f32.xlu0 %v2466
    %v2468 = vpop.xlane.xlu0 %2467
    %v2469 = vsel %vm101, %v2453, 0.0
    %2470 = vadd.xlane.f32.xlu0 %v2469
    %v2471 = vpop.xlane.xlu0 %2470
    %v2472 = vmul.f32 %v2456, %v2109
    %v2473 = vmul.f32 %v2459, %v2109
    %v2474 = vmul.f32 %v2462, %v2109
    %v2475 = vmul.f32 %v2465, %v2109
    %v2476 = vmul.f32 %v2468, %v2109
    %v2477 = vmul.f32 %v2471, %v2109
    %v2478 = vadd.f32 %v2472, 1e-05
    %v2479 = vadd.f32 %v2473, 1e-05
    %v2480 = vadd.f32 %v2474, 1e-05
    %v2481 = vadd.f32 %v2475, 1e-05
    %v2482 = vadd.f32 %v2476, 1e-05
    %v2483 = vadd.f32 %v2477, 1e-05
    %v2484 = vrsqrt.pop %v2478
    %v2485 = vrsqrt.pop %v2479
    %v2486 = vrsqrt.pop %v2480
    %v2487 = vrsqrt.pop %v2481
    %v2488 = vrsqrt.pop %v2482
    %v2489 = vrsqrt.pop %v2483
    %v2490 = vmul.f32 %v2442, %v2484
    %v2491 = vmul.f32 %v2443, %v2485
    %v2492 = vmul.f32 %v2444, %v2486
    %v2493 = vmul.f32 %v2445, %v2487
    %v2494 = vmul.f32 %v2446, %v2488
    %v2495 = vmul.f32 %v2447, %v2489
    %v2496 = vlaneseq
    %v2497 = vshrl.u32 %v2496, 7
    %v2498 = vsub.s32 0, %v2497
    %v2499 = vrot.slane %v95, %v2498
    %v2500 = vmul.f32 %v2490, %v2499
    %v2501 = vmul.f32 %v2491, %v2499
    %v2502 = vmul.f32 %v2492, %v2499
    %v2503 = vmul.f32 %v2493, %v2499
    %v2504 = vmul.f32 %v2494, %v2499
    %v2505 = vmul.f32 %v2495, %v2499
    %v2506 = vlaneseq
    %v2507 = vshrl.u32 %v2506, 7
    %v2508 = vsub.s32 0, %v2507
    %v2509 = vrot.slane %v96, %v2508
    %v2510 = vadd.f32 %v2500, %v2509
    %v2511 = vadd.f32 %v2501, %v2509
    %v2512 = vadd.f32 %v2502, %v2509
    %v2513 = vadd.f32 %v2503, %v2509
    %v2514 = vadd.f32 %v2504, %v2509
    %v2515 = vadd.f32 %v2505, %v2509
    %v2516 = vld [vmem:[%s1 + $0x20] sm:$0xff]
    %v2517 = vld [vmem:[%s1 + $0x28] sm:$0xff]
    %v2518 = vld [vmem:[%s1 + $0x30] sm:$0xff]
    %v2519 = vld [vmem:[%s1 + $0x38] sm:$0xff]
    %v2520 = vld [vmem:[%s2 + $0x20] sm:$0xff]
    %v2521 = vld [vmem:[%s2 + $0x28] sm:$0xff]
    %v2522 = vld [vmem:[%s2 + $0x30] sm:$0xff]
    %v2523 = vld [vmem:[%s2 + $0x38] sm:$0xff]
    %v2524 = vld [vmem:[%s3 + $0x20] sm:$0xff]
    %v2525 = vld [vmem:[%s3 + $0x28] sm:$0xff]
    %v2526 = vld [vmem:[%s3 + $0x30] sm:$0xff]
    %v2527 = vld [vmem:[%s3 + $0x38] sm:$0xff]
    %v2528 = vld [vmem:[%s4 + $0x80] sm:$0xff]
    %v2529 = vld [vmem:[%s4 + $0x88] sm:$0xff]
    %v2530 = vld [vmem:[%s4 + $0x90] sm:$0xff]
    %v2531 = vld [vmem:[%s4 + $0x98] sm:$0xff]
    %v2532 = vld [vmem:[%s4 + $0xa0] sm:$0xff]
    %v2533 = vld [vmem:[%s4 + $0xa8] sm:$0xff]
    %v2534 = vld [vmem:[%s4 + $0xb0] sm:$0xff]
    %v2535 = vld [vmem:[%s4 + $0xb8] sm:$0xff]
    %v2536 = vld [vmem:[%s4 + $0xc0] sm:$0xff]
    %v2537 = vld [vmem:[%s4 + $0xc8] sm:$0xff]
    %v2538 = vld [vmem:[%s4 + $0xd0] sm:$0xff]
    %v2539 = vld [vmem:[%s4 + $0xd8] sm:$0xff]
    %v2540 = vld [vmem:[%s4 + $0xe0] sm:$0xff]
    %v2541 = vld [vmem:[%s4 + $0xe8] sm:$0xff]
    %v2542 = vld [vmem:[%s4 + $0xf0] sm:$0xff]
    %v2543 = vld [vmem:[%s4 + $0xf8] sm:$0xff]
    %v2544 = vld [vmem:[%s5 + $0x8] sm:$0x1]
    %v2545 = vld [vmem:[%s5 + $0x9] sm:$0x1]
    %v2546 = vld [vmem:[%s5 + $0xa] sm:$0x1]
    %v2547 = vld [vmem:[%s5 + $0xb] sm:$0x1]
    %v2548 = vld [vmem:[%s5 + $0xc] sm:$0x1]
    %v2549 = vld [vmem:[%s5 + $0xd] sm:$0x1]
    %v2550 = vld [vmem:[%s5 + $0xe] sm:$0x1]
    %v2551 = vld [vmem:[%s5 + $0xf] sm:$0x1]
    %v2552 = vlaneseq
    %v2553 = vshrl.u32 %v2552, 7
    %v2554 = vsub.s32 0, %v2553
    %v2555 = vrot.slane %v2544, %v2554
    %v2557 = vsel %vm101, %v2510, 0
    %v2560 = vsel %vm101, %v2511, 0
    %v2563 = vsel %vm101, %v2512, 0
    %v2566 = vsel %vm101, %v2513, 0
    %v2569 = vsel %vm101, %v2514, 0
    %v2572 = vsel %vm101, %v2515, 0
    %2574 = vmatprep.subr.mxu0 0.0
    %2575 = vmatpush1.msra.mxu0 %v2516
    %2576 = vmatprep.subr.mxu0 0.0
    %2577 = vmatpush1.msra.mxu0 %v2517
    %2578 = vmatprep.subr.mxu0 0.0
    %2579 = vmatpush1.msra.mxu0 %v2518
    %2580 = vmatprep.subr.mxu0 0.0
    %2581 = vmatpush1.msra.mxu0 %v2519
    %2582 = vmatprep.subr.mxu0 0.0
    %2583 = vmatpush1.msra.mxu0 0.0
    %2584 = vmatprep.subr.mxu0 0.0
    %2585 = vmatpush1.msra.mxu0 0.0
    %2586 = vmatprep.subr.mxu0 0.0
    %2587 = vmatpush1.msra.mxu0 0.0
    %2588 = vmatprep.subr.mxu0 0.0
    %2589 = vmatpush1.msra.mxu0 0.0
    %2590 = vmatprep.subr.mxu0 0.0
    %2591 = vmatpush1.msra.mxu0 0.0
    %2592 = vmatprep.subr.mxu0 0.0
    %2593 = vmatpush1.msra.mxu0 0.0
    %2594 = vmatprep.subr.mxu0 0.0
    %2595 = vmatpush1.msra.mxu0 0.0
    %2596 = vmatprep.subr.mxu0 0.0
    %2597 = vmatpush1.msra.mxu0 0.0
    %2598 = vmatprep.subr.mxu0 0.0
    %2599 = vmatpush1.msra.mxu0 0.0
    %2600 = vmatprep.subr.mxu0 0.0
    %2601 = vmatpush1.msra.mxu0 0.0
    %2602 = vmatprep.subr.mxu0 0.0
    %2603 = vmatpush1.msra.mxu0 0.0
    %2604 = vmatprep.subr.mxu0 0.0
    %2605 = vmatpush1.msra.mxu0 0.0
    %2606 = vmatprep.subr.mxu0 0.0
    %2607 = vmatpush1.msra.mxu0 0.0
    %2608 = vmatprep.subr.mxu0 0.0
    %2609 = vmatpush1.msra.mxu0 0.0
    %2610 = vmatprep.subr.mxu0 0.0
    %2611 = vmatpush1.msra.mxu0 0.0
    %2612 = vmatprep.subr.mxu0 0.0
    %2613 = vmatpush1.msra.mxu0 0.0
    %2614 = vmatprep.subr.mxu0 0.0
    %2615 = vmatpush1.msra.mxu0 0.0
    %2616 = vmatprep.subr.mxu0 0.0
    %2617 = vmatpush1.msra.mxu0 0.0
    %2618 = vmatprep.subr.mxu0 0.0
    %2619 = vmatpush1.msra.mxu0 0.0
    %2620 = vmatprep.subr.mxu0 0.0
    %2621 = vmatpush1.msra.mxu0 0.0
    %2622 = vmatprep.subr.mxu0 0.0
    %2623 = vmatpush1.msra.mxu0 0.0
    %2624 = vmatprep.subr.mxu0 0.0
    %2625 = vmatpush1.msra.mxu0 0.0
    %2626 = vmatprep.subr.mxu0 0.0
    %2627 = vmatpush1.msra.mxu0 0.0
    %2628 = vmatprep.subr.mxu0 0.0
    %2629 = vmatpush1.msra.mxu0 0.0
    %2630 = vmatprep.subr.mxu0 0.0
    %2631 = vmatpush1.msra.mxu0 0.0
    %2632 = vmatprep.subr.mxu0 0.0
    %2633 = vmatpush1.msra.mxu0 0.0
    %2634 = vmatprep.subr.mxu0 0.0
    %2635 = vmatpush1.msra.mxu0 0.0
    %2636 = vmatprep.subr.mxu0 0.0
    %2637 = vmatpush1.msra.mxu0 0.0
    %2638 = vmatprep.mubr.f32.mxu0 0.0
    %2639 = vmatmul.mubr.f32.gmra.mrb[0].mxu0 %v2557
    %v2640 = vpop.f32.mrb[0].mxu0
    %v2641 = vadd.f32 %v2555, %v2640
    %v2642 = vpop.f32.mrb[0].mxu0
    %2643 = vmatprep.mubr.f32.mxu0 0.0
    %2644 = vmatmul.mubr.f32.gmra.mrb[0].mxu0 %v2560
    %v2645 = vpop.f32.mrb[0].mxu0
    %v2646 = vadd.f32 %v2555, %v2645
    %v2647 = vpop.f32.mrb[0].mxu0
    %2648 = vmatprep.mubr.f32.mxu0 0.0
    %2649 = vmatmul.mubr.f32.gmra.mrb[0].mxu0 %v2563
    %v2650 = vpop.f32.mrb[0].mxu0
    %v2651 = vadd.f32 %v2555, %v2650
    %v2652 = vpop.f32.mrb[0].mxu0
    %2653 = vmatprep.mubr.f32.mxu0 0.0
    %2654 = vmatmul.mubr.f32.gmra.mrb[0].mxu0 %v2566
    %v2655 = vpop.f32.mrb[0].mxu0
    %v2656 = vadd.f32 %v2555, %v2655
    %v2657 = vpop.f32.mrb[0].mxu0
    %2658 = vmatprep.mubr.f32.mxu0 0.0
    %2659 = vmatmul.mubr.f32.gmra.mrb[0].mxu0 %v2569
    %v2660 = vpop.f32.mrb[0].mxu0
    %v2661 = vadd.f32 %v2555, %v2660
    %v2662 = vpop.f32.mrb[0].mxu0
    %2663 = vmatprep.mubr.f32.mxu0 0.0
    %2664 = vmatmul.mubr.f32.gmra.mrb[0].mxu0 %v2572
    %v2665 = vpop.f32.mrb[0].mxu0
    %v2666 = vadd.f32 %v2555, %v2665
    %v2667 = vpop.f32.mrb[0].mxu0
    %2668 = vdwg.mxu0
    %v2669 = vmul.f32 %v2641, 0.5
    %v2670 = vmul.f32 %v2646, 0.5
    %v2671 = vmul.f32 %v2651, 0.5
    %v2672 = vmul.f32 %v2656, 0.5
    %v2673 = vmul.f32 %v2661, 0.5
    %v2674 = vmul.f32 %v2666, 0.5
    %v2675 = vmul.f32 %v2669, %v36
    %v2676 = vmul.f32 %v2670, %v37
    %v2677 = vmul.f32 %v2671, %v38
    %v2678 = vmul.f32 %v2669, %v39
    %v2679 = vmul.f32 %v2670, %v40
    %v2680 = vmul.f32 %v2671, %v41
    %v2681 = vmul.f32 %v2669, %v42
    %v2682 = vmul.f32 %v2670, %v43
    %v2683 = vmul.f32 %v2671, %v44
    %v2684 = vmul.f32 %v2669, %v45
    %v2685 = vmul.f32 %v2670, %v46
    %v2686 = vmul.f32 %v2671, %v47
    %v2687 = vmul.f32 %v2669, %v48
    %v2688 = vmul.f32 %v2670, %v49
    %v2689 = vmul.f32 %v2671, %v50
    %v2690 = vmul.f32 %v2669, %v51
    %v2691 = vmul.f32 %v2670, %v52
    %v2692 = vmul.f32 %v2671, %v53
    %v2693 = vmul.f32 %v2669, %v54
    %v2694 = vmul.f32 %v2670, %v55
    %v2695 = vmul.f32 %v2671, %v56
    %v2696 = vmul.f32 %v2669, %v57
    %v2697 = vmul.f32 %v2670, %v58
    %v2698 = vmul.f32 %v2671, %v59
    %2702 = vrot.lane.b32.xlu0 %v2641, 96
    %v2703 = vpop.permute.xlu0 %2702
    %2704 = vrot.lane.b32.xlu0 %v2646, 96
    %v2705 = vpop.permute.xlu0 %2704
    %2706 = vrot.lane.b32.xlu0 %v2651, 96
    %v2707 = vpop.permute.xlu0 %2706
    %v2709 = vsel %vm101, %v2675, 0
    %v2712 = vsel %vm101, %v2676, 0
    %v2715 = vsel %vm101, %v2677, 0
    %v2718 = vsel %vm101, %v2678, 0
    %v2721 = vsel %vm101, %v2679, 0
    %v2724 = vsel %vm101, %v2680, 0
    %v2727 = vsel %vm101, %v2681, 0
    %v2730 = vsel %vm101, %v2682, 0
    %v2733 = vsel %vm101, %v2683, 0
    %v2736 = vsel %vm101, %v2684, 0
    %v2739 = vsel %vm101, %v2685, 0
    %v2742 = vsel %vm101, %v2686, 0
    %v2745 = vsel %vm101, %v2687, 0
    %v2748 = vsel %vm101, %v2688, 0
    %v2751 = vsel %vm101, %v2689, 0
    %v2754 = vsel %vm101, %v2690, 0
    %v2757 = vsel %vm101, %v2691, 0
    %v2760 = vsel %vm101, %v2692, 0
    %v2763 = vsel %vm101, %v2693, 0
    %v2766 = vsel %vm101, %v2694, 0
    %v2769 = vsel %vm101, %v2695, 0
    %v2772 = vsel %vm101, %v2696, 0
    %v2775 = vsel %vm101, %v2697, 0
    %v2778 = vsel %vm101, %v2698, 0
    %v2780 = vsel %vm101, %v2703, 0
    %v2782 = vsel %vm101, %v2705, 0
    %v2784 = vsel %vm101, %v2707, 0
    %2786 = vmatprep.subr.mxu0 0.0
    %2787 = vmatpush1.xpose.msra.mxu0 %v2780
    %2788 = vmatprep.subr.mxu0 0.0
    %2789 = vmatpush1.xpose.msra.mxu0 %v2782
    %2790 = vmatprep.subr.mxu0 0.0
    %2791 = vmatpush1.xpose.msra.mxu0 %v2784
    %2792 = vmatprep.subr.mxu0 0.0
    %2793 = vmatpush1.xpose.msra.mxu0 0.0
    %2794 = vmatprep.subr.mxu0 0.0
    %2795 = vmatpush1.xpose.msra.mxu0 0.0
    %2796 = vmatprep.subr.mxu0 0.0
    %2797 = vmatpush1.xpose.msra.mxu0 0.0
    %2798 = vmatprep.subr.mxu0 0.0
    %2799 = vmatpush1.xpose.msra.mxu0 0.0
    %2800 = vmatprep.subr.mxu0 0.0
    %2801 = vmatpush1.xpose.msra.mxu0 0.0
    %2802 = vmatprep.subr.mxu0 0.0
    %2803 = vmatpush1.xpose.msra.mxu0 0.0
    %2804 = vmatprep.subr.mxu0 0.0
    %2805 = vmatpush1.xpose.msra.mxu0 0.0
    %2806 = vmatprep.subr.mxu0 0.0
    %2807 = vmatpush1.xpose.msra.mxu0 0.0
    %2808 = vmatprep.subr.mxu0 0.0
    %2809 = vmatpush1.xpose.msra.mxu0 0.0
    %2810 = vmatprep.subr.mxu0 0.0
    %2811 = vmatpush1.xpose.msra.mxu0 0.0
    %2812 = vmatprep.subr.mxu0 0.0
    %2813 = vmatpush1.xpose.msra.mxu0 0.0
    %2814 = vmatprep.subr.mxu0 0.0
    %2815 = vmatpush1.xpose.msra.mxu0 0.0
    %2816 = vmatprep.subr.mxu0 0.0
    %2817 = vmatpush1.xpose.msra.mxu0 0.0
    %2818 = vmatprep.subr.mxu0 0.0
    %2819 = vmatpush1.xpose.msra.mxu0 0.0
    %2820 = vmatprep.subr.mxu0 0.0
    %2821 = vmatpush1.xpose.msra.mxu0 0.0
    %2822 = vmatprep.subr.mxu0 0.0
    %2823 = vmatpush1.xpose.msra.mxu0 0.0
    %2824 = vmatprep.subr.mxu0 0.0
    %2825 = vmatpush1.xpose.msra.mxu0 0.0
    %2826 = vmatprep.subr.mxu0 0.0
    %2827 = vmatpush1.xpose.msra.mxu0 0.0
    %2828 = vmatprep.subr.mxu0 0.0
    %2829 = vmatpush1.xpose.msra.mxu0 0.0
    %2830 = vmatprep.subr.mxu0 0.0
    %2831 = vmatpush1.xpose.msra.mxu0 0.0
    %2832 = vmatprep.subr.mxu0 0.0
    %2833 = vmatpush1.xpose.msra.mxu0 0.0
    %2834 = vmatprep.subr.mxu0 0.0
    %2835 = vmatpush1.xpose.msra.mxu0 0.0
    %2836 = vmatprep.subr.mxu0 0.0
    %2837 = vmatpush1.xpose.msra.mxu0 0.0
    %2838 = vmatprep.subr.mxu0 0.0
    %2839 = vmatpush1.xpose.msra.mxu0 0.0
    %2840 = vmatprep.subr.mxu0 0.0
    %2841 = vmatpush1.xpose.msra.mxu0 0.0
    %2842 = vmatprep.subr.mxu0 0.0
    %2843 = vmatpush1.xpose.msra.mxu0 0.0
    %2844 = vmatprep.subr.mxu0 0.0
    %2845 = vmatpush1.xpose.msra.mxu0 0.0
    %2846 = vmatprep.subr.mxu0 0.0
    %2847 = vmatpush1.xpose.msra.mxu0 0.0
    %2848 = vmatprep.subr.mxu0 0.0
    %2849 = vmatpush1.xpose.msra.mxu0 0.0
    %2850 = vmatprep.mubr.f32.mxu0 0.0
    %2851 = vmatmul.mubr.f32.gmra.mrb[0].mxu0 %v2709
    %v2852 = vpop.f32.mrb[0].mxu0
    %v2853 = vadd.f32 %v248, %v2852
    %v2854 = vpop.f32.mrb[0].mxu0
    %2855 = vmatprep.mubr.f32.mxu0 0.0
    %2856 = vmatmul.mubr.f32.gmra.mrb[0].mxu0 %v2712
    %v2857 = vpop.f32.mrb[0].mxu0
    %v2858 = vadd.f32 %v248, %v2857
    %v2859 = vpop.f32.mrb[0].mxu0
    %2860 = vmatprep.mubr.f32.mxu0 0.0
    %2861 = vmatmul.mubr.f32.gmra.mrb[0].mxu0 %v2715
    %v2862 = vpop.f32.mrb[0].mxu0
    %v2863 = vadd.f32 %v248, %v2862
    %v2864 = vpop.f32.mrb[0].mxu0
    %2865 = vmatprep.mubr.f32.mxu0 0.0
    %2866 = vmatmul.mubr.f32.gmra.mrb[0].mxu0 %v2718
    %v2867 = vpop.f32.mrb[0].mxu0
    %v2868 = vadd.f32 %v248, %v2867
    %v2869 = vpop.f32.mrb[0].mxu0
    %2870 = vmatprep.mubr.f32.mxu0 0.0
    %2871 = vmatmul.mubr.f32.gmra.mrb[0].mxu0 %v2721
    %v2872 = vpop.f32.mrb[0].mxu0
    %v2873 = vadd.f32 %v248, %v2872
    %v2874 = vpop.f32.mrb[0].mxu0
    %2875 = vmatprep.mubr.f32.mxu0 0.0
    %2876 = vmatmul.mubr.f32.gmra.mrb[0].mxu0 %v2724
    %v2877 = vpop.f32.mrb[0].mxu0
    %v2878 = vadd.f32 %v248, %v2877
    %v2879 = vpop.f32.mrb[0].mxu0
    %2880 = vmatprep.mubr.f32.mxu0 0.0
    %2881 = vmatmul.mubr.f32.gmra.mrb[0].mxu0 %v2727
    %v2882 = vpop.f32.mrb[0].mxu0
    %v2883 = vadd.f32 %v248, %v2882
    %v2884 = vpop.f32.mrb[0].mxu0
    %2885 = vmatprep.mubr.f32.mxu0 0.0
    %2886 = vmatmul.mubr.f32.gmra.mrb[0].mxu0 %v2730
    %v2887 = vpop.f32.mrb[0].mxu0
    %v2888 = vadd.f32 %v248, %v2887
    %v2889 = vpop.f32.mrb[0].mxu0
    %2890 = vmatprep.mubr.f32.mxu0 0.0
    %2891 = vmatmul.mubr.f32.gmra.mrb[0].mxu0 %v2733
    %v2892 = vpop.f32.mrb[0].mxu0
    %v2893 = vadd.f32 %v248, %v2892
    %v2894 = vpop.f32.mrb[0].mxu0
    %2895 = vmatprep.mubr.f32.mxu0 0.0
    %2896 = vmatmul.mubr.f32.gmra.mrb[0].mxu0 %v2736
    %v2897 = vpop.f32.mrb[0].mxu0
    %v2898 = vadd.f32 %v248, %v2897
    %v2899 = vpop.f32.mrb[0].mxu0
    %2900 = vmatprep.mubr.f32.mxu0 0.0
    %2901 = vmatmul.mubr.f32.gmra.mrb[0].mxu0 %v2739
    %v2902 = vpop.f32.mrb[0].mxu0
    %v2903 = vadd.f32 %v248, %v2902
    %v2904 = vpop.f32.mrb[0].mxu0
    %2905 = vmatprep.mubr.f32.mxu0 0.0
    %2906 = vmatmul.mubr.f32.gmra.mrb[0].mxu0 %v2742
    %v2907 = vpop.f32.mrb[0].mxu0
    %v2908 = vadd.f32 %v248, %v2907
    %v2909 = vpop.f32.mrb[0].mxu0
    %2910 = vmatprep.mubr.f32.mxu0 0.0
    %2911 = vmatmul.mubr.f32.gmra.mrb[0].mxu0 %v2745
    %v2912 = vpop.f32.mrb[0].mxu0
    %v2913 = vadd.f32 %v248, %v2912
    %v2914 = vpop.f32.mrb[0].mxu0
    %2915 = vmatprep.mubr.f32.mxu0 0.0
    %2916 = vmatmul.mubr.f32.gmra.mrb[0].mxu0 %v2748
    %v2917 = vpop.f32.mrb[0].mxu0
    %v2918 = vadd.f32 %v248, %v2917
    %v2919 = vpop.f32.mrb[0].mxu0
    %2920 = vmatprep.mubr.f32.mxu0 0.0
    %2921 = vmatmul.mubr.f32.gmra.mrb[0].mxu0 %v2751
    %v2922 = vpop.f32.mrb[0].mxu0
    %v2923 = vadd.f32 %v248, %v2922
    %v2924 = vpop.f32.mrb[0].mxu0
    %2925 = vmatprep.mubr.f32.mxu0 0.0
    %2926 = vmatmul.mubr.f32.gmra.mrb[0].mxu0 %v2754
    %v2927 = vpop.f32.mrb[0].mxu0
    %v2928 = vadd.f32 %v248, %v2927
    %v2929 = vpop.f32.mrb[0].mxu0
    %2930 = vmatprep.mubr.f32.mxu0 0.0
    %2931 = vmatmul.mubr.f32.gmra.mrb[0].mxu0 %v2757
    %v2932 = vpop.f32.mrb[0].mxu0
    %v2933 = vadd.f32 %v248, %v2932
    %v2934 = vpop.f32.mrb[0].mxu0
    %2935 = vmatprep.mubr.f32.mxu0 0.0
    %2936 = vmatmul.mubr.f32.gmra.mrb[0].mxu0 %v2760
    %v2937 = vpop.f32.mrb[0].mxu0
    %v2938 = vadd.f32 %v248, %v2937
    %v2939 = vpop.f32.mrb[0].mxu0
    %2940 = vmatprep.mubr.f32.mxu0 0.0
    %2941 = vmatmul.mubr.f32.gmra.mrb[0].mxu0 %v2763
    %v2942 = vpop.f32.mrb[0].mxu0
    %v2943 = vadd.f32 %v248, %v2942
    %v2944 = vpop.f32.mrb[0].mxu0
    %2945 = vmatprep.mubr.f32.mxu0 0.0
    %2946 = vmatmul.mubr.f32.gmra.mrb[0].mxu0 %v2766
    %v2947 = vpop.f32.mrb[0].mxu0
    %v2948 = vadd.f32 %v248, %v2947
    %v2949 = vpop.f32.mrb[0].mxu0
    %2950 = vmatprep.mubr.f32.mxu0 0.0
    %2951 = vmatmul.mubr.f32.gmra.mrb[0].mxu0 %v2769
    %v2952 = vpop.f32.mrb[0].mxu0
    %v2953 = vadd.f32 %v248, %v2952
    %v2954 = vpop.f32.mrb[0].mxu0
    %2955 = vmatprep.mubr.f32.mxu0 0.0
    %2956 = vmatmul.mubr.f32.gmra.mrb[0].mxu0 %v2772
    %v2957 = vpop.f32.mrb[0].mxu0
    %v2958 = vadd.f32 %v248, %v2957
    %v2959 = vpop.f32.mrb[0].mxu0
    %2960 = vmatprep.mubr.f32.mxu0 0.0
    %2961 = vmatmul.mubr.f32.gmra.mrb[0].mxu0 %v2775
    %v2962 = vpop.f32.mrb[0].mxu0
    %v2963 = vadd.f32 %v248, %v2962
    %v2964 = vpop.f32.mrb[0].mxu0
    %2965 = vmatprep.mubr.f32.mxu0 0.0
    %2966 = vmatmul.mubr.f32.gmra.mrb[0].mxu0 %v2778
    %v2967 = vpop.f32.mrb[0].mxu0
    %v2968 = vadd.f32 %v248, %v2967
    %v2969 = vpop.f32.mrb[0].mxu0
    %2970 = vdwg.mxu0
    %v2971 = vsel %vm521, %v2853, -inf
    %2972 = vmax.xlane.f32.xlu0 %v2971
    %v2973 = vpop.xlane.xlu0 %2972
    %v2974 = vsel %vm521, %v2858, -inf
    %2975 = vmax.xlane.f32.xlu0 %v2974
    %v2976 = vpop.xlane.xlu0 %2975
    %v2977 = vsel %vm521, %v2863, -inf
    %2978 = vmax.xlane.f32.xlu0 %v2977
    %v2979 = vpop.xlane.xlu0 %2978
    %v2980 = vsel %vm521, %v2868, -inf
    %2981 = vmax.xlane.f32.xlu0 %v2980
    %v2982 = vpop.xlane.xlu0 %2981
    %v2983 = vsel %vm521, %v2873, -inf
    %2984 = vmax.xlane.f32.xlu0 %v2983
    %v2985 = vpop.xlane.xlu0 %2984
    %v2986 = vsel %vm521, %v2878, -inf
    %2987 = vmax.xlane.f32.xlu0 %v2986
    %v2988 = vpop.xlane.xlu0 %2987
    %v2989 = vsel %vm521, %v2883, -inf
    %2990 = vmax.xlane.f32.xlu0 %v2989
    %v2991 = vpop.xlane.xlu0 %2990
    %v2992 = vsel %vm521, %v2888, -inf
    %2993 = vmax.xlane.f32.xlu0 %v2992
    %v2994 = vpop.xlane.xlu0 %2993
    %v2995 = vsel %vm521, %v2893, -inf
    %2996 = vmax.xlane.f32.xlu0 %v2995
    %v2997 = vpop.xlane.xlu0 %2996
    %v2998 = vsel %vm521, %v2898, -inf
    %2999 = vmax.xlane.f32.xlu0 %v2998
    %v3000 = vpop.xlane.xlu0 %2999
    %v3001 = vsel %vm521, %v2903, -inf
    %3002 = vmax.xlane.f32.xlu0 %v3001
    %v3003 = vpop.xlane.xlu0 %3002
    %v3004 = vsel %vm521, %v2908, -inf
    %3005 = vmax.xlane.f32.xlu0 %v3004
    %v3006 = vpop.xlane.xlu0 %3005
    %v3007 = vsel %vm521, %v2913, -inf
    %3008 = vmax.xlane.f32.xlu0 %v3007
    %v3009 = vpop.xlane.xlu0 %3008
    %v3010 = vsel %vm521, %v2918, -inf
    %3011 = vmax.xlane.f32.xlu0 %v3010
    %v3012 = vpop.xlane.xlu0 %3011
    %v3013 = vsel %vm521, %v2923, -inf
    %3014 = vmax.xlane.f32.xlu0 %v3013
    %v3015 = vpop.xlane.xlu0 %3014
    %v3016 = vsel %vm521, %v2928, -inf
    %3017 = vmax.xlane.f32.xlu0 %v3016
    %v3018 = vpop.xlane.xlu0 %3017
    %v3019 = vsel %vm521, %v2933, -inf
    %3020 = vmax.xlane.f32.xlu0 %v3019
    %v3021 = vpop.xlane.xlu0 %3020
    %v3022 = vsel %vm521, %v2938, -inf
    %3023 = vmax.xlane.f32.xlu0 %v3022
    %v3024 = vpop.xlane.xlu0 %3023
    %v3025 = vsel %vm521, %v2943, -inf
    %3026 = vmax.xlane.f32.xlu0 %v3025
    %v3027 = vpop.xlane.xlu0 %3026
    %v3028 = vsel %vm521, %v2948, -inf
    %3029 = vmax.xlane.f32.xlu0 %v3028
    %v3030 = vpop.xlane.xlu0 %3029
    %v3031 = vsel %vm521, %v2953, -inf
    %3032 = vmax.xlane.f32.xlu0 %v3031
    %v3033 = vpop.xlane.xlu0 %3032
    %v3034 = vsel %vm521, %v2958, -inf
    %3035 = vmax.xlane.f32.xlu0 %v3034
    %v3036 = vpop.xlane.xlu0 %3035
    %v3037 = vsel %vm521, %v2963, -inf
    %3038 = vmax.xlane.f32.xlu0 %v3037
    %v3039 = vpop.xlane.xlu0 %3038
    %v3040 = vsel %vm521, %v2968, -inf
    %3041 = vmax.xlane.f32.xlu0 %v3040
    %v3042 = vpop.xlane.xlu0 %3041
    %v3043 = vsub.f32 %v2853, %v2973
    %v3044 = vsub.f32 %v2858, %v2976
    %v3045 = vsub.f32 %v2863, %v2979
    %v3046 = vsub.f32 %v2868, %v2982
    %v3047 = vsub.f32 %v2873, %v2985
    %v3048 = vsub.f32 %v2878, %v2988
    %v3049 = vsub.f32 %v2883, %v2991
    %v3050 = vsub.f32 %v2888, %v2994
    %v3051 = vsub.f32 %v2893, %v2997
    %v3052 = vsub.f32 %v2898, %v3000
    %v3053 = vsub.f32 %v2903, %v3003
    %v3054 = vsub.f32 %v2908, %v3006
    %v3055 = vsub.f32 %v2913, %v3009
    %v3056 = vsub.f32 %v2918, %v3012
    %v3057 = vsub.f32 %v2923, %v3015
    %v3058 = vsub.f32 %v2928, %v3018
    %v3059 = vsub.f32 %v2933, %v3021
    %v3060 = vsub.f32 %v2938, %v3024
    %v3061 = vsub.f32 %v2943, %v3027
    %v3062 = vsub.f32 %v2948, %v3030
    %v3063 = vsub.f32 %v2953, %v3033
    %v3064 = vsub.f32 %v2958, %v3036
    %v3065 = vsub.f32 %v2963, %v3039
    %v3066 = vsub.f32 %v2968, %v3042
    %v3067 = vmul.f32 %v3043, 1.442695
    %v3068 = vpow.pop %v3067
    %v3069 = vmul.f32 %v3044, 1.442695
    %v3070 = vpow.pop %v3069
    %v3071 = vmul.f32 %v3045, 1.442695
    %v3072 = vpow.pop %v3071
    %v3073 = vmul.f32 %v3046, 1.442695
    %v3074 = vpow.pop %v3073
    %v3075 = vmul.f32 %v3047, 1.442695
    %v3076 = vpow.pop %v3075
    %v3077 = vmul.f32 %v3048, 1.442695
    %v3078 = vpow.pop %v3077
    %v3079 = vmul.f32 %v3049, 1.442695
    %v3080 = vpow.pop %v3079
    %v3081 = vmul.f32 %v3050, 1.442695
    %v3082 = vpow.pop %v3081
    %v3083 = vmul.f32 %v3051, 1.442695
    %v3084 = vpow.pop %v3083
    %v3085 = vmul.f32 %v3052, 1.442695
    %v3086 = vpow.pop %v3085
    %v3087 = vmul.f32 %v3053, 1.442695
    %v3088 = vpow.pop %v3087
    %v3089 = vmul.f32 %v3054, 1.442695
    %v3090 = vpow.pop %v3089
    %v3091 = vmul.f32 %v3055, 1.442695
    %v3092 = vpow.pop %v3091
    %v3093 = vmul.f32 %v3056, 1.442695
    %v3094 = vpow.pop %v3093
    %v3095 = vmul.f32 %v3057, 1.442695
    %v3096 = vpow.pop %v3095
    %v3097 = vmul.f32 %v3058, 1.442695
    %v3098 = vpow.pop %v3097
    %v3099 = vmul.f32 %v3059, 1.442695
    %v3100 = vpow.pop %v3099
    %v3101 = vmul.f32 %v3060, 1.442695
    %v3102 = vpow.pop %v3101
    %v3103 = vmul.f32 %v3061, 1.442695
    %v3104 = vpow.pop %v3103
    %v3105 = vmul.f32 %v3062, 1.442695
    %v3106 = vpow.pop %v3105
    %v3107 = vmul.f32 %v3063, 1.442695
    %v3108 = vpow.pop %v3107
    %v3109 = vmul.f32 %v3064, 1.442695
    %v3110 = vpow.pop %v3109
    %v3111 = vmul.f32 %v3065, 1.442695
    %v3112 = vpow.pop %v3111
    %v3113 = vmul.f32 %v3066, 1.442695
    %v3114 = vpow.pop %v3113
    %v3115 = vsel %vm521, %v3068, 0.0
    %3116 = vadd.xlane.f32.xlu0 %v3115
    %v3117 = vpop.xlane.xlu0 %3116
    %v3118 = vsel %vm521, %v3070, 0.0
    %3119 = vadd.xlane.f32.xlu0 %v3118
    %v3120 = vpop.xlane.xlu0 %3119
    %v3121 = vsel %vm521, %v3072, 0.0
    %3122 = vadd.xlane.f32.xlu0 %v3121
    %v3123 = vpop.xlane.xlu0 %3122
    %v3124 = vsel %vm521, %v3074, 0.0
    %3125 = vadd.xlane.f32.xlu0 %v3124
    %v3126 = vpop.xlane.xlu0 %3125
    %v3127 = vsel %vm521, %v3076, 0.0
    %3128 = vadd.xlane.f32.xlu0 %v3127
    %v3129 = vpop.xlane.xlu0 %3128
    %v3130 = vsel %vm521, %v3078, 0.0
    %3131 = vadd.xlane.f32.xlu0 %v3130
    %v3132 = vpop.xlane.xlu0 %3131
    %v3133 = vsel %vm521, %v3080, 0.0
    %3134 = vadd.xlane.f32.xlu0 %v3133
    %v3135 = vpop.xlane.xlu0 %3134
    %v3136 = vsel %vm521, %v3082, 0.0
    %3137 = vadd.xlane.f32.xlu0 %v3136
    %v3138 = vpop.xlane.xlu0 %3137
    %v3139 = vsel %vm521, %v3084, 0.0
    %3140 = vadd.xlane.f32.xlu0 %v3139
    %v3141 = vpop.xlane.xlu0 %3140
    %v3142 = vsel %vm521, %v3086, 0.0
    %3143 = vadd.xlane.f32.xlu0 %v3142
    %v3144 = vpop.xlane.xlu0 %3143
    %v3145 = vsel %vm521, %v3088, 0.0
    %3146 = vadd.xlane.f32.xlu0 %v3145
    %v3147 = vpop.xlane.xlu0 %3146
    %v3148 = vsel %vm521, %v3090, 0.0
    %3149 = vadd.xlane.f32.xlu0 %v3148
    %v3150 = vpop.xlane.xlu0 %3149
    %v3151 = vsel %vm521, %v3092, 0.0
    %3152 = vadd.xlane.f32.xlu0 %v3151
    %v3153 = vpop.xlane.xlu0 %3152
    %v3154 = vsel %vm521, %v3094, 0.0
    %3155 = vadd.xlane.f32.xlu0 %v3154
    %v3156 = vpop.xlane.xlu0 %3155
    %v3157 = vsel %vm521, %v3096, 0.0
    %3158 = vadd.xlane.f32.xlu0 %v3157
    %v3159 = vpop.xlane.xlu0 %3158
    %v3160 = vsel %vm521, %v3098, 0.0
    %3161 = vadd.xlane.f32.xlu0 %v3160
    %v3162 = vpop.xlane.xlu0 %3161
    %v3163 = vsel %vm521, %v3100, 0.0
    %3164 = vadd.xlane.f32.xlu0 %v3163
    %v3165 = vpop.xlane.xlu0 %3164
    %v3166 = vsel %vm521, %v3102, 0.0
    %3167 = vadd.xlane.f32.xlu0 %v3166
    %v3168 = vpop.xlane.xlu0 %3167
    %v3169 = vsel %vm521, %v3104, 0.0
    %3170 = vadd.xlane.f32.xlu0 %v3169
    %v3171 = vpop.xlane.xlu0 %3170
    %v3172 = vsel %vm521, %v3106, 0.0
    %3173 = vadd.xlane.f32.xlu0 %v3172
    %v3174 = vpop.xlane.xlu0 %3173
    %v3175 = vsel %vm521, %v3108, 0.0
    %3176 = vadd.xlane.f32.xlu0 %v3175
    %v3177 = vpop.xlane.xlu0 %3176
    %v3178 = vsel %vm521, %v3110, 0.0
    %3179 = vadd.xlane.f32.xlu0 %v3178
    %v3180 = vpop.xlane.xlu0 %3179
    %v3181 = vsel %vm521, %v3112, 0.0
    %3182 = vadd.xlane.f32.xlu0 %v3181
    %v3183 = vpop.xlane.xlu0 %3182
    %v3184 = vsel %vm521, %v3114, 0.0
    %3185 = vadd.xlane.f32.xlu0 %v3184
    %v3186 = vpop.xlane.xlu0 %3185
    %v3187 = vrcp.pop %v3117
    %v3188 = vrcp.pop %v3120
    %v3189 = vrcp.pop %v3123
    %v3190 = vrcp.pop %v3126
    %v3191 = vrcp.pop %v3129
    %v3192 = vrcp.pop %v3132
    %v3193 = vrcp.pop %v3135
    %v3194 = vrcp.pop %v3138
    %v3195 = vrcp.pop %v3141
    %v3196 = vrcp.pop %v3144
    %v3197 = vrcp.pop %v3147
    %v3198 = vrcp.pop %v3150
    %v3199 = vrcp.pop %v3153
    %v3200 = vrcp.pop %v3156
    %v3201 = vrcp.pop %v3159
    %v3202 = vrcp.pop %v3162
    %v3203 = vrcp.pop %v3165
    %v3204 = vrcp.pop %v3168
    %v3205 = vrcp.pop %v3171
    %v3206 = vrcp.pop %v3174
    %v3207 = vrcp.pop %v3177
    %v3208 = vrcp.pop %v3180
    %v3209 = vrcp.pop %v3183
    %v3210 = vrcp.pop %v3186
    %v3211 = vmul.f32 %v3068, %v3187
    %v3212 = vmul.f32 %v3070, %v3188
    %v3213 = vmul.f32 %v3072, %v3189
    %v3214 = vmul.f32 %v3074, %v3190
    %v3215 = vmul.f32 %v3076, %v3191
    %v3216 = vmul.f32 %v3078, %v3192
    %v3217 = vmul.f32 %v3080, %v3193
    %v3218 = vmul.f32 %v3082, %v3194
    %v3219 = vmul.f32 %v3084, %v3195
    %v3220 = vmul.f32 %v3086, %v3196
    %v3221 = vmul.f32 %v3088, %v3197
    %v3222 = vmul.f32 %v3090, %v3198
    %v3223 = vmul.f32 %v3092, %v3199
    %v3224 = vmul.f32 %v3094, %v3200
    %v3225 = vmul.f32 %v3096, %v3201
    %v3226 = vmul.f32 %v3098, %v3202
    %v3227 = vmul.f32 %v3100, %v3203
    %v3228 = vmul.f32 %v3102, %v3204
    %v3229 = vmul.f32 %v3104, %v3205
    %v3230 = vmul.f32 %v3106, %v3206
    %v3231 = vmul.f32 %v3108, %v3207
    %v3232 = vmul.f32 %v3110, %v3208
    %v3233 = vmul.f32 %v3112, %v3209
    %v3234 = vmul.f32 %v3114, %v3210
    %3235 = vrot.lane.b32.xlu0 %v2641, 64
    %v3236 = vpop.permute.xlu0 %3235
    %3237 = vrot.lane.b32.xlu0 %v2646, 64
    %v3238 = vpop.permute.xlu0 %3237
    %3239 = vrot.lane.b32.xlu0 %v2651, 64
    %v3240 = vpop.permute.xlu0 %3239
    %v3245 = vsel %vm521, %v3211, 0
    %v3248 = vsel %vm521, %v3212, 0
    %v3251 = vsel %vm521, %v3213, 0
    %v3254 = vsel %vm521, %v3214, 0
    %v3257 = vsel %vm521, %v3215, 0
    %v3260 = vsel %vm521, %v3216, 0
    %v3263 = vsel %vm521, %v3217, 0
    %v3266 = vsel %vm521, %v3218, 0
    %v3269 = vsel %vm521, %v3219, 0
    %v3272 = vsel %vm521, %v3220, 0
    %v3275 = vsel %vm521, %v3221, 0
    %v3278 = vsel %vm521, %v3222, 0
    %v3281 = vsel %vm521, %v3223, 0
    %v3284 = vsel %vm521, %v3224, 0
    %v3287 = vsel %vm521, %v3225, 0
    %v3290 = vsel %vm521, %v3226, 0
    %v3293 = vsel %vm521, %v3227, 0
    %v3296 = vsel %vm521, %v3228, 0
    %v3299 = vsel %vm521, %v3229, 0
    %v3302 = vsel %vm521, %v3230, 0
    %v3305 = vsel %vm521, %v3231, 0
    %v3308 = vsel %vm521, %v3232, 0
    %v3311 = vsel %vm521, %v3233, 0
    %v3314 = vsel %vm521, %v3234, 0
    %3316 = vmatprep.subr.mxu0 0.0
    %3317 = vmatpush1.msra.mxu0 %v3236
    %3318 = vmatprep.subr.mxu0 0.0
    %3319 = vmatpush1.msra.mxu0 %v3238
    %3320 = vmatprep.subr.mxu0 0.0
    %3321 = vmatpush1.msra.mxu0 %v3240
    %3322 = vmatprep.subr.mxu0 0.0
    %3323 = vmatpush1.msra.mxu0 0.0
    %3324 = vmatprep.subr.mxu0 0.0
    %3325 = vmatpush1.msra.mxu0 0.0
    %3326 = vmatprep.subr.mxu0 0.0
    %3327 = vmatpush1.msra.mxu0 0.0
    %3328 = vmatprep.subr.mxu0 0.0
    %3329 = vmatpush1.msra.mxu0 0.0
    %3330 = vmatprep.subr.mxu0 0.0
    %3331 = vmatpush1.msra.mxu0 0.0
    %3332 = vmatprep.subr.mxu0 0.0
    %3333 = vmatpush1.msra.mxu0 0.0
    %3334 = vmatprep.subr.mxu0 0.0
    %3335 = vmatpush1.msra.mxu0 0.0
    %3336 = vmatprep.subr.mxu0 0.0
    %3337 = vmatpush1.msra.mxu0 0.0
    %3338 = vmatprep.subr.mxu0 0.0
    %3339 = vmatpush1.msra.mxu0 0.0
    %3340 = vmatprep.subr.mxu0 0.0
    %3341 = vmatpush1.msra.mxu0 0.0
    %3342 = vmatprep.subr.mxu0 0.0
    %3343 = vmatpush1.msra.mxu0 0.0
    %3344 = vmatprep.subr.mxu0 0.0
    %3345 = vmatpush1.msra.mxu0 0.0
    %3346 = vmatprep.subr.mxu0 0.0
    %3347 = vmatpush1.msra.mxu0 0.0
    %3348 = vmatprep.subr.mxu0 0.0
    %3349 = vmatpush1.msra.mxu0 0.0
    %3350 = vmatprep.subr.mxu0 0.0
    %3351 = vmatpush1.msra.mxu0 0.0
    %3352 = vmatprep.subr.mxu0 0.0
    %3353 = vmatpush1.msra.mxu0 0.0
    %3354 = vmatprep.subr.mxu0 0.0
    %3355 = vmatpush1.msra.mxu0 0.0
    %3356 = vmatprep.subr.mxu0 0.0
    %3357 = vmatpush1.msra.mxu0 0.0
    %3358 = vmatprep.subr.mxu0 0.0
    %3359 = vmatpush1.msra.mxu0 0.0
    %3360 = vmatprep.subr.mxu0 0.0
    %3361 = vmatpush1.msra.mxu0 0.0
    %3362 = vmatprep.subr.mxu0 0.0
    %3363 = vmatpush1.msra.mxu0 0.0
    %3364 = vmatprep.subr.mxu0 0.0
    %3365 = vmatpush1.msra.mxu0 0.0
    %3366 = vmatprep.subr.mxu0 0.0
    %3367 = vmatpush1.msra.mxu0 0.0
    %3368 = vmatprep.subr.mxu0 0.0
    %3369 = vmatpush1.msra.mxu0 0.0
    %3370 = vmatprep.subr.mxu0 0.0
    %3371 = vmatpush1.msra.mxu0 0.0
    %3372 = vmatprep.subr.mxu0 0.0
    %3373 = vmatpush1.msra.mxu0 0.0
    %3374 = vmatprep.subr.mxu0 0.0
    %3375 = vmatpush1.msra.mxu0 0.0
    %3376 = vmatprep.subr.mxu0 0.0
    %3377 = vmatpush1.msra.mxu0 0.0
    %3378 = vmatprep.subr.mxu0 0.0
    %3379 = vmatpush1.msra.mxu0 0.0
    %3380 = vmatprep.mubr.f32.mxu0 0.0
    %3381 = vmatmul.mubr.f32.gmra.mrb[0].mxu0 %v3245
    %v3382 = vpop.f32.mrb[0].mxu0
    %v3383 = vadd.f32 0.0, %v3382
    %v3384 = vpop.f32.mrb[0].mxu0
    %3385 = vmatprep.mubr.f32.mxu0 0.0
    %3386 = vmatmul.mubr.f32.gmra.mrb[0].mxu0 %v3248
    %v3387 = vpop.f32.mrb[0].mxu0
    %v3388 = vadd.f32 0.0, %v3387
    %v3389 = vpop.f32.mrb[0].mxu0
    %3390 = vmatprep.mubr.f32.mxu0 0.0
    %3391 = vmatmul.mubr.f32.gmra.mrb[0].mxu0 %v3251
    %v3392 = vpop.f32.mrb[0].mxu0
    %v3393 = vadd.f32 0.0, %v3392
    %v3394 = vpop.f32.mrb[0].mxu0
    %3395 = vmatprep.mubr.f32.mxu0 0.0
    %3396 = vmatmul.mubr.f32.gmra.mrb[0].mxu0 %v3254
    %v3397 = vpop.f32.mrb[0].mxu0
    %v3398 = vadd.f32 0.0, %v3397
    %v3399 = vpop.f32.mrb[0].mxu0
    %3400 = vmatprep.mubr.f32.mxu0 0.0
    %3401 = vmatmul.mubr.f32.gmra.mrb[0].mxu0 %v3257
    %v3402 = vpop.f32.mrb[0].mxu0
    %v3403 = vadd.f32 0.0, %v3402
    %v3404 = vpop.f32.mrb[0].mxu0
    %3405 = vmatprep.mubr.f32.mxu0 0.0
    %3406 = vmatmul.mubr.f32.gmra.mrb[0].mxu0 %v3260
    %v3407 = vpop.f32.mrb[0].mxu0
    %v3408 = vadd.f32 0.0, %v3407
    %v3409 = vpop.f32.mrb[0].mxu0
    %3410 = vmatprep.mubr.f32.mxu0 0.0
    %3411 = vmatmul.mubr.f32.gmra.mrb[0].mxu0 %v3263
    %v3412 = vpop.f32.mrb[0].mxu0
    %v3413 = vadd.f32 0.0, %v3412
    %v3414 = vpop.f32.mrb[0].mxu0
    %3415 = vmatprep.mubr.f32.mxu0 0.0
    %3416 = vmatmul.mubr.f32.gmra.mrb[0].mxu0 %v3266
    %v3417 = vpop.f32.mrb[0].mxu0
    %v3418 = vadd.f32 0.0, %v3417
    %v3419 = vpop.f32.mrb[0].mxu0
    %3420 = vmatprep.mubr.f32.mxu0 0.0
    %3421 = vmatmul.mubr.f32.gmra.mrb[0].mxu0 %v3269
    %v3422 = vpop.f32.mrb[0].mxu0
    %v3423 = vadd.f32 0.0, %v3422
    %v3424 = vpop.f32.mrb[0].mxu0
    %3425 = vmatprep.mubr.f32.mxu0 0.0
    %3426 = vmatmul.mubr.f32.gmra.mrb[0].mxu0 %v3272
    %v3427 = vpop.f32.mrb[0].mxu0
    %v3428 = vadd.f32 0.0, %v3427
    %v3429 = vpop.f32.mrb[0].mxu0
    %3430 = vmatprep.mubr.f32.mxu0 0.0
    %3431 = vmatmul.mubr.f32.gmra.mrb[0].mxu0 %v3275
    %v3432 = vpop.f32.mrb[0].mxu0
    %v3433 = vadd.f32 0.0, %v3432
    %v3434 = vpop.f32.mrb[0].mxu0
    %3435 = vmatprep.mubr.f32.mxu0 0.0
    %3436 = vmatmul.mubr.f32.gmra.mrb[0].mxu0 %v3278
    %v3437 = vpop.f32.mrb[0].mxu0
    %v3438 = vadd.f32 0.0, %v3437
    %v3439 = vpop.f32.mrb[0].mxu0
    %3440 = vmatprep.mubr.f32.mxu0 0.0
    %3441 = vmatmul.mubr.f32.gmra.mrb[0].mxu0 %v3281
    %v3442 = vpop.f32.mrb[0].mxu0
    %v3443 = vadd.f32 0.0, %v3442
    %v3444 = vpop.f32.mrb[0].mxu0
    %3445 = vmatprep.mubr.f32.mxu0 0.0
    %3446 = vmatmul.mubr.f32.gmra.mrb[0].mxu0 %v3284
    %v3447 = vpop.f32.mrb[0].mxu0
    %v3448 = vadd.f32 0.0, %v3447
    %v3449 = vpop.f32.mrb[0].mxu0
    %3450 = vmatprep.mubr.f32.mxu0 0.0
    %3451 = vmatmul.mubr.f32.gmra.mrb[0].mxu0 %v3287
    %v3452 = vpop.f32.mrb[0].mxu0
    %v3453 = vadd.f32 0.0, %v3452
    %v3454 = vpop.f32.mrb[0].mxu0
    %3455 = vmatprep.mubr.f32.mxu0 0.0
    %3456 = vmatmul.mubr.f32.gmra.mrb[0].mxu0 %v3290
    %v3457 = vpop.f32.mrb[0].mxu0
    %v3458 = vadd.f32 0.0, %v3457
    %v3459 = vpop.f32.mrb[0].mxu0
    %3460 = vmatprep.mubr.f32.mxu0 0.0
    %3461 = vmatmul.mubr.f32.gmra.mrb[0].mxu0 %v3293
    %v3462 = vpop.f32.mrb[0].mxu0
    %v3463 = vadd.f32 0.0, %v3462
    %v3464 = vpop.f32.mrb[0].mxu0
    %3465 = vmatprep.mubr.f32.mxu0 0.0
    %3466 = vmatmul.mubr.f32.gmra.mrb[0].mxu0 %v3296
    %v3467 = vpop.f32.mrb[0].mxu0
    %v3468 = vadd.f32 0.0, %v3467
    %v3469 = vpop.f32.mrb[0].mxu0
    %3470 = vmatprep.mubr.f32.mxu0 0.0
    %3471 = vmatmul.mubr.f32.gmra.mrb[0].mxu0 %v3299
    %v3472 = vpop.f32.mrb[0].mxu0
    %v3473 = vadd.f32 0.0, %v3472
    %v3474 = vpop.f32.mrb[0].mxu0
    %3475 = vmatprep.mubr.f32.mxu0 0.0
    %3476 = vmatmul.mubr.f32.gmra.mrb[0].mxu0 %v3302
    %v3477 = vpop.f32.mrb[0].mxu0
    %v3478 = vadd.f32 0.0, %v3477
    %v3479 = vpop.f32.mrb[0].mxu0
    %3480 = vmatprep.mubr.f32.mxu0 0.0
    %3481 = vmatmul.mubr.f32.gmra.mrb[0].mxu0 %v3305
    %v3482 = vpop.f32.mrb[0].mxu0
    %v3483 = vadd.f32 0.0, %v3482
    %v3484 = vpop.f32.mrb[0].mxu0
    %3485 = vmatprep.mubr.f32.mxu0 0.0
    %3486 = vmatmul.mubr.f32.gmra.mrb[0].mxu0 %v3308
    %v3487 = vpop.f32.mrb[0].mxu0
    %v3488 = vadd.f32 0.0, %v3487
    %v3489 = vpop.f32.mrb[0].mxu0
    %3490 = vmatprep.mubr.f32.mxu0 0.0
    %3491 = vmatmul.mubr.f32.gmra.mrb[0].mxu0 %v3311
    %v3492 = vpop.f32.mrb[0].mxu0
    %v3493 = vadd.f32 0.0, %v3492
    %v3494 = vpop.f32.mrb[0].mxu0
    %3495 = vmatprep.mubr.f32.mxu0 0.0
    %3496 = vmatmul.mubr.f32.gmra.mrb[0].mxu0 %v3314
    %v3497 = vpop.f32.mrb[0].mxu0
    %v3498 = vadd.f32 0.0, %v3497
    %v3499 = vpop.f32.mrb[0].mxu0
    %3500 = vdwg.mxu0
    %v3501 = vmul.f32 %v3383, %v36
    %v3502 = vmul.f32 %v3388, %v37
    %v3503 = vmul.f32 %v3393, %v38
    %v3504 = vmul.f32 %v3398, %v39
    %v3505 = vmul.f32 %v3403, %v40
    %v3506 = vmul.f32 %v3408, %v41
    %v3507 = vmul.f32 %v3413, %v42
    %v3508 = vmul.f32 %v3418, %v43
    %v3509 = vmul.f32 %v3423, %v44
    %v3510 = vmul.f32 %v3428, %v45
    %v3511 = vmul.f32 %v3433, %v46
    %v3512 = vmul.f32 %v3438, %v47
    %v3513 = vmul.f32 %v3443, %v48
    %v3514 = vmul.f32 %v3448, %v49
    %v3515 = vmul.f32 %v3453, %v50
    %v3516 = vmul.f32 %v3458, %v51
    %v3517 = vmul.f32 %v3463, %v52
    %v3518 = vmul.f32 %v3468, %v53
    %v3519 = vmul.f32 %v3473, %v54
    %v3520 = vmul.f32 %v3478, %v55
    %v3521 = vmul.f32 %v3483, %v56
    %v3522 = vmul.f32 %v3488, %v57
    %v3523 = vmul.f32 %v3493, %v58
    %v3524 = vmul.f32 %v3498, %v59
    %v3525 = vadd.f32 %v3501, %v3504
    %v3526 = vadd.f32 %v3502, %v3505
    %v3527 = vadd.f32 %v3503, %v3506
    %v3528 = vadd.f32 %v3525, %v3507
    %v3529 = vadd.f32 %v3526, %v3508
    %v3530 = vadd.f32 %v3527, %v3509
    %v3531 = vadd.f32 %v3528, %v3510
    %v3532 = vadd.f32 %v3529, %v3511
    %v3533 = vadd.f32 %v3530, %v3512
    %v3534 = vadd.f32 %v3531, %v3513
    %v3535 = vadd.f32 %v3532, %v3514
    %v3536 = vadd.f32 %v3533, %v3515
    %v3537 = vadd.f32 %v3534, %v3516
    %v3538 = vadd.f32 %v3535, %v3517
    %v3539 = vadd.f32 %v3536, %v3518
    %v3540 = vadd.f32 %v3537, %v3519
    %v3541 = vadd.f32 %v3538, %v3520
    %v3542 = vadd.f32 %v3539, %v3521
    %v3543 = vadd.f32 %v3540, %v3522
    %v3544 = vadd.f32 %v3541, %v3523
    %v3545 = vadd.f32 %v3542, %v3524
    %v3546 = vmul.f32 %v2672, %v36
    %v3547 = vmul.f32 %v2673, %v37
    %v3548 = vmul.f32 %v2674, %v38
    %v3549 = vmul.f32 %v2672, %v39
    %v3550 = vmul.f32 %v2673, %v40
    %v3551 = vmul.f32 %v2674, %v41
    %v3552 = vmul.f32 %v2672, %v42
    %v3553 = vmul.f32 %v2673, %v43
    %v3554 = vmul.f32 %v2674, %v44
    %v3555 = vmul.f32 %v2672, %v45
    %v3556 = vmul.f32 %v2673, %v46
    %v3557 = vmul.f32 %v2674, %v47
    %v3558 = vmul.f32 %v2672, %v48
    %v3559 = vmul.f32 %v2673, %v49
    %v3560 = vmul.f32 %v2674, %v50
    %v3561 = vmul.f32 %v2672, %v51
    %v3562 = vmul.f32 %v2673, %v52
    %v3563 = vmul.f32 %v2674, %v53
    %v3564 = vmul.f32 %v2672, %v54
    %v3565 = vmul.f32 %v2673, %v55
    %v3566 = vmul.f32 %v2674, %v56
    %v3567 = vmul.f32 %v2672, %v57
    %v3568 = vmul.f32 %v2673, %v58
    %v3569 = vmul.f32 %v2674, %v59
    %3573 = vrot.lane.b32.xlu0 %v2656, 96
    %v3574 = vpop.permute.xlu0 %3573
    %3575 = vrot.lane.b32.xlu0 %v2661, 96
    %v3576 = vpop.permute.xlu0 %3575
    %3577 = vrot.lane.b32.xlu0 %v2666, 96
    %v3578 = vpop.permute.xlu0 %3577
    %v3580 = vsel %vm101, %v3546, 0
    %v3583 = vsel %vm101, %v3547, 0
    %v3586 = vsel %vm101, %v3548, 0
    %v3589 = vsel %vm101, %v3549, 0
    %v3592 = vsel %vm101, %v3550, 0
    %v3595 = vsel %vm101, %v3551, 0
    %v3598 = vsel %vm101, %v3552, 0
    %v3601 = vsel %vm101, %v3553, 0
    %v3604 = vsel %vm101, %v3554, 0
    %v3607 = vsel %vm101, %v3555, 0
    %v3610 = vsel %vm101, %v3556, 0
    %v3613 = vsel %vm101, %v3557, 0
    %v3616 = vsel %vm101, %v3558, 0
    %v3619 = vsel %vm101, %v3559, 0
    %v3622 = vsel %vm101, %v3560, 0
    %v3625 = vsel %vm101, %v3561, 0
    %v3628 = vsel %vm101, %v3562, 0
    %v3631 = vsel %vm101, %v3563, 0
    %v3634 = vsel %vm101, %v3564, 0
    %v3637 = vsel %vm101, %v3565, 0
    %v3640 = vsel %vm101, %v3566, 0
    %v3643 = vsel %vm101, %v3567, 0
    %v3646 = vsel %vm101, %v3568, 0
    %v3649 = vsel %vm101, %v3569, 0
    %v3651 = vsel %vm101, %v3574, 0
    %v3653 = vsel %vm101, %v3576, 0
    %v3655 = vsel %vm101, %v3578, 0
    %3657 = vmatprep.subr.mxu0 0.0
    %3658 = vmatpush1.xpose.msra.mxu0 %v3651
    %3659 = vmatprep.subr.mxu0 0.0
    %3660 = vmatpush1.xpose.msra.mxu0 %v3653
    %3661 = vmatprep.subr.mxu0 0.0
    %3662 = vmatpush1.xpose.msra.mxu0 %v3655
    %3663 = vmatprep.subr.mxu0 0.0
    %3664 = vmatpush1.xpose.msra.mxu0 0.0
    %3665 = vmatprep.subr.mxu0 0.0
    %3666 = vmatpush1.xpose.msra.mxu0 0.0
    %3667 = vmatprep.subr.mxu0 0.0
    %3668 = vmatpush1.xpose.msra.mxu0 0.0
    %3669 = vmatprep.subr.mxu0 0.0
    %3670 = vmatpush1.xpose.msra.mxu0 0.0
    %3671 = vmatprep.subr.mxu0 0.0
    %3672 = vmatpush1.xpose.msra.mxu0 0.0
    %3673 = vmatprep.subr.mxu0 0.0
    %3674 = vmatpush1.xpose.msra.mxu0 0.0
    %3675 = vmatprep.subr.mxu0 0.0
    %3676 = vmatpush1.xpose.msra.mxu0 0.0
    %3677 = vmatprep.subr.mxu0 0.0
    %3678 = vmatpush1.xpose.msra.mxu0 0.0
    %3679 = vmatprep.subr.mxu0 0.0
    %3680 = vmatpush1.xpose.msra.mxu0 0.0
    %3681 = vmatprep.subr.mxu0 0.0
    %3682 = vmatpush1.xpose.msra.mxu0 0.0
    %3683 = vmatprep.subr.mxu0 0.0
    %3684 = vmatpush1.xpose.msra.mxu0 0.0
    %3685 = vmatprep.subr.mxu0 0.0
    %3686 = vmatpush1.xpose.msra.mxu0 0.0
    %3687 = vmatprep.subr.mxu0 0.0
    %3688 = vmatpush1.xpose.msra.mxu0 0.0
    %3689 = vmatprep.subr.mxu0 0.0
    %3690 = vmatpush1.xpose.msra.mxu0 0.0
    %3691 = vmatprep.subr.mxu0 0.0
    %3692 = vmatpush1.xpose.msra.mxu0 0.0
    %3693 = vmatprep.subr.mxu0 0.0
    %3694 = vmatpush1.xpose.msra.mxu0 0.0
    %3695 = vmatprep.subr.mxu0 0.0
    %3696 = vmatpush1.xpose.msra.mxu0 0.0
    %3697 = vmatprep.subr.mxu0 0.0
    %3698 = vmatpush1.xpose.msra.mxu0 0.0
    %3699 = vmatprep.subr.mxu0 0.0
    %3700 = vmatpush1.xpose.msra.mxu0 0.0
    %3701 = vmatprep.subr.mxu0 0.0
    %3702 = vmatpush1.xpose.msra.mxu0 0.0
    %3703 = vmatprep.subr.mxu0 0.0
    %3704 = vmatpush1.xpose.msra.mxu0 0.0
    %3705 = vmatprep.subr.mxu0 0.0
    %3706 = vmatpush1.xpose.msra.mxu0 0.0
    %3707 = vmatprep.subr.mxu0 0.0
    %3708 = vmatpush1.xpose.msra.mxu0 0.0
    %3709 = vmatprep.subr.mxu0 0.0
    %3710 = vmatpush1.xpose.msra.mxu0 0.0
    %3711 = vmatprep.subr.mxu0 0.0
    %3712 = vmatpush1.xpose.msra.mxu0 0.0
    %3713 = vmatprep.subr.mxu0 0.0
    %3714 = vmatpush1.xpose.msra.mxu0 0.0
    %3715 = vmatprep.subr.mxu0 0.0
    %3716 = vmatpush1.xpose.msra.mxu0 0.0
    %3717 = vmatprep.subr.mxu0 0.0
    %3718 = vmatpush1.xpose.msra.mxu0 0.0
    %3719 = vmatprep.subr.mxu0 0.0
    %3720 = vmatpush1.xpose.msra.mxu0 0.0
    %3721 = vmatprep.mubr.f32.mxu0 0.0
    %3722 = vmatmul.mubr.f32.gmra.mrb[0].mxu0 %v3580
    %v3723 = vpop.f32.mrb[0].mxu0
    %v3724 = vadd.f32 %v248, %v3723
    %v3725 = vpop.f32.mrb[0].mxu0
    %3726 = vmatprep.mubr.f32.mxu0 0.0
    %3727 = vmatmul.mubr.f32.gmra.mrb[0].mxu0 %v3583
    %v3728 = vpop.f32.mrb[0].mxu0
    %v3729 = vadd.f32 %v248, %v3728
    %v3730 = vpop.f32.mrb[0].mxu0
    %3731 = vmatprep.mubr.f32.mxu0 0.0
    %3732 = vmatmul.mubr.f32.gmra.mrb[0].mxu0 %v3586
    %v3733 = vpop.f32.mrb[0].mxu0
    %v3734 = vadd.f32 %v248, %v3733
    %v3735 = vpop.f32.mrb[0].mxu0
    %3736 = vmatprep.mubr.f32.mxu0 0.0
    %3737 = vmatmul.mubr.f32.gmra.mrb[0].mxu0 %v3589
    %v3738 = vpop.f32.mrb[0].mxu0
    %v3739 = vadd.f32 %v248, %v3738
    %v3740 = vpop.f32.mrb[0].mxu0
    %3741 = vmatprep.mubr.f32.mxu0 0.0
    %3742 = vmatmul.mubr.f32.gmra.mrb[0].mxu0 %v3592
    %v3743 = vpop.f32.mrb[0].mxu0
    %v3744 = vadd.f32 %v248, %v3743
    %v3745 = vpop.f32.mrb[0].mxu0
    %3746 = vmatprep.mubr.f32.mxu0 0.0
    %3747 = vmatmul.mubr.f32.gmra.mrb[0].mxu0 %v3595
    %v3748 = vpop.f32.mrb[0].mxu0
    %v3749 = vadd.f32 %v248, %v3748
    %v3750 = vpop.f32.mrb[0].mxu0
    %3751 = vmatprep.mubr.f32.mxu0 0.0
    %3752 = vmatmul.mubr.f32.gmra.mrb[0].mxu0 %v3598
    %v3753 = vpop.f32.mrb[0].mxu0
    %v3754 = vadd.f32 %v248, %v3753
    %v3755 = vpop.f32.mrb[0].mxu0
    %3756 = vmatprep.mubr.f32.mxu0 0.0
    %3757 = vmatmul.mubr.f32.gmra.mrb[0].mxu0 %v3601
    %v3758 = vpop.f32.mrb[0].mxu0
    %v3759 = vadd.f32 %v248, %v3758
    %v3760 = vpop.f32.mrb[0].mxu0
    %3761 = vmatprep.mubr.f32.mxu0 0.0
    %3762 = vmatmul.mubr.f32.gmra.mrb[0].mxu0 %v3604
    %v3763 = vpop.f32.mrb[0].mxu0
    %v3764 = vadd.f32 %v248, %v3763
    %v3765 = vpop.f32.mrb[0].mxu0
    %3766 = vmatprep.mubr.f32.mxu0 0.0
    %3767 = vmatmul.mubr.f32.gmra.mrb[0].mxu0 %v3607
    %v3768 = vpop.f32.mrb[0].mxu0
    %v3769 = vadd.f32 %v248, %v3768
    %v3770 = vpop.f32.mrb[0].mxu0
    %3771 = vmatprep.mubr.f32.mxu0 0.0
    %3772 = vmatmul.mubr.f32.gmra.mrb[0].mxu0 %v3610
    %v3773 = vpop.f32.mrb[0].mxu0
    %v3774 = vadd.f32 %v248, %v3773
    %v3775 = vpop.f32.mrb[0].mxu0
    %3776 = vmatprep.mubr.f32.mxu0 0.0
    %3777 = vmatmul.mubr.f32.gmra.mrb[0].mxu0 %v3613
    %v3778 = vpop.f32.mrb[0].mxu0
    %v3779 = vadd.f32 %v248, %v3778
    %v3780 = vpop.f32.mrb[0].mxu0
    %3781 = vmatprep.mubr.f32.mxu0 0.0
    %3782 = vmatmul.mubr.f32.gmra.mrb[0].mxu0 %v3616
    %v3783 = vpop.f32.mrb[0].mxu0
    %v3784 = vadd.f32 %v248, %v3783
    %v3785 = vpop.f32.mrb[0].mxu0
    %3786 = vmatprep.mubr.f32.mxu0 0.0
    %3787 = vmatmul.mubr.f32.gmra.mrb[0].mxu0 %v3619
    %v3788 = vpop.f32.mrb[0].mxu0
    %v3789 = vadd.f32 %v248, %v3788
    %v3790 = vpop.f32.mrb[0].mxu0
    %3791 = vmatprep.mubr.f32.mxu0 0.0
    %3792 = vmatmul.mubr.f32.gmra.mrb[0].mxu0 %v3622
    %v3793 = vpop.f32.mrb[0].mxu0
    %v3794 = vadd.f32 %v248, %v3793
    %v3795 = vpop.f32.mrb[0].mxu0
    %3796 = vmatprep.mubr.f32.mxu0 0.0
    %3797 = vmatmul.mubr.f32.gmra.mrb[0].mxu0 %v3625
    %v3798 = vpop.f32.mrb[0].mxu0
    %v3799 = vadd.f32 %v248, %v3798
    %v3800 = vpop.f32.mrb[0].mxu0
    %3801 = vmatprep.mubr.f32.mxu0 0.0
    %3802 = vmatmul.mubr.f32.gmra.mrb[0].mxu0 %v3628
    %v3803 = vpop.f32.mrb[0].mxu0
    %v3804 = vadd.f32 %v248, %v3803
    %v3805 = vpop.f32.mrb[0].mxu0
    %3806 = vmatprep.mubr.f32.mxu0 0.0
    %3807 = vmatmul.mubr.f32.gmra.mrb[0].mxu0 %v3631
    %v3808 = vpop.f32.mrb[0].mxu0
    %v3809 = vadd.f32 %v248, %v3808
    %v3810 = vpop.f32.mrb[0].mxu0
    %3811 = vmatprep.mubr.f32.mxu0 0.0
    %3812 = vmatmul.mubr.f32.gmra.mrb[0].mxu0 %v3634
    %v3813 = vpop.f32.mrb[0].mxu0
    %v3814 = vadd.f32 %v248, %v3813
    %v3815 = vpop.f32.mrb[0].mxu0
    %3816 = vmatprep.mubr.f32.mxu0 0.0
    %3817 = vmatmul.mubr.f32.gmra.mrb[0].mxu0 %v3637
    %v3818 = vpop.f32.mrb[0].mxu0
    %v3819 = vadd.f32 %v248, %v3818
    %v3820 = vpop.f32.mrb[0].mxu0
    %3821 = vmatprep.mubr.f32.mxu0 0.0
    %3822 = vmatmul.mubr.f32.gmra.mrb[0].mxu0 %v3640
    %v3823 = vpop.f32.mrb[0].mxu0
    %v3824 = vadd.f32 %v248, %v3823
    %v3825 = vpop.f32.mrb[0].mxu0
    %3826 = vmatprep.mubr.f32.mxu0 0.0
    %3827 = vmatmul.mubr.f32.gmra.mrb[0].mxu0 %v3643
    %v3828 = vpop.f32.mrb[0].mxu0
    %v3829 = vadd.f32 %v248, %v3828
    %v3830 = vpop.f32.mrb[0].mxu0
    %3831 = vmatprep.mubr.f32.mxu0 0.0
    %3832 = vmatmul.mubr.f32.gmra.mrb[0].mxu0 %v3646
    %v3833 = vpop.f32.mrb[0].mxu0
    %v3834 = vadd.f32 %v248, %v3833
    %v3835 = vpop.f32.mrb[0].mxu0
    %3836 = vmatprep.mubr.f32.mxu0 0.0
    %3837 = vmatmul.mubr.f32.gmra.mrb[0].mxu0 %v3649
    %v3838 = vpop.f32.mrb[0].mxu0
    %v3839 = vadd.f32 %v248, %v3838
    %v3840 = vpop.f32.mrb[0].mxu0
    %3841 = vdwg.mxu0
    %v3842 = vsel %vm521, %v3724, -inf
    %3843 = vmax.xlane.f32.xlu0 %v3842
    %v3844 = vpop.xlane.xlu0 %3843
    %v3845 = vsel %vm521, %v3729, -inf
    %3846 = vmax.xlane.f32.xlu0 %v3845
    %v3847 = vpop.xlane.xlu0 %3846
    %v3848 = vsel %vm521, %v3734, -inf
    %3849 = vmax.xlane.f32.xlu0 %v3848
    %v3850 = vpop.xlane.xlu0 %3849
    %v3851 = vsel %vm521, %v3739, -inf
    %3852 = vmax.xlane.f32.xlu0 %v3851
    %v3853 = vpop.xlane.xlu0 %3852
    %v3854 = vsel %vm521, %v3744, -inf
    %3855 = vmax.xlane.f32.xlu0 %v3854
    %v3856 = vpop.xlane.xlu0 %3855
    %v3857 = vsel %vm521, %v3749, -inf
    %3858 = vmax.xlane.f32.xlu0 %v3857
    %v3859 = vpop.xlane.xlu0 %3858
    %v3860 = vsel %vm521, %v3754, -inf
    %3861 = vmax.xlane.f32.xlu0 %v3860
    %v3862 = vpop.xlane.xlu0 %3861
    %v3863 = vsel %vm521, %v3759, -inf
    %3864 = vmax.xlane.f32.xlu0 %v3863
    %v3865 = vpop.xlane.xlu0 %3864
    %v3866 = vsel %vm521, %v3764, -inf
    %3867 = vmax.xlane.f32.xlu0 %v3866
    %v3868 = vpop.xlane.xlu0 %3867
    %v3869 = vsel %vm521, %v3769, -inf
    %3870 = vmax.xlane.f32.xlu0 %v3869
    %v3871 = vpop.xlane.xlu0 %3870
    %v3872 = vsel %vm521, %v3774, -inf
    %3873 = vmax.xlane.f32.xlu0 %v3872
    %v3874 = vpop.xlane.xlu0 %3873
    %v3875 = vsel %vm521, %v3779, -inf
    %3876 = vmax.xlane.f32.xlu0 %v3875
    %v3877 = vpop.xlane.xlu0 %3876
    %v3878 = vsel %vm521, %v3784, -inf
    %3879 = vmax.xlane.f32.xlu0 %v3878
    %v3880 = vpop.xlane.xlu0 %3879
    %v3881 = vsel %vm521, %v3789, -inf
    %3882 = vmax.xlane.f32.xlu0 %v3881
    %v3883 = vpop.xlane.xlu0 %3882
    %v3884 = vsel %vm521, %v3794, -inf
    %3885 = vmax.xlane.f32.xlu0 %v3884
    %v3886 = vpop.xlane.xlu0 %3885
    %v3887 = vsel %vm521, %v3799, -inf
    %3888 = vmax.xlane.f32.xlu0 %v3887
    %v3889 = vpop.xlane.xlu0 %3888
    %v3890 = vsel %vm521, %v3804, -inf
    %3891 = vmax.xlane.f32.xlu0 %v3890
    %v3892 = vpop.xlane.xlu0 %3891
    %v3893 = vsel %vm521, %v3809, -inf
    %3894 = vmax.xlane.f32.xlu0 %v3893
    %v3895 = vpop.xlane.xlu0 %3894
    %v3896 = vsel %vm521, %v3814, -inf
    %3897 = vmax.xlane.f32.xlu0 %v3896
    %v3898 = vpop.xlane.xlu0 %3897
    %v3899 = vsel %vm521, %v3819, -inf
    %3900 = vmax.xlane.f32.xlu0 %v3899
    %v3901 = vpop.xlane.xlu0 %3900
    %v3902 = vsel %vm521, %v3824, -inf
    %3903 = vmax.xlane.f32.xlu0 %v3902
    %v3904 = vpop.xlane.xlu0 %3903
    %v3905 = vsel %vm521, %v3829, -inf
    %3906 = vmax.xlane.f32.xlu0 %v3905
    %v3907 = vpop.xlane.xlu0 %3906
    %v3908 = vsel %vm521, %v3834, -inf
    %3909 = vmax.xlane.f32.xlu0 %v3908
    %v3910 = vpop.xlane.xlu0 %3909
    %v3911 = vsel %vm521, %v3839, -inf
    %3912 = vmax.xlane.f32.xlu0 %v3911
    %v3913 = vpop.xlane.xlu0 %3912
    %v3914 = vsub.f32 %v3724, %v3844
    %v3915 = vsub.f32 %v3729, %v3847
    %v3916 = vsub.f32 %v3734, %v3850
    %v3917 = vsub.f32 %v3739, %v3853
    %v3918 = vsub.f32 %v3744, %v3856
    %v3919 = vsub.f32 %v3749, %v3859
    %v3920 = vsub.f32 %v3754, %v3862
    %v3921 = vsub.f32 %v3759, %v3865
    %v3922 = vsub.f32 %v3764, %v3868
    %v3923 = vsub.f32 %v3769, %v3871
    %v3924 = vsub.f32 %v3774, %v3874
    %v3925 = vsub.f32 %v3779, %v3877
    %v3926 = vsub.f32 %v3784, %v3880
    %v3927 = vsub.f32 %v3789, %v3883
    %v3928 = vsub.f32 %v3794, %v3886
    %v3929 = vsub.f32 %v3799, %v3889
    %v3930 = vsub.f32 %v3804, %v3892
    %v3931 = vsub.f32 %v3809, %v3895
    %v3932 = vsub.f32 %v3814, %v3898
    %v3933 = vsub.f32 %v3819, %v3901
    %v3934 = vsub.f32 %v3824, %v3904
    %v3935 = vsub.f32 %v3829, %v3907
    %v3936 = vsub.f32 %v3834, %v3910
    %v3937 = vsub.f32 %v3839, %v3913
    %v3938 = vmul.f32 %v3914, 1.442695
    %v3939 = vpow.pop %v3938
    %v3940 = vmul.f32 %v3915, 1.442695
    %v3941 = vpow.pop %v3940
    %v3942 = vmul.f32 %v3916, 1.442695
    %v3943 = vpow.pop %v3942
    %v3944 = vmul.f32 %v3917, 1.442695
    %v3945 = vpow.pop %v3944
    %v3946 = vmul.f32 %v3918, 1.442695
    %v3947 = vpow.pop %v3946
    %v3948 = vmul.f32 %v3919, 1.442695
    %v3949 = vpow.pop %v3948
    %v3950 = vmul.f32 %v3920, 1.442695
    %v3951 = vpow.pop %v3950
    %v3952 = vmul.f32 %v3921, 1.442695
    %v3953 = vpow.pop %v3952
    %v3954 = vmul.f32 %v3922, 1.442695
    %v3955 = vpow.pop %v3954
    %v3956 = vmul.f32 %v3923, 1.442695
    %v3957 = vpow.pop %v3956
    %v3958 = vmul.f32 %v3924, 1.442695
    %v3959 = vpow.pop %v3958
    %v3960 = vmul.f32 %v3925, 1.442695
    %v3961 = vpow.pop %v3960
    %v3962 = vmul.f32 %v3926, 1.442695
    %v3963 = vpow.pop %v3962
    %v3964 = vmul.f32 %v3927, 1.442695
    %v3965 = vpow.pop %v3964
    %v3966 = vmul.f32 %v3928, 1.442695
    %v3967 = vpow.pop %v3966
    %v3968 = vmul.f32 %v3929, 1.442695
    %v3969 = vpow.pop %v3968
    %v3970 = vmul.f32 %v3930, 1.442695
    %v3971 = vpow.pop %v3970
    %v3972 = vmul.f32 %v3931, 1.442695
    %v3973 = vpow.pop %v3972
    %v3974 = vmul.f32 %v3932, 1.442695
    %v3975 = vpow.pop %v3974
    %v3976 = vmul.f32 %v3933, 1.442695
    %v3977 = vpow.pop %v3976
    %v3978 = vmul.f32 %v3934, 1.442695
    %v3979 = vpow.pop %v3978
    %v3980 = vmul.f32 %v3935, 1.442695
    %v3981 = vpow.pop %v3980
    %v3982 = vmul.f32 %v3936, 1.442695
    %v3983 = vpow.pop %v3982
    %v3984 = vmul.f32 %v3937, 1.442695
    %v3985 = vpow.pop %v3984
    %v3986 = vsel %vm521, %v3939, 0.0
    %3987 = vadd.xlane.f32.xlu0 %v3986
    %v3988 = vpop.xlane.xlu0 %3987
    %v3989 = vsel %vm521, %v3941, 0.0
    %3990 = vadd.xlane.f32.xlu0 %v3989
    %v3991 = vpop.xlane.xlu0 %3990
    %v3992 = vsel %vm521, %v3943, 0.0
    %3993 = vadd.xlane.f32.xlu0 %v3992
    %v3994 = vpop.xlane.xlu0 %3993
    %v3995 = vsel %vm521, %v3945, 0.0
    %3996 = vadd.xlane.f32.xlu0 %v3995
    %v3997 = vpop.xlane.xlu0 %3996
    %v3998 = vsel %vm521, %v3947, 0.0
    %3999 = vadd.xlane.f32.xlu0 %v3998
    %v4000 = vpop.xlane.xlu0 %3999
    %v4001 = vsel %vm521, %v3949, 0.0
    %4002 = vadd.xlane.f32.xlu0 %v4001
    %v4003 = vpop.xlane.xlu0 %4002
    %v4004 = vsel %vm521, %v3951, 0.0
    %4005 = vadd.xlane.f32.xlu0 %v4004
    %v4006 = vpop.xlane.xlu0 %4005
    %v4007 = vsel %vm521, %v3953, 0.0
    %4008 = vadd.xlane.f32.xlu0 %v4007
    %v4009 = vpop.xlane.xlu0 %4008
    %v4010 = vsel %vm521, %v3955, 0.0
    %4011 = vadd.xlane.f32.xlu0 %v4010
    %v4012 = vpop.xlane.xlu0 %4011
    %v4013 = vsel %vm521, %v3957, 0.0
    %4014 = vadd.xlane.f32.xlu0 %v4013
    %v4015 = vpop.xlane.xlu0 %4014
    %v4016 = vsel %vm521, %v3959, 0.0
    %4017 = vadd.xlane.f32.xlu0 %v4016
    %v4018 = vpop.xlane.xlu0 %4017
    %v4019 = vsel %vm521, %v3961, 0.0
    %4020 = vadd.xlane.f32.xlu0 %v4019
    %v4021 = vpop.xlane.xlu0 %4020
    %v4022 = vsel %vm521, %v3963, 0.0
    %4023 = vadd.xlane.f32.xlu0 %v4022
    %v4024 = vpop.xlane.xlu0 %4023
    %v4025 = vsel %vm521, %v3965, 0.0
    %4026 = vadd.xlane.f32.xlu0 %v4025
    %v4027 = vpop.xlane.xlu0 %4026
    %v4028 = vsel %vm521, %v3967, 0.0
    %4029 = vadd.xlane.f32.xlu0 %v4028
    %v4030 = vpop.xlane.xlu0 %4029
    %v4031 = vsel %vm521, %v3969, 0.0
    %4032 = vadd.xlane.f32.xlu0 %v4031
    %v4033 = vpop.xlane.xlu0 %4032
    %v4034 = vsel %vm521, %v3971, 0.0
    %4035 = vadd.xlane.f32.xlu0 %v4034
    %v4036 = vpop.xlane.xlu0 %4035
    %v4037 = vsel %vm521, %v3973, 0.0
    %4038 = vadd.xlane.f32.xlu0 %v4037
    %v4039 = vpop.xlane.xlu0 %4038
    %v4040 = vsel %vm521, %v3975, 0.0
    %4041 = vadd.xlane.f32.xlu0 %v4040
    %v4042 = vpop.xlane.xlu0 %4041
    %v4043 = vsel %vm521, %v3977, 0.0
    %4044 = vadd.xlane.f32.xlu0 %v4043
    %v4045 = vpop.xlane.xlu0 %4044
    %v4046 = vsel %vm521, %v3979, 0.0
    %4047 = vadd.xlane.f32.xlu0 %v4046
    %v4048 = vpop.xlane.xlu0 %4047
    %v4049 = vsel %vm521, %v3981, 0.0
    %4050 = vadd.xlane.f32.xlu0 %v4049
    %v4051 = vpop.xlane.xlu0 %4050
    %v4052 = vsel %vm521, %v3983, 0.0
    %4053 = vadd.xlane.f32.xlu0 %v4052
    %v4054 = vpop.xlane.xlu0 %4053
    %v4055 = vsel %vm521, %v3985, 0.0
    %4056 = vadd.xlane.f32.xlu0 %v4055
    %v4057 = vpop.xlane.xlu0 %4056
    %v4058 = vrcp.pop %v3988
    %v4059 = vrcp.pop %v3991
    %v4060 = vrcp.pop %v3994
    %v4061 = vrcp.pop %v3997
    %v4062 = vrcp.pop %v4000
    %v4063 = vrcp.pop %v4003
    %v4064 = vrcp.pop %v4006
    %v4065 = vrcp.pop %v4009
    %v4066 = vrcp.pop %v4012
    %v4067 = vrcp.pop %v4015
    %v4068 = vrcp.pop %v4018
    %v4069 = vrcp.pop %v4021
    %v4070 = vrcp.pop %v4024
    %v4071 = vrcp.pop %v4027
    %v4072 = vrcp.pop %v4030
    %v4073 = vrcp.pop %v4033
    %v4074 = vrcp.pop %v4036
    %v4075 = vrcp.pop %v4039
    %v4076 = vrcp.pop %v4042
    %v4077 = vrcp.pop %v4045
    %v4078 = vrcp.pop %v4048
    %v4079 = vrcp.pop %v4051
    %v4080 = vrcp.pop %v4054
    %v4081 = vrcp.pop %v4057
    %v4082 = vmul.f32 %v3939, %v4058
    %v4083 = vmul.f32 %v3941, %v4059
    %v4084 = vmul.f32 %v3943, %v4060
    %v4085 = vmul.f32 %v3945, %v4061
    %v4086 = vmul.f32 %v3947, %v4062
    %v4087 = vmul.f32 %v3949, %v4063
    %v4088 = vmul.f32 %v3951, %v4064
    %v4089 = vmul.f32 %v3953, %v4065
    %v4090 = vmul.f32 %v3955, %v4066
    %v4091 = vmul.f32 %v3957, %v4067
    %v4092 = vmul.f32 %v3959, %v4068
    %v4093 = vmul.f32 %v3961, %v4069
    %v4094 = vmul.f32 %v3963, %v4070
    %v4095 = vmul.f32 %v3965, %v4071
    %v4096 = vmul.f32 %v3967, %v4072
    %v4097 = vmul.f32 %v3969, %v4073
    %v4098 = vmul.f32 %v3971, %v4074
    %v4099 = vmul.f32 %v3973, %v4075
    %v4100 = vmul.f32 %v3975, %v4076
    %v4101 = vmul.f32 %v3977, %v4077
    %v4102 = vmul.f32 %v3979, %v4078
    %v4103 = vmul.f32 %v3981, %v4079
    %v4104 = vmul.f32 %v3983, %v4080
    %v4105 = vmul.f32 %v3985, %v4081
    %4106 = vrot.lane.b32.xlu0 %v2656, 64
    %v4107 = vpop.permute.xlu0 %4106
    %4108 = vrot.lane.b32.xlu0 %v2661, 64
    %v4109 = vpop.permute.xlu0 %4108
    %4110 = vrot.lane.b32.xlu0 %v2666, 64
    %v4111 = vpop.permute.xlu0 %4110
    %v4116 = vsel %vm521, %v4082, 0
    %v4119 = vsel %vm521, %v4083, 0
    %v4122 = vsel %vm521, %v4084, 0
    %v4125 = vsel %vm521, %v4085, 0
    %v4128 = vsel %vm521, %v4086, 0
    %v4131 = vsel %vm521, %v4087, 0
    %v4134 = vsel %vm521, %v4088, 0
    %v4137 = vsel %vm521, %v4089, 0
    %v4140 = vsel %vm521, %v4090, 0
    %v4143 = vsel %vm521, %v4091, 0
    %v4146 = vsel %vm521, %v4092, 0
    %v4149 = vsel %vm521, %v4093, 0
    %v4152 = vsel %vm521, %v4094, 0
    %v4155 = vsel %vm521, %v4095, 0
    %v4158 = vsel %vm521, %v4096, 0
    %v4161 = vsel %vm521, %v4097, 0
    %v4164 = vsel %vm521, %v4098, 0
    %v4167 = vsel %vm521, %v4099, 0
    %v4170 = vsel %vm521, %v4100, 0
    %v4173 = vsel %vm521, %v4101, 0
    %v4176 = vsel %vm521, %v4102, 0
    %v4179 = vsel %vm521, %v4103, 0
    %v4182 = vsel %vm521, %v4104, 0
    %v4185 = vsel %vm521, %v4105, 0
    %4187 = vmatprep.subr.mxu0 0.0
    %4188 = vmatpush1.msra.mxu0 %v4107
    %4189 = vmatprep.subr.mxu0 0.0
    %4190 = vmatpush1.msra.mxu0 %v4109
    %4191 = vmatprep.subr.mxu0 0.0
    %4192 = vmatpush1.msra.mxu0 %v4111
    %4193 = vmatprep.subr.mxu0 0.0
    %4194 = vmatpush1.msra.mxu0 0.0
    %4195 = vmatprep.subr.mxu0 0.0
    %4196 = vmatpush1.msra.mxu0 0.0
    %4197 = vmatprep.subr.mxu0 0.0
    %4198 = vmatpush1.msra.mxu0 0.0
    %4199 = vmatprep.subr.mxu0 0.0
    %4200 = vmatpush1.msra.mxu0 0.0
    %4201 = vmatprep.subr.mxu0 0.0
    %4202 = vmatpush1.msra.mxu0 0.0
    %4203 = vmatprep.subr.mxu0 0.0
    %4204 = vmatpush1.msra.mxu0 0.0
    %4205 = vmatprep.subr.mxu0 0.0
    %4206 = vmatpush1.msra.mxu0 0.0
    %4207 = vmatprep.subr.mxu0 0.0
    %4208 = vmatpush1.msra.mxu0 0.0
    %4209 = vmatprep.subr.mxu0 0.0
    %4210 = vmatpush1.msra.mxu0 0.0
    %4211 = vmatprep.subr.mxu0 0.0
    %4212 = vmatpush1.msra.mxu0 0.0
    %4213 = vmatprep.subr.mxu0 0.0
    %4214 = vmatpush1.msra.mxu0 0.0
    %4215 = vmatprep.subr.mxu0 0.0
    %4216 = vmatpush1.msra.mxu0 0.0
    %4217 = vmatprep.subr.mxu0 0.0
    %4218 = vmatpush1.msra.mxu0 0.0
    %4219 = vmatprep.subr.mxu0 0.0
    %4220 = vmatpush1.msra.mxu0 0.0
    %4221 = vmatprep.subr.mxu0 0.0
    %4222 = vmatpush1.msra.mxu0 0.0
    %4223 = vmatprep.subr.mxu0 0.0
    %4224 = vmatpush1.msra.mxu0 0.0
    %4225 = vmatprep.subr.mxu0 0.0
    %4226 = vmatpush1.msra.mxu0 0.0
    %4227 = vmatprep.subr.mxu0 0.0
    %4228 = vmatpush1.msra.mxu0 0.0
    %4229 = vmatprep.subr.mxu0 0.0
    %4230 = vmatpush1.msra.mxu0 0.0
    %4231 = vmatprep.subr.mxu0 0.0
    %4232 = vmatpush1.msra.mxu0 0.0
    %4233 = vmatprep.subr.mxu0 0.0
    %4234 = vmatpush1.msra.mxu0 0.0
    %4235 = vmatprep.subr.mxu0 0.0
    %4236 = vmatpush1.msra.mxu0 0.0
    %4237 = vmatprep.subr.mxu0 0.0
    %4238 = vmatpush1.msra.mxu0 0.0
    %4239 = vmatprep.subr.mxu0 0.0
    %4240 = vmatpush1.msra.mxu0 0.0
    %4241 = vmatprep.subr.mxu0 0.0
    %4242 = vmatpush1.msra.mxu0 0.0
    %4243 = vmatprep.subr.mxu0 0.0
    %4244 = vmatpush1.msra.mxu0 0.0
    %4245 = vmatprep.subr.mxu0 0.0
    %4246 = vmatpush1.msra.mxu0 0.0
    %4247 = vmatprep.subr.mxu0 0.0
    %4248 = vmatpush1.msra.mxu0 0.0
    %4249 = vmatprep.subr.mxu0 0.0
    %4250 = vmatpush1.msra.mxu0 0.0
    %4251 = vmatprep.mubr.f32.mxu0 0.0
    %4252 = vmatmul.mubr.f32.gmra.mrb[0].mxu0 %v4116
    %v4253 = vpop.f32.mrb[0].mxu0
    %v4254 = vadd.f32 0.0, %v4253
    %v4255 = vpop.f32.mrb[0].mxu0
    %4256 = vmatprep.mubr.f32.mxu0 0.0
    %4257 = vmatmul.mubr.f32.gmra.mrb[0].mxu0 %v4119
    %v4258 = vpop.f32.mrb[0].mxu0
    %v4259 = vadd.f32 0.0, %v4258
    %v4260 = vpop.f32.mrb[0].mxu0
    %4261 = vmatprep.mubr.f32.mxu0 0.0
    %4262 = vmatmul.mubr.f32.gmra.mrb[0].mxu0 %v4122
    %v4263 = vpop.f32.mrb[0].mxu0
    %v4264 = vadd.f32 0.0, %v4263
    %v4265 = vpop.f32.mrb[0].mxu0
    %4266 = vmatprep.mubr.f32.mxu0 0.0
    %4267 = vmatmul.mubr.f32.gmra.mrb[0].mxu0 %v4125
    %v4268 = vpop.f32.mrb[0].mxu0
    %v4269 = vadd.f32 0.0, %v4268
    %v4270 = vpop.f32.mrb[0].mxu0
    %4271 = vmatprep.mubr.f32.mxu0 0.0
    %4272 = vmatmul.mubr.f32.gmra.mrb[0].mxu0 %v4128
    %v4273 = vpop.f32.mrb[0].mxu0
    %v4274 = vadd.f32 0.0, %v4273
    %v4275 = vpop.f32.mrb[0].mxu0
    %4276 = vmatprep.mubr.f32.mxu0 0.0
    %4277 = vmatmul.mubr.f32.gmra.mrb[0].mxu0 %v4131
    %v4278 = vpop.f32.mrb[0].mxu0
    %v4279 = vadd.f32 0.0, %v4278
    %v4280 = vpop.f32.mrb[0].mxu0
    %4281 = vmatprep.mubr.f32.mxu0 0.0
    %4282 = vmatmul.mubr.f32.gmra.mrb[0].mxu0 %v4134
    %v4283 = vpop.f32.mrb[0].mxu0
    %v4284 = vadd.f32 0.0, %v4283
    %v4285 = vpop.f32.mrb[0].mxu0
    %4286 = vmatprep.mubr.f32.mxu0 0.0
    %4287 = vmatmul.mubr.f32.gmra.mrb[0].mxu0 %v4137
    %v4288 = vpop.f32.mrb[0].mxu0
    %v4289 = vadd.f32 0.0, %v4288
    %v4290 = vpop.f32.mrb[0].mxu0
    %4291 = vmatprep.mubr.f32.mxu0 0.0
    %4292 = vmatmul.mubr.f32.gmra.mrb[0].mxu0 %v4140
    %v4293 = vpop.f32.mrb[0].mxu0
    %v4294 = vadd.f32 0.0, %v4293
    %v4295 = vpop.f32.mrb[0].mxu0
    %4296 = vmatprep.mubr.f32.mxu0 0.0
    %4297 = vmatmul.mubr.f32.gmra.mrb[0].mxu0 %v4143
    %v4298 = vpop.f32.mrb[0].mxu0
    %v4299 = vadd.f32 0.0, %v4298
    %v4300 = vpop.f32.mrb[0].mxu0
    %4301 = vmatprep.mubr.f32.mxu0 0.0
    %4302 = vmatmul.mubr.f32.gmra.mrb[0].mxu0 %v4146
    %v4303 = vpop.f32.mrb[0].mxu0
    %v4304 = vadd.f32 0.0, %v4303
    %v4305 = vpop.f32.mrb[0].mxu0
    %4306 = vmatprep.mubr.f32.mxu0 0.0
    %4307 = vmatmul.mubr.f32.gmra.mrb[0].mxu0 %v4149
    %v4308 = vpop.f32.mrb[0].mxu0
    %v4309 = vadd.f32 0.0, %v4308
    %v4310 = vpop.f32.mrb[0].mxu0
    %4311 = vmatprep.mubr.f32.mxu0 0.0
    %4312 = vmatmul.mubr.f32.gmra.mrb[0].mxu0 %v4152
    %v4313 = vpop.f32.mrb[0].mxu0
    %v4314 = vadd.f32 0.0, %v4313
    %v4315 = vpop.f32.mrb[0].mxu0
    %4316 = vmatprep.mubr.f32.mxu0 0.0
    %4317 = vmatmul.mubr.f32.gmra.mrb[0].mxu0 %v4155
    %v4318 = vpop.f32.mrb[0].mxu0
    %v4319 = vadd.f32 0.0, %v4318
    %v4320 = vpop.f32.mrb[0].mxu0
    %4321 = vmatprep.mubr.f32.mxu0 0.0
    %4322 = vmatmul.mubr.f32.gmra.mrb[0].mxu0 %v4158
    %v4323 = vpop.f32.mrb[0].mxu0
    %v4324 = vadd.f32 0.0, %v4323
    %v4325 = vpop.f32.mrb[0].mxu0
    %4326 = vmatprep.mubr.f32.mxu0 0.0
    %4327 = vmatmul.mubr.f32.gmra.mrb[0].mxu0 %v4161
    %v4328 = vpop.f32.mrb[0].mxu0
    %v4329 = vadd.f32 0.0, %v4328
    %v4330 = vpop.f32.mrb[0].mxu0
    %4331 = vmatprep.mubr.f32.mxu0 0.0
    %4332 = vmatmul.mubr.f32.gmra.mrb[0].mxu0 %v4164
    %v4333 = vpop.f32.mrb[0].mxu0
    %v4334 = vadd.f32 0.0, %v4333
    %v4335 = vpop.f32.mrb[0].mxu0
    %4336 = vmatprep.mubr.f32.mxu0 0.0
    %4337 = vmatmul.mubr.f32.gmra.mrb[0].mxu0 %v4167
    %v4338 = vpop.f32.mrb[0].mxu0
    %v4339 = vadd.f32 0.0, %v4338
    %v4340 = vpop.f32.mrb[0].mxu0
    %4341 = vmatprep.mubr.f32.mxu0 0.0
    %4342 = vmatmul.mubr.f32.gmra.mrb[0].mxu0 %v4170
    %v4343 = vpop.f32.mrb[0].mxu0
    %v4344 = vadd.f32 0.0, %v4343
    %v4345 = vpop.f32.mrb[0].mxu0
    %4346 = vmatprep.mubr.f32.mxu0 0.0
    %4347 = vmatmul.mubr.f32.gmra.mrb[0].mxu0 %v4173
    %v4348 = vpop.f32.mrb[0].mxu0
    %v4349 = vadd.f32 0.0, %v4348
    %v4350 = vpop.f32.mrb[0].mxu0
    %4351 = vmatprep.mubr.f32.mxu0 0.0
    %4352 = vmatmul.mubr.f32.gmra.mrb[0].mxu0 %v4176
    %v4353 = vpop.f32.mrb[0].mxu0
    %v4354 = vadd.f32 0.0, %v4353
    %v4355 = vpop.f32.mrb[0].mxu0
    %4356 = vmatprep.mubr.f32.mxu0 0.0
    %4357 = vmatmul.mubr.f32.gmra.mrb[0].mxu0 %v4179
    %v4358 = vpop.f32.mrb[0].mxu0
    %v4359 = vadd.f32 0.0, %v4358
    %v4360 = vpop.f32.mrb[0].mxu0
    %4361 = vmatprep.mubr.f32.mxu0 0.0
    %4362 = vmatmul.mubr.f32.gmra.mrb[0].mxu0 %v4182
    %v4363 = vpop.f32.mrb[0].mxu0
    %v4364 = vadd.f32 0.0, %v4363
    %v4365 = vpop.f32.mrb[0].mxu0
    %4366 = vmatprep.mubr.f32.mxu0 0.0
    %4367 = vmatmul.mubr.f32.gmra.mrb[0].mxu0 %v4185
    %v4368 = vpop.f32.mrb[0].mxu0
    %v4369 = vadd.f32 0.0, %v4368
    %v4370 = vpop.f32.mrb[0].mxu0
    %4371 = vdwg.mxu0
    %v4372 = vmul.f32 %v4254, %v36
    %v4373 = vmul.f32 %v4259, %v37
    %v4374 = vmul.f32 %v4264, %v38
    %v4375 = vmul.f32 %v4269, %v39
    %v4376 = vmul.f32 %v4274, %v40
    %v4377 = vmul.f32 %v4279, %v41
    %v4378 = vmul.f32 %v4284, %v42
    %v4379 = vmul.f32 %v4289, %v43
    %v4380 = vmul.f32 %v4294, %v44
    %v4381 = vmul.f32 %v4299, %v45
    %v4382 = vmul.f32 %v4304, %v46
    %v4383 = vmul.f32 %v4309, %v47
    %v4384 = vmul.f32 %v4314, %v48
    %v4385 = vmul.f32 %v4319, %v49
    %v4386 = vmul.f32 %v4324, %v50
    %v4387 = vmul.f32 %v4329, %v51
    %v4388 = vmul.f32 %v4334, %v52
    %v4389 = vmul.f32 %v4339, %v53
    %v4390 = vmul.f32 %v4344, %v54
    %v4391 = vmul.f32 %v4349, %v55
    %v4392 = vmul.f32 %v4354, %v56
    %v4393 = vmul.f32 %v4359, %v57
    %v4394 = vmul.f32 %v4364, %v58
    %v4395 = vmul.f32 %v4369, %v59
    %v4396 = vadd.f32 %v4372, %v4375
    %v4397 = vadd.f32 %v4373, %v4376
    %v4398 = vadd.f32 %v4374, %v4377
    %v4399 = vadd.f32 %v4396, %v4378
    %v4400 = vadd.f32 %v4397, %v4379
    %v4401 = vadd.f32 %v4398, %v4380
    %v4402 = vadd.f32 %v4399, %v4381
    %v4403 = vadd.f32 %v4400, %v4382
    %v4404 = vadd.f32 %v4401, %v4383
    %v4405 = vadd.f32 %v4402, %v4384
    %v4406 = vadd.f32 %v4403, %v4385
    %v4407 = vadd.f32 %v4404, %v4386
    %v4408 = vadd.f32 %v4405, %v4387
    %v4409 = vadd.f32 %v4406, %v4388
    %v4410 = vadd.f32 %v4407, %v4389
    %v4411 = vadd.f32 %v4408, %v4390
    %v4412 = vadd.f32 %v4409, %v4391
    %v4413 = vadd.f32 %v4410, %v4392
    %v4414 = vadd.f32 %v4411, %v4393
    %v4415 = vadd.f32 %v4412, %v4394
    %v4416 = vadd.f32 %v4413, %v4395
    %v4417 = vlaneseq
    %v4418 = vshrl.u32 %v4417, 7
    %v4419 = vsub.s32 0, %v4418
    %v4420 = vrot.slane %v2545, %v4419
    %v4422 = vsel %vm101, %v3543, 0
    %v4425 = vsel %vm101, %v3544, 0
    %v4428 = vsel %vm101, %v3545, 0
    %v4431 = vsel %vm101, %v4414, 0
    %v4434 = vsel %vm101, %v4415, 0
    %v4437 = vsel %vm101, %v4416, 0
    %4439 = vmatprep.subr.mxu0 0.0
    %4440 = vmatpush1.msra.mxu0 %v2520
    %4441 = vmatprep.subr.mxu0 0.0
    %4442 = vmatpush1.msra.mxu0 %v2521
    %4443 = vmatprep.subr.mxu0 0.0
    %4444 = vmatpush1.msra.mxu0 %v2522
    %4445 = vmatprep.subr.mxu0 0.0
    %4446 = vmatpush1.msra.mxu0 %v2523
    %4447 = vmatprep.subr.mxu0 0.0
    %4448 = vmatpush1.msra.mxu0 0.0
    %4449 = vmatprep.subr.mxu0 0.0
    %4450 = vmatpush1.msra.mxu0 0.0
    %4451 = vmatprep.subr.mxu0 0.0
    %4452 = vmatpush1.msra.mxu0 0.0
    %4453 = vmatprep.subr.mxu0 0.0
    %4454 = vmatpush1.msra.mxu0 0.0
    %4455 = vmatprep.subr.mxu0 0.0
    %4456 = vmatpush1.msra.mxu0 0.0
    %4457 = vmatprep.subr.mxu0 0.0
    %4458 = vmatpush1.msra.mxu0 0.0
    %4459 = vmatprep.subr.mxu0 0.0
    %4460 = vmatpush1.msra.mxu0 0.0
    %4461 = vmatprep.subr.mxu0 0.0
    %4462 = vmatpush1.msra.mxu0 0.0
    %4463 = vmatprep.subr.mxu0 0.0
    %4464 = vmatpush1.msra.mxu0 0.0
    %4465 = vmatprep.subr.mxu0 0.0
    %4466 = vmatpush1.msra.mxu0 0.0
    %4467 = vmatprep.subr.mxu0 0.0
    %4468 = vmatpush1.msra.mxu0 0.0
    %4469 = vmatprep.subr.mxu0 0.0
    %4470 = vmatpush1.msra.mxu0 0.0
    %4471 = vmatprep.subr.mxu0 0.0
    %4472 = vmatpush1.msra.mxu0 0.0
    %4473 = vmatprep.subr.mxu0 0.0
    %4474 = vmatpush1.msra.mxu0 0.0
    %4475 = vmatprep.subr.mxu0 0.0
    %4476 = vmatpush1.msra.mxu0 0.0
    %4477 = vmatprep.subr.mxu0 0.0
    %4478 = vmatpush1.msra.mxu0 0.0
    %4479 = vmatprep.subr.mxu0 0.0
    %4480 = vmatpush1.msra.mxu0 0.0
    %4481 = vmatprep.subr.mxu0 0.0
    %4482 = vmatpush1.msra.mxu0 0.0
    %4483 = vmatprep.subr.mxu0 0.0
    %4484 = vmatpush1.msra.mxu0 0.0
    %4485 = vmatprep.subr.mxu0 0.0
    %4486 = vmatpush1.msra.mxu0 0.0
    %4487 = vmatprep.subr.mxu0 0.0
    %4488 = vmatpush1.msra.mxu0 0.0
    %4489 = vmatprep.subr.mxu0 0.0
    %4490 = vmatpush1.msra.mxu0 0.0
    %4491 = vmatprep.subr.mxu0 0.0
    %4492 = vmatpush1.msra.mxu0 0.0
    %4493 = vmatprep.subr.mxu0 0.0
    %4494 = vmatpush1.msra.mxu0 0.0
    %4495 = vmatprep.subr.mxu0 0.0
    %4496 = vmatpush1.msra.mxu0 0.0
    %4497 = vmatprep.subr.mxu0 0.0
    %4498 = vmatpush1.msra.mxu0 0.0
    %4499 = vmatprep.subr.mxu0 0.0
    %4500 = vmatpush1.msra.mxu0 0.0
    %4501 = vmatprep.subr.mxu0 0.0
    %4502 = vmatpush1.msra.mxu0 0.0
    %4503 = vmatprep.mubr.f32.mxu0 0.0
    %4504 = vmatmul.mubr.f32.gmra.mrb[0].mxu0 %v4422
    %v4505 = vpop.f32.mrb[0].mxu0
    %v4506 = vadd.f32 %v4420, %v4505
    %v4507 = vpop.f32.mrb[0].mxu0
    %4508 = vmatprep.mubr.f32.mxu0 0.0
    %4509 = vmatmul.mubr.f32.gmra.mrb[0].mxu0 %v4425
    %v4510 = vpop.f32.mrb[0].mxu0
    %v4511 = vadd.f32 %v4420, %v4510
    %v4512 = vpop.f32.mrb[0].mxu0
    %4513 = vmatprep.mubr.f32.mxu0 0.0
    %4514 = vmatmul.mubr.f32.gmra.mrb[0].mxu0 %v4428
    %v4515 = vpop.f32.mrb[0].mxu0
    %v4516 = vadd.f32 %v4420, %v4515
    %v4517 = vpop.f32.mrb[0].mxu0
    %4518 = vmatprep.mubr.f32.mxu0 0.0
    %4519 = vmatmul.mubr.f32.gmra.mrb[0].mxu0 %v4431
    %v4520 = vpop.f32.mrb[0].mxu0
    %v4521 = vadd.f32 %v4420, %v4520
    %v4522 = vpop.f32.mrb[0].mxu0
    %4523 = vmatprep.mubr.f32.mxu0 0.0
    %4524 = vmatmul.mubr.f32.gmra.mrb[0].mxu0 %v4434
    %v4525 = vpop.f32.mrb[0].mxu0
    %v4526 = vadd.f32 %v4420, %v4525
    %v4527 = vpop.f32.mrb[0].mxu0
    %4528 = vmatprep.mubr.f32.mxu0 0.0
    %4529 = vmatmul.mubr.f32.gmra.mrb[0].mxu0 %v4437
    %v4530 = vpop.f32.mrb[0].mxu0
    %v4531 = vadd.f32 %v4420, %v4530
    %v4532 = vpop.f32.mrb[0].mxu0
    %4533 = vdwg.mxu0
    %v4534 = vadd.f32 %v2510, %v4506
    %v4535 = vadd.f32 %v2511, %v4511
    %v4536 = vadd.f32 %v2512, %v4516
    %v4537 = vadd.f32 %v2513, %v4521
    %v4538 = vadd.f32 %v2514, %v4526
    %v4539 = vadd.f32 %v2515, %v4531
    %v4540 = vsel %vm101, %v4534, 0.0
    %4541 = vadd.xlane.f32.xlu0 %v4540
    %v4542 = vpop.xlane.xlu0 %4541
    %v4543 = vsel %vm101, %v4535, 0.0
    %4544 = vadd.xlane.f32.xlu0 %v4543
    %v4545 = vpop.xlane.xlu0 %4544
    %v4546 = vsel %vm101, %v4536, 0.0
    %4547 = vadd.xlane.f32.xlu0 %v4546
    %v4548 = vpop.xlane.xlu0 %4547
    %v4549 = vsel %vm101, %v4537, 0.0
    %4550 = vadd.xlane.f32.xlu0 %v4549
    %v4551 = vpop.xlane.xlu0 %4550
    %v4552 = vsel %vm101, %v4538, 0.0
    %4553 = vadd.xlane.f32.xlu0 %v4552
    %v4554 = vpop.xlane.xlu0 %4553
    %v4555 = vsel %vm101, %v4539, 0.0
    %4556 = vadd.xlane.f32.xlu0 %v4555
    %v4557 = vpop.xlane.xlu0 %4556
    %v4558 = vmul.f32 %v4542, %v2109
    %v4559 = vmul.f32 %v4545, %v2109
    %v4560 = vmul.f32 %v4548, %v2109
    %v4561 = vmul.f32 %v4551, %v2109
    %v4562 = vmul.f32 %v4554, %v2109
    %v4563 = vmul.f32 %v4557, %v2109
    %v4564 = vsub.f32 %v4534, %v4558
    %v4565 = vsub.f32 %v4535, %v4559
    %v4566 = vsub.f32 %v4536, %v4560
    %v4567 = vsub.f32 %v4537, %v4561
    %v4568 = vsub.f32 %v4538, %v4562
    %v4569 = vsub.f32 %v4539, %v4563
    %v4570 = vmul.f32 %v4564, %v4564
    %v4571 = vmul.f32 %v4565, %v4565
    %v4572 = vmul.f32 %v4566, %v4566
    %v4573 = vmul.f32 %v4567, %v4567
    %v4574 = vmul.f32 %v4568, %v4568
    %v4575 = vmul.f32 %v4569, %v4569
    %v4576 = vsel %vm101, %v4570, 0.0
    %4577 = vadd.xlane.f32.xlu0 %v4576
    %v4578 = vpop.xlane.xlu0 %4577
    %v4579 = vsel %vm101, %v4571, 0.0
    %4580 = vadd.xlane.f32.xlu0 %v4579
    %v4581 = vpop.xlane.xlu0 %4580
    %v4582 = vsel %vm101, %v4572, 0.0
    %4583 = vadd.xlane.f32.xlu0 %v4582
    %v4584 = vpop.xlane.xlu0 %4583
    %v4585 = vsel %vm101, %v4573, 0.0
    %4586 = vadd.xlane.f32.xlu0 %v4585
    %v4587 = vpop.xlane.xlu0 %4586
    %v4588 = vsel %vm101, %v4574, 0.0
    %4589 = vadd.xlane.f32.xlu0 %v4588
    %v4590 = vpop.xlane.xlu0 %4589
    %v4591 = vsel %vm101, %v4575, 0.0
    %4592 = vadd.xlane.f32.xlu0 %v4591
    %v4593 = vpop.xlane.xlu0 %4592
    %v4594 = vmul.f32 %v4578, %v2109
    %v4595 = vmul.f32 %v4581, %v2109
    %v4596 = vmul.f32 %v4584, %v2109
    %v4597 = vmul.f32 %v4587, %v2109
    %v4598 = vmul.f32 %v4590, %v2109
    %v4599 = vmul.f32 %v4593, %v2109
    %v4600 = vadd.f32 %v4594, 1e-05
    %v4601 = vadd.f32 %v4595, 1e-05
    %v4602 = vadd.f32 %v4596, 1e-05
    %v4603 = vadd.f32 %v4597, 1e-05
    %v4604 = vadd.f32 %v4598, 1e-05
    %v4605 = vadd.f32 %v4599, 1e-05
    %v4606 = vrsqrt.pop %v4600
    %v4607 = vrsqrt.pop %v4601
    %v4608 = vrsqrt.pop %v4602
    %v4609 = vrsqrt.pop %v4603
    %v4610 = vrsqrt.pop %v4604
    %v4611 = vrsqrt.pop %v4605
    %v4612 = vmul.f32 %v4564, %v4606
    %v4613 = vmul.f32 %v4565, %v4607
    %v4614 = vmul.f32 %v4566, %v4608
    %v4615 = vmul.f32 %v4567, %v4609
    %v4616 = vmul.f32 %v4568, %v4610
    %v4617 = vmul.f32 %v4569, %v4611
    %v4618 = vlaneseq
    %v4619 = vshrl.u32 %v4618, 7
    %v4620 = vsub.s32 0, %v4619
    %v4621 = vrot.slane %v2548, %v4620
    %v4622 = vmul.f32 %v4612, %v4621
    %v4623 = vmul.f32 %v4613, %v4621
    %v4624 = vmul.f32 %v4614, %v4621
    %v4625 = vmul.f32 %v4615, %v4621
    %v4626 = vmul.f32 %v4616, %v4621
    %v4627 = vmul.f32 %v4617, %v4621
    %v4628 = vlaneseq
    %v4629 = vshrl.u32 %v4628, 7
    %v4630 = vsub.s32 0, %v4629
    %v4631 = vrot.slane %v2549, %v4630
    %v4632 = vadd.f32 %v4622, %v4631
    %v4633 = vadd.f32 %v4623, %v4631
    %v4634 = vadd.f32 %v4624, %v4631
    %v4635 = vadd.f32 %v4625, %v4631
    %v4636 = vadd.f32 %v4626, %v4631
    %v4637 = vadd.f32 %v4627, %v4631
    %v4638 = vlaneseq
    %v4639 = vshrl.u32 %v4638, 7
    %v4640 = vsub.s32 0, %v4639
    %v4641 = vrot.slane %v2546, %v4640
    %v4643 = vsel %vm101, %v4632, 0
    %v4646 = vsel %vm101, %v4633, 0
    %v4649 = vsel %vm101, %v4634, 0
    %v4652 = vsel %vm101, %v4635, 0
    %v4655 = vsel %vm101, %v4636, 0
    %v4658 = vsel %vm101, %v4637, 0
    %4660 = vmatprep.subr.mxu0 0.0
    %4661 = vmatpush1.msra.mxu0 %v2524
    %4662 = vmatprep.subr.mxu0 0.0
    %4663 = vmatpush1.msra.mxu0 %v2525
    %4664 = vmatprep.subr.mxu0 0.0
    %4665 = vmatpush1.msra.mxu0 %v2526
    %4666 = vmatprep.subr.mxu0 0.0
    %4667 = vmatpush1.msra.mxu0 %v2527
    %4668 = vmatprep.subr.mxu0 0.0
    %4669 = vmatpush1.msra.mxu0 0.0
    %4670 = vmatprep.subr.mxu0 0.0
    %4671 = vmatpush1.msra.mxu0 0.0
    %4672 = vmatprep.subr.mxu0 0.0
    %4673 = vmatpush1.msra.mxu0 0.0
    %4674 = vmatprep.subr.mxu0 0.0
    %4675 = vmatpush1.msra.mxu0 0.0
    %4676 = vmatprep.subr.mxu0 0.0
    %4677 = vmatpush1.msra.mxu0 0.0
    %4678 = vmatprep.subr.mxu0 0.0
    %4679 = vmatpush1.msra.mxu0 0.0
    %4680 = vmatprep.subr.mxu0 0.0
    %4681 = vmatpush1.msra.mxu0 0.0
    %4682 = vmatprep.subr.mxu0 0.0
    %4683 = vmatpush1.msra.mxu0 0.0
    %4684 = vmatprep.subr.mxu0 0.0
    %4685 = vmatpush1.msra.mxu0 0.0
    %4686 = vmatprep.subr.mxu0 0.0
    %4687 = vmatpush1.msra.mxu0 0.0
    %4688 = vmatprep.subr.mxu0 0.0
    %4689 = vmatpush1.msra.mxu0 0.0
    %4690 = vmatprep.subr.mxu0 0.0
    %4691 = vmatpush1.msra.mxu0 0.0
    %4692 = vmatprep.subr.mxu0 0.0
    %4693 = vmatpush1.msra.mxu0 0.0
    %4694 = vmatprep.subr.mxu0 0.0
    %4695 = vmatpush1.msra.mxu0 0.0
    %4696 = vmatprep.subr.mxu0 0.0
    %4697 = vmatpush1.msra.mxu0 0.0
    %4698 = vmatprep.subr.mxu0 0.0
    %4699 = vmatpush1.msra.mxu0 0.0
    %4700 = vmatprep.subr.mxu0 0.0
    %4701 = vmatpush1.msra.mxu0 0.0
    %4702 = vmatprep.subr.mxu0 0.0
    %4703 = vmatpush1.msra.mxu0 0.0
    %4704 = vmatprep.subr.mxu0 0.0
    %4705 = vmatpush1.msra.mxu0 0.0
    %4706 = vmatprep.subr.mxu0 0.0
    %4707 = vmatpush1.msra.mxu0 0.0
    %4708 = vmatprep.subr.mxu0 0.0
    %4709 = vmatpush1.msra.mxu0 0.0
    %4710 = vmatprep.subr.mxu0 0.0
    %4711 = vmatpush1.msra.mxu0 0.0
    %4712 = vmatprep.subr.mxu0 0.0
    %4713 = vmatpush1.msra.mxu0 0.0
    %4714 = vmatprep.subr.mxu0 0.0
    %4715 = vmatpush1.msra.mxu0 0.0
    %4716 = vmatprep.subr.mxu0 0.0
    %4717 = vmatpush1.msra.mxu0 0.0
    %4718 = vmatprep.subr.mxu0 0.0
    %4719 = vmatpush1.msra.mxu0 0.0
    %4720 = vmatprep.subr.mxu0 0.0
    %4721 = vmatpush1.msra.mxu0 0.0
    %4722 = vmatprep.subr.mxu0 0.0
    %4723 = vmatpush1.msra.mxu0 0.0
    %4724 = vmatprep.mubr.f32.mxu0 0.0
    %4725 = vmatmul.mubr.f32.gmra.mrb[0].mxu0 %v4643
    %v4726 = vpop.f32.mrb[0].mxu0
    %v4727 = vadd.f32 %v4641, %v4726
    %v4728 = vpop.f32.mrb[0].mxu0
    %4729 = vmatprep.mubr.f32.mxu0 0.0
    %4730 = vmatmul.mubr.f32.gmra.mrb[0].mxu0 %v4646
    %v4731 = vpop.f32.mrb[0].mxu0
    %v4732 = vadd.f32 %v4641, %v4731
    %v4733 = vpop.f32.mrb[0].mxu0
    %4734 = vmatprep.mubr.f32.mxu0 0.0
    %4735 = vmatmul.mubr.f32.gmra.mrb[0].mxu0 %v4649
    %v4736 = vpop.f32.mrb[0].mxu0
    %v4737 = vadd.f32 %v4641, %v4736
    %v4738 = vpop.f32.mrb[0].mxu0
    %4739 = vmatprep.mubr.f32.mxu0 0.0
    %4740 = vmatmul.mubr.f32.gmra.mrb[0].mxu0 %v4652
    %v4741 = vpop.f32.mrb[0].mxu0
    %v4742 = vadd.f32 %v4641, %v4741
    %v4743 = vpop.f32.mrb[0].mxu0
    %4744 = vmatprep.mubr.f32.mxu0 0.0
    %4745 = vmatmul.mubr.f32.gmra.mrb[0].mxu0 %v4655
    %v4746 = vpop.f32.mrb[0].mxu0
    %v4747 = vadd.f32 %v4641, %v4746
    %v4748 = vpop.f32.mrb[0].mxu0
    %4749 = vmatprep.mubr.f32.mxu0 0.0
    %4750 = vmatmul.mubr.f32.gmra.mrb[0].mxu0 %v4658
    %v4751 = vpop.f32.mrb[0].mxu0
    %v4752 = vadd.f32 %v4641, %v4751
    %v4753 = vpop.f32.mrb[0].mxu0
    %4754 = vdwg.mxu0
    %v4755 = vmax.f32 %v4727, 0.0
    %v4756 = vmax.f32 %v4732, 0.0
    %v4757 = vmax.f32 %v4737, 0.0
    %v4758 = vmax.f32 %v4742, 0.0
    %v4759 = vmax.f32 %v4747, 0.0
    %v4760 = vmax.f32 %v4752, 0.0
    %v4761 = vlaneseq
    %v4762 = vshrl.u32 %v4761, 7
    %v4763 = vsub.s32 0, %v4762
    %v4764 = vrot.slane %v2547, %v4763
    %4765 = vmatprep.subr.mxu0 0.0
    %4766 = vmatpush1.msra.mxu0 %v2528
    %4767 = vmatprep.subr.mxu0 0.0
    %4768 = vmatpush1.msra.mxu0 %v2529
    %4769 = vmatprep.subr.mxu0 0.0
    %4770 = vmatpush1.msra.mxu0 %v2530
    %4771 = vmatprep.subr.mxu0 0.0
    %4772 = vmatpush1.msra.mxu0 %v2531
    %4773 = vmatprep.subr.mxu0 0.0
    %4774 = vmatpush1.msra.mxu0 %v2532
    %4775 = vmatprep.subr.mxu0 0.0
    %4776 = vmatpush1.msra.mxu0 %v2533
    %4777 = vmatprep.subr.mxu0 0.0
    %4778 = vmatpush1.msra.mxu0 %v2534
    %4779 = vmatprep.subr.mxu0 0.0
    %4780 = vmatpush1.msra.mxu0 %v2535
    %4781 = vmatprep.subr.mxu0 0.0
    %4782 = vmatpush1.msra.mxu0 %v2536
    %4783 = vmatprep.subr.mxu0 0.0
    %4784 = vmatpush1.msra.mxu0 %v2537
    %4785 = vmatprep.subr.mxu0 0.0
    %4786 = vmatpush1.msra.mxu0 %v2538
    %4787 = vmatprep.subr.mxu0 0.0
    %4788 = vmatpush1.msra.mxu0 %v2539
    %4789 = vmatprep.subr.mxu0 0.0
    %4790 = vmatpush1.msra.mxu0 %v2540
    %4791 = vmatprep.subr.mxu0 0.0
    %4792 = vmatpush1.msra.mxu0 %v2541
    %4793 = vmatprep.subr.mxu0 0.0
    %4794 = vmatpush1.msra.mxu0 %v2542
    %4795 = vmatprep.subr.mxu0 0.0
    %4796 = vmatpush1.msra.mxu0 %v2543
    %4797 = vmatprep.subr.mxu0 0.0
    %4798 = vmatpush1.msra.mxu0 0.0
    %4799 = vmatprep.subr.mxu0 0.0
    %4800 = vmatpush1.msra.mxu0 0.0
    %4801 = vmatprep.subr.mxu0 0.0
    %4802 = vmatpush1.msra.mxu0 0.0
    %4803 = vmatprep.subr.mxu0 0.0
    %4804 = vmatpush1.msra.mxu0 0.0
    %4805 = vmatprep.subr.mxu0 0.0
    %4806 = vmatpush1.msra.mxu0 0.0
    %4807 = vmatprep.subr.mxu0 0.0
    %4808 = vmatpush1.msra.mxu0 0.0
    %4809 = vmatprep.subr.mxu0 0.0
    %4810 = vmatpush1.msra.mxu0 0.0
    %4811 = vmatprep.subr.mxu0 0.0
    %4812 = vmatpush1.msra.mxu0 0.0
    %4813 = vmatprep.subr.mxu0 0.0
    %4814 = vmatpush1.msra.mxu0 0.0
    %4815 = vmatprep.subr.mxu0 0.0
    %4816 = vmatpush1.msra.mxu0 0.0
    %4817 = vmatprep.subr.mxu0 0.0
    %4818 = vmatpush1.msra.mxu0 0.0
    %4819 = vmatprep.subr.mxu0 0.0
    %4820 = vmatpush1.msra.mxu0 0.0
    %4821 = vmatprep.subr.mxu0 0.0
    %4822 = vmatpush1.msra.mxu0 0.0
    %4823 = vmatprep.subr.mxu0 0.0
    %4824 = vmatpush1.msra.mxu0 0.0
    %4825 = vmatprep.subr.mxu0 0.0
    %4826 = vmatpush1.msra.mxu0 0.0
    %4827 = vmatprep.subr.mxu0 0.0
    %4828 = vmatpush1.msra.mxu0 0.0
    %4829 = vmatprep.mubr.f32.mxu0 0.0
    %4830 = vmatmul.mubr.f32.gmra.mrb[0].mxu0 %v4755
    %v4831 = vpop.f32.mrb[0].mxu0
    %v4832 = vadd.f32 %v4764, %v4831
    %v4833 = vpop.f32.mrb[0].mxu0
    %4834 = vmatprep.mubr.f32.mxu0 0.0
    %4835 = vmatmul.mubr.f32.gmra.mrb[0].mxu0 %v4756
    %v4836 = vpop.f32.mrb[0].mxu0
    %v4837 = vpop.f32.mrb[0].mxu0
    %4838 = vmatprep.mubr.f32.mxu0 0.0
    %4839 = vmatmul.mubr.f32.gmra.mrb[0].mxu0 %v4757
    %v4840 = vpop.f32.mrb[0].mxu0
    %v4841 = vpop.f32.mrb[0].mxu0
    %4842 = vmatprep.mubr.f32.mxu0 0.0
    %4843 = vmatmul.mubr.f32.gmra.mrb[0].mxu0 %v4758
    %v4844 = vpop.f32.mrb[0].mxu0
    %v4845 = vadd.f32 %v4764, %v4844
    %v4846 = vpop.f32.mrb[0].mxu0
    %4847 = vmatprep.mubr.f32.mxu0 0.0
    %4848 = vmatmul.mubr.f32.gmra.mrb[0].mxu0 %v4759
    %v4849 = vpop.f32.mrb[0].mxu0
    %v4850 = vpop.f32.mrb[0].mxu0
    %4851 = vmatprep.mubr.f32.mxu0 0.0
    %4852 = vmatmul.mubr.f32.gmra.mrb[0].mxu0 %v4760
    %v4853 = vpop.f32.mrb[0].mxu0
    %v4854 = vpop.f32.mrb[0].mxu0
    %4855 = vdwg.mxu0
    %v4856 = vadd.f32 %v4632, %v4832
    %v4857 = vadd.f32 %v4635, %v4845
    %v4858 = vsel %vm101, %v4856, 0.0
    %4859 = vadd.xlane.f32.xlu0 %v4858
    %v4860 = vpop.xlane.xlu0 %4859
    %v4861 = vsel %vm101, %v4857, 0.0
    %4862 = vadd.xlane.f32.xlu0 %v4861
    %v4863 = vpop.xlane.xlu0 %4862
    %v4864 = vmul.f32 %v4860, %v2109
    %v4865 = vmul.f32 %v4863, %v2109
    %v4866 = vsub.f32 %v4856, %v4864
    %v4867 = vsub.f32 %v4857, %v4865
    %v4868 = vmul.f32 %v4866, %v4866
    %v4869 = vmul.f32 %v4867, %v4867
    %v4870 = vsel %vm101, %v4868, 0.0
    %4871 = vadd.xlane.f32.xlu0 %v4870
    %v4872 = vpop.xlane.xlu0 %4871
    %v4873 = vsel %vm101, %v4869, 0.0
    %4874 = vadd.xlane.f32.xlu0 %v4873
    %v4875 = vpop.xlane.xlu0 %4874
    %v4876 = vmul.f32 %v4872, %v2109
    %v4877 = vmul.f32 %v4875, %v2109
    %v4878 = vadd.f32 %v4876, 1e-05
    %v4879 = vadd.f32 %v4877, 1e-05
    %v4880 = vrsqrt.pop %v4878
    %v4881 = vrsqrt.pop %v4879
    %v4882 = vmul.f32 %v4866, %v4880
    %v4883 = vmul.f32 %v4867, %v4881
    %v4884 = vlaneseq
    %v4885 = vshrl.u32 %v4884, 7
    %v4886 = vsub.s32 0, %v4885
    %v4887 = vrot.slane %v2550, %v4886
    %v4888 = vmul.f32 %v4882, %v4887
    %v4889 = vmul.f32 %v4883, %v4887
    %v4890 = vlaneseq
    %v4891 = vshrl.u32 %v4890, 7
    %v4892 = vsub.s32 0, %v4891
    %v4893 = vrot.slane %v2551, %v4892
    %v4894 = vadd.f32 %v4888, %v4893
    %v4895 = vadd.f32 %v4889, %v4893
    %v4897 = vrot.slane %v4895, 7
    %vm4899 = vcmask 1040384
    %v4900 = vsel %vm4899, %v4894, %v4897
    %v4901 = vld [vmem:[%s5 + $0x10] sm:$0x1]
    %v4902 = vld [vmem:[%s5 + $0x11] sm:$0x1]
    %vm4903 = vcmask 254976
    %v4904 = vsel %vm4903, %v4900, 0.0
    %4905 = vadd.xlane.f32.xlu0 %v4904
    %v4906 = vpop.xlane.xlu0 %4905
    %v4907 = vmul.f32 %v4906, %v2109
    %v4908 = vsub.f32 %v4900, %v4907
    %v4909 = vmul.f32 %v4908, %v4908
    %v4910 = vsel %vm4903, %v4909, 0.0
    %4911 = vadd.xlane.f32.xlu0 %v4910
    %v4912 = vpop.xlane.xlu0 %4911
    %v4913 = vmul.f32 %v4912, %v2109
    %v4914 = vadd.f32 %v4913, 1e-05
    %v4915 = vrsqrt.pop %v4914
    %v4916 = vmul.f32 %v4908, %v4915
    %v4917 = vlaneseq
    %v4918 = vshrl.u32 %v4917, 7
    %v4919 = vsub.s32 0, %v4918
    %v4920 = vrot.slane %v4901, %v4919
    %v4921 = vmul.f32 %v4916, %v4920
    %v4922 = vlaneseq
    %v4923 = vshrl.u32 %v4922, 7
    %v4924 = vsub.s32 0, %v4923
    %v4925 = vrot.slane %v4902, %v4924
    %v4926 = vadd.f32 %v4921, %v4925
    %v4927 = vld [vmem:[%s7] sm:$0xff]
    %v4928 = vld [vmem:[%s7 + $0x8] sm:$0xff]
    %v4929 = vld [vmem:[%s7 + $0x10] sm:$0xff]
    %v4930 = vld [vmem:[%s7 + $0x18] sm:$0xff]
    %v4931 = vld [vmem:[%s5 + $0x12] sm:$0x1]
    %v4932 = vlaneseq
    %v4933 = vshrl.u32 %v4932, 7
    %v4934 = vsub.s32 0, %v4933
    %v4935 = vrot.slane %v4931, %v4934
    %v4937 = vsel %vm101, %v4926, 0
    %4939 = vmatprep.subr.mxu0 0.0
    %4940 = vmatpush1.msra.mxu0 %v4927
    %4941 = vmatprep.subr.mxu0 0.0
    %4942 = vmatpush1.msra.mxu0 %v4928
    %4943 = vmatprep.subr.mxu0 0.0
    %4944 = vmatpush1.msra.mxu0 %v4929
    %4945 = vmatprep.subr.mxu0 0.0
    %4946 = vmatpush1.msra.mxu0 %v4930
    %4947 = vmatprep.subr.mxu0 0.0
    %4948 = vmatpush1.msra.mxu0 0.0
    %4949 = vmatprep.subr.mxu0 0.0
    %4950 = vmatpush1.msra.mxu0 0.0
    %4951 = vmatprep.subr.mxu0 0.0
    %4952 = vmatpush1.msra.mxu0 0.0
    %4953 = vmatprep.subr.mxu0 0.0
    %4954 = vmatpush1.msra.mxu0 0.0
    %4955 = vmatprep.subr.mxu0 0.0
    %4956 = vmatpush1.msra.mxu0 0.0
    %4957 = vmatprep.subr.mxu0 0.0
    %4958 = vmatpush1.msra.mxu0 0.0
    %4959 = vmatprep.subr.mxu0 0.0
    %4960 = vmatpush1.msra.mxu0 0.0
    %4961 = vmatprep.subr.mxu0 0.0
    %4962 = vmatpush1.msra.mxu0 0.0
    %4963 = vmatprep.subr.mxu0 0.0
    %4964 = vmatpush1.msra.mxu0 0.0
    %4965 = vmatprep.subr.mxu0 0.0
    %4966 = vmatpush1.msra.mxu0 0.0
    %4967 = vmatprep.subr.mxu0 0.0
    %4968 = vmatpush1.msra.mxu0 0.0
    %4969 = vmatprep.subr.mxu0 0.0
    %4970 = vmatpush1.msra.mxu0 0.0
    %4971 = vmatprep.subr.mxu0 0.0
    %4972 = vmatpush1.msra.mxu0 0.0
    %4973 = vmatprep.subr.mxu0 0.0
    %4974 = vmatpush1.msra.mxu0 0.0
    %4975 = vmatprep.subr.mxu0 0.0
    %4976 = vmatpush1.msra.mxu0 0.0
    %4977 = vmatprep.subr.mxu0 0.0
    %4978 = vmatpush1.msra.mxu0 0.0
    %4979 = vmatprep.subr.mxu0 0.0
    %4980 = vmatpush1.msra.mxu0 0.0
    %4981 = vmatprep.subr.mxu0 0.0
    %4982 = vmatpush1.msra.mxu0 0.0
    %4983 = vmatprep.subr.mxu0 0.0
    %4984 = vmatpush1.msra.mxu0 0.0
    %4985 = vmatprep.subr.mxu0 0.0
    %4986 = vmatpush1.msra.mxu0 0.0
    %4987 = vmatprep.subr.mxu0 0.0
    %4988 = vmatpush1.msra.mxu0 0.0
    %4989 = vmatprep.subr.mxu0 0.0
    %4990 = vmatpush1.msra.mxu0 0.0
    %4991 = vmatprep.subr.mxu0 0.0
    %4992 = vmatpush1.msra.mxu0 0.0
    %4993 = vmatprep.subr.mxu0 0.0
    %4994 = vmatpush1.msra.mxu0 0.0
    %4995 = vmatprep.subr.mxu0 0.0
    %4996 = vmatpush1.msra.mxu0 0.0
    %4997 = vmatprep.subr.mxu0 0.0
    %4998 = vmatpush1.msra.mxu0 0.0
    %4999 = vmatprep.subr.mxu0 0.0
    %5000 = vmatpush1.msra.mxu0 0.0
    %5001 = vmatprep.subr.mxu0 0.0
    %5002 = vmatpush1.msra.mxu0 0.0
    %5003 = vmatprep.mubr.f32.mxu0 0.0
    %5004 = vmatmul.mubr.f32.gmra.mrb[0].mxu0 %v4937
    %v5005 = vpop.f32.mrb[0].mxu0
    %v5006 = vadd.f32 %v4935, %v5005
    %v5007 = vpop.f32.mrb[0].mxu0
    %5008 = vdwg.mxu0
    %5009 = vst [vmem:[#allocation2] sm:$0x3] %v5006
    // Predicated region
    $region34: #{tpu_custom_call.1} parent=1 // pred_check
      _
    $region35: #{tpu_custom_call.1} parent=1 // pred_check_branch
      %5011 = sbr.rel (0) target = $region37
    $region36: #{tpu_custom_call.1} parent=1 // pred_region
      %s5013 = ssub.s32 32, 32
      %5014 = vsyncadd [#allocation3], %s5013
      %s5016 = sshll.u32 [#allocation2], 4
      %s5017 = int_to_ptr.vmem [resolvable:$true] %s5016
      %5019 = dma.vmem_to_hbm [thread:$0]  %s5017, 32, %s8, [#allocation3]
    $region37: #{tpu_custom_call.1} parent=1 // pred_fallthru
      _
    // Predicated region
    $region38: #{tpu_custom_call.1} parent=1 // pred_check
      _
    $region39: #{tpu_custom_call.1} parent=1 // pred_check_branch
      %5021 = sbr.rel (0) target = $region41
    $region40: #{tpu_custom_call.1} parent=1 // pred_region
      %5022 = dma.done [#allocation3], 32
    $region41: #{tpu_custom_call.1} parent=1 // pred_fallthru
      _
    %5023 = vsyncpa [#allocation3], 1

</llo_original>
